<compile_context>
chip_gen: v7x
topology: tpu7x:2x2x1
jax: 0.10.0
libtpu: 0.0.40
codegen_flags: <defaults>
</compile_context>

<pallas_src>
import math

import jax
import jax.numpy as jnp
from jax import lax
from jax.experimental import pallas as pl
from jax.experimental.pallas import tpu as pltpu

S_SQUARINGS = 6    # expm scaling-and-squaring steps (A pre-scaled by 2**-6)
K_TAYLOR = 8       # Taylor degree of the scaled matrix (Paterson-Stockmeyer, r=3)
B_TILE = 128       # batch elements per grid step (one full lane width)

_INV_FACT = tuple(1.0 / math.factorial(k) for k in range(K_TAYLOR + 1))


def transopt_kernel(a_ref, z_ref, out_ref):
    # a_ref   : (Np, Np, Bt) f32   Ak[i, j, b] = A_b^T[i, j]
    # z_ref   : (Np, Bt)     f32   zk[j, b]    = z[b, j]
    # out_ref : (Np, Bt)     f32   out[i, b]   = (expm(A_b) @ z[b])[i]
    Np = a_ref.shape[0]
    Bt = a_ref.shape[2]
    c = _INV_FACT

    def bmm(x, y):
        # Lane-parallel matmul: out[i, j, b] = sum_k x[i, k, b] * y[k, j, b].
        # N unrolled broadcast-multiply-accumulate steps on (Np, Np, Bt) tiles.
        acc = x[:, 0:1, :] * y[0:1, :, :]
        for k in range(1, Np):
            acc = acc + x[:, k:k + 1, :] * y[k:k + 1, :, :]
        return acc

    # Per-lane identity: eye3[i, j, b] = (i == j).
    row = lax.broadcasted_iota(jnp.int32, (Np, Np, Bt), 0)
    col = lax.broadcasted_iota(jnp.int32, (Np, Np, Bt), 1)
    eye3 = (row == col).astype(jnp.float32)

    # Scale.
    A = a_ref[...] * jnp.float32(1.0 / (2.0 ** S_SQUARINGS))

    # Degree-8 Taylor via Paterson-Stockmeyer (r = 3): 4 batched matmuls.
    A2 = bmm(A, A)
    A3 = bmm(A2, A)
    b0 = c[0] * eye3 + c[1] * A + c[2] * A2
    b1 = c[3] * eye3 + c[4] * A + c[5] * A2
    b2 = c[6] * eye3 + c[7] * A + c[8] * A2
    E = b1 + bmm(A3, b2)
    E = b0 + bmm(A3, E)

    # Repeated squaring (undo the 2**-S scaling).
    for _ in range(S_SQUARINGS):
        E = bmm(E, E)

    # E[j, i, b] = T_b[i, j]; apply: out[i, b] = sum_j T_b[i, j] * z[b, j].
    z = z_ref[...]
    out = E[0, :, :] * z[0:1, :]
    for j in range(1, Np):
        out = out + E[j, :, :] * z[j:j + 1, :]
    out_ref[...] = out.astype(out_ref.dtype)


@jax.jit
def transopt_forward(input_z, coeff, Psi):
    """Pallas TransOpt forward. input_z: (B,N), coeff: (B,M), Psi: (N*N, M)."""
    B, N = input_z.shape
    M = coeff.shape[1]
    assert Psi.shape == (N * N, M)

    Np = ((N + 7) // 8) * 8                      # pad latent dim to sublane multiple
    Bp = ((B + B_TILE - 1) // B_TILE) * B_TILE   # pad batch to lane-tile multiple

    # Ak[i, j, b] = A_b^T[i, j] where A_b = reshape(Psi @ coeff[b], (N,N), 'F').
    # (Psi @ coeff^T).reshape(N, N, B) is already that layout — no transpose.
    Ak = jnp.dot(Psi.astype(jnp.float32),
                 coeff.astype(jnp.float32).T).reshape(N, N, B)
    # Zero-padding is safe: expm of a [[A,0],[0,0]] embedding is block-diagonal
    # with identity in the padded block, and padded z entries are zero.
    Ak = jnp.pad(Ak, ((0, Np - N), (0, Np - N), (0, Bp - B)))
    zk = jnp.pad(input_z.astype(jnp.float32).T, ((0, Np - N), (0, Bp - B)))

    out_k = pl.pallas_call(
        transopt_kernel,
        out_shape=jax.ShapeDtypeStruct((Np, Bp), jnp.float32),
        grid_spec=pltpu.PrefetchScalarGridSpec(
            num_scalar_prefetch=0,
            grid=(Bp // B_TILE,),
            in_specs=[
                pl.BlockSpec((Np, Np, B_TILE), lambda g: (0, 0, g)),  # A tiles
                pl.BlockSpec((Np, B_TILE), lambda g: (0, g)),         # z tiles
            ],
            out_specs=pl.BlockSpec((Np, B_TILE), lambda g: (0, g)),
        ),
        compiler_params=pltpu.CompilerParams(
            dimension_semantics=("parallel",),      # batch groups split across TCs
            vmem_limit_bytes=32 * 1024 * 1024,
        ),
    )(Ak, zk)

    # (Np, Bp) -> (B, N), dropping padding.
    out = out_k[:N, :B].T
    return out.astype(input_z.dtype)


def transopt_reference(input_z, coeff, Psi):
    """Pure-JAX reference matching the PyTorch/NumPy forward."""
    B, N = input_z.shape
    outs = []
    for b in range(B):
        v = Psi @ coeff[b]                     # (N*N,)
        A = jnp.reshape(v, (N, N)).T           # Fortran-order reshape (square)
        T = jax.scipy.linalg.expm(A)
        outs.append(T @ input_z[b])
    return jnp.stack(outs, axis=0)


if __name__ == "__main__":
    key = jax.random.PRNGKey(0)
    k1, k2, k3 = jax.random.split(key, 3)

    B, N, M = 2, 8, 4                          # batch, latent dim, dictionary size
    input_z = jax.random.normal(k1, (B, N), dtype=jnp.float32)
    coeff = 0.5 * jax.random.normal(k2, (B, M), dtype=jnp.float32)
    Psi = 0.3 * jax.random.normal(k3, (N * N, M), dtype=jnp.float32)

    out = transopt_forward(input_z, coeff, Psi)
    jax.block_until_ready(out)

    ref = transopt_reference(input_z, coeff, Psi)
    assert out.shape == (B, N)
    assert jnp.allclose(out, ref, atol=1e-4, rtol=1e-4), (out, ref)

    print("KERNEL_OK")
</pallas_src>

<mosaic_0001>
module attributes {stable_mosaic.version = 11 : i64} {
  func.func @transopt_kernel(%arg0: i32, %arg1: memref<8x8x128xf32, #tpu.memory_space<vmem>>, %arg2: memref<8x128xf32, #tpu.memory_space<vmem>>, %arg3: memref<8x128xf32, #tpu.memory_space<vmem>>) attributes {dimension_semantics = [#tpu.dimension_semantics<parallel>], iteration_bounds = array<i64: 1>, scalar_prefetch = 0 : i64, scratch_operands = 0 : i64, tpu.core_type = #tpu.core_type<tc>, window_params = [{transform_indices = @transform_0, window_bounds = array<i64: 8, 8, 128>}, {transform_indices = @transform_1, window_bounds = array<i64: 8, 128>}, {transform_indices = @transform_2, window_bounds = array<i64: 8, 128>}]} {
    %0 = tpu.iota {dimensions = array<i32: 0>} : vector<8x8x128xi32>
    %1 = tpu.iota {dimensions = array<i32: 1>} : vector<8x8x128xi32>
    %2 = arith.cmpi eq, %0, %1 : vector<8x8x128xi32>
    %3 = arith.extui %2 : vector<8x8x128xi1> to vector<8x8x128xi32>
    %4 = arith.sitofp %3 : vector<8x8x128xi32> to vector<8x8x128xf32>
    %c0 = arith.constant 0 : index
    %c0_0 = arith.constant 0 : index
    %c0_1 = arith.constant 0 : index
    %5 = vector.load %arg1[%c0, %c0_0, %c0_1] : memref<8x8x128xf32, #tpu.memory_space<vmem>>, vector<8x8x128xf32>
    %cst = arith.constant 1.562500e-02 : f32
    %6 = vector.broadcast %cst : f32 to vector<8x8x128xf32>
    %7 = arith.mulf %5, %6 : vector<8x8x128xf32>
    %8 = vector.extract_strided_slice %7 {offsets = [0, 0, 0], sizes = [8, 1, 128], strides = [1, 1, 1]} : vector<8x8x128xf32> to vector<8x1x128xf32>
    %9 = vector.extract_strided_slice %7 {offsets = [0, 0, 0], sizes = [1, 8, 128], strides = [1, 1, 1]} : vector<8x8x128xf32> to vector<1x8x128xf32>
    %10 = vector.broadcast %8 : vector<8x1x128xf32> to vector<8x8x128xf32>
    %11 = vector.broadcast %9 : vector<1x8x128xf32> to vector<8x8x128xf32>
    %12 = arith.mulf %10, %11 : vector<8x8x128xf32>
    %13 = vector.extract_strided_slice %7 {offsets = [0, 1, 0], sizes = [8, 1, 128], strides = [1, 1, 1]} : vector<8x8x128xf32> to vector<8x1x128xf32>
    %14 = vector.extract_strided_slice %7 {offsets = [1, 0, 0], sizes = [1, 8, 128], strides = [1, 1, 1]} : vector<8x8x128xf32> to vector<1x8x128xf32>
    %15 = vector.broadcast %13 : vector<8x1x128xf32> to vector<8x8x128xf32>
    %16 = vector.broadcast %14 : vector<1x8x128xf32> to vector<8x8x128xf32>
    %17 = arith.mulf %15, %16 : vector<8x8x128xf32>
    %18 = arith.addf %12, %17 : vector<8x8x128xf32>
    %19 = vector.extract_strided_slice %7 {offsets = [0, 2, 0], sizes = [8, 1, 128], strides = [1, 1, 1]} : vector<8x8x128xf32> to vector<8x1x128xf32>
    %20 = vector.extract_strided_slice %7 {offsets = [2, 0, 0], sizes = [1, 8, 128], strides = [1, 1, 1]} : vector<8x8x128xf32> to vector<1x8x128xf32>
    %21 = vector.broadcast %19 : vector<8x1x128xf32> to vector<8x8x128xf32>
    %22 = vector.broadcast %20 : vector<1x8x128xf32> to vector<8x8x128xf32>
    %23 = arith.mulf %21, %22 : vector<8x8x128xf32>
    %24 = arith.addf %18, %23 : vector<8x8x128xf32>
    %25 = vector.extract_strided_slice %7 {offsets = [0, 3, 0], sizes = [8, 1, 128], strides = [1, 1, 1]} : vector<8x8x128xf32> to vector<8x1x128xf32>
    %26 = vector.extract_strided_slice %7 {offsets = [3, 0, 0], sizes = [1, 8, 128], strides = [1, 1, 1]} : vector<8x8x128xf32> to vector<1x8x128xf32>
    %27 = vector.broadcast %25 : vector<8x1x128xf32> to vector<8x8x128xf32>
    %28 = vector.broadcast %26 : vector<1x8x128xf32> to vector<8x8x128xf32>
    %29 = arith.mulf %27, %28 : vector<8x8x128xf32>
    %30 = arith.addf %24, %29 : vector<8x8x128xf32>
    %31 = vector.extract_strided_slice %7 {offsets = [0, 4, 0], sizes = [8, 1, 128], strides = [1, 1, 1]} : vector<8x8x128xf32> to vector<8x1x128xf32>
    %32 = vector.extract_strided_slice %7 {offsets = [4, 0, 0], sizes = [1, 8, 128], strides = [1, 1, 1]} : vector<8x8x128xf32> to vector<1x8x128xf32>
    %33 = vector.broadcast %31 : vector<8x1x128xf32> to vector<8x8x128xf32>
    %34 = vector.broadcast %32 : vector<1x8x128xf32> to vector<8x8x128xf32>
    %35 = arith.mulf %33, %34 : vector<8x8x128xf32>
    %36 = arith.addf %30, %35 : vector<8x8x128xf32>
    %37 = vector.extract_strided_slice %7 {offsets = [0, 5, 0], sizes = [8, 1, 128], strides = [1, 1, 1]} : vector<8x8x128xf32> to vector<8x1x128xf32>
    %38 = vector.extract_strided_slice %7 {offsets = [5, 0, 0], sizes = [1, 8, 128], strides = [1, 1, 1]} : vector<8x8x128xf32> to vector<1x8x128xf32>
    %39 = vector.broadcast %37 : vector<8x1x128xf32> to vector<8x8x128xf32>
    %40 = vector.broadcast %38 : vector<1x8x128xf32> to vector<8x8x128xf32>
    %41 = arith.mulf %39, %40 : vector<8x8x128xf32>
    %42 = arith.addf %36, %41 : vector<8x8x128xf32>
    %43 = vector.extract_strided_slice %7 {offsets = [0, 6, 0], sizes = [8, 1, 128], strides = [1, 1, 1]} : vector<8x8x128xf32> to vector<8x1x128xf32>
    %44 = vector.extract_strided_slice %7 {offsets = [6, 0, 0], sizes = [1, 8, 128], strides = [1, 1, 1]} : vector<8x8x128xf32> to vector<1x8x128xf32>
    %45 = vector.broadcast %43 : vector<8x1x128xf32> to vector<8x8x128xf32>
    %46 = vector.broadcast %44 : vector<1x8x128xf32> to vector<8x8x128xf32>
    %47 = arith.mulf %45, %46 : vector<8x8x128xf32>
    %48 = arith.addf %42, %47 : vector<8x8x128xf32>
    %49 = vector.extract_strided_slice %7 {offsets = [0, 7, 0], sizes = [8, 1, 128], strides = [1, 1, 1]} : vector<8x8x128xf32> to vector<8x1x128xf32>
    %50 = vector.extract_strided_slice %7 {offsets = [7, 0, 0], sizes = [1, 8, 128], strides = [1, 1, 1]} : vector<8x8x128xf32> to vector<1x8x128xf32>
    %51 = vector.broadcast %49 : vector<8x1x128xf32> to vector<8x8x128xf32>
    %52 = vector.broadcast %50 : vector<1x8x128xf32> to vector<8x8x128xf32>
    %53 = arith.mulf %51, %52 : vector<8x8x128xf32>
    %54 = arith.addf %48, %53 : vector<8x8x128xf32>
    %55 = vector.extract_strided_slice %54 {offsets = [0, 0, 0], sizes = [8, 1, 128], strides = [1, 1, 1]} : vector<8x8x128xf32> to vector<8x1x128xf32>
    %56 = vector.extract_strided_slice %7 {offsets = [0, 0, 0], sizes = [1, 8, 128], strides = [1, 1, 1]} : vector<8x8x128xf32> to vector<1x8x128xf32>
    %57 = vector.broadcast %55 : vector<8x1x128xf32> to vector<8x8x128xf32>
    %58 = vector.broadcast %56 : vector<1x8x128xf32> to vector<8x8x128xf32>
    %59 = arith.mulf %57, %58 : vector<8x8x128xf32>
    %60 = vector.extract_strided_slice %54 {offsets = [0, 1, 0], sizes = [8, 1, 128], strides = [1, 1, 1]} : vector<8x8x128xf32> to vector<8x1x128xf32>
    %61 = vector.extract_strided_slice %7 {offsets = [1, 0, 0], sizes = [1, 8, 128], strides = [1, 1, 1]} : vector<8x8x128xf32> to vector<1x8x128xf32>
    %62 = vector.broadcast %60 : vector<8x1x128xf32> to vector<8x8x128xf32>
    %63 = vector.broadcast %61 : vector<1x8x128xf32> to vector<8x8x128xf32>
    %64 = arith.mulf %62, %63 : vector<8x8x128xf32>
    %65 = arith.addf %59, %64 : vector<8x8x128xf32>
    %66 = vector.extract_strided_slice %54 {offsets = [0, 2, 0], sizes = [8, 1, 128], strides = [1, 1, 1]} : vector<8x8x128xf32> to vector<8x1x128xf32>
    %67 = vector.extract_strided_slice %7 {offsets = [2, 0, 0], sizes = [1, 8, 128], strides = [1, 1, 1]} : vector<8x8x128xf32> to vector<1x8x128xf32>
    %68 = vector.broadcast %66 : vector<8x1x128xf32> to vector<8x8x128xf32>
    %69 = vector.broadcast %67 : vector<1x8x128xf32> to vector<8x8x128xf32>
    %70 = arith.mulf %68, %69 : vector<8x8x128xf32>
    %71 = arith.addf %65, %70 : vector<8x8x128xf32>
    %72 = vector.extract_strided_slice %54 {offsets = [0, 3, 0], sizes = [8, 1, 128], strides = [1, 1, 1]} : vector<8x8x128xf32> to vector<8x1x128xf32>
    %73 = vector.extract_strided_slice %7 {offsets = [3, 0, 0], sizes = [1, 8, 128], strides = [1, 1, 1]} : vector<8x8x128xf32> to vector<1x8x128xf32>
    %74 = vector.broadcast %72 : vector<8x1x128xf32> to vector<8x8x128xf32>
    %75 = vector.broadcast %73 : vector<1x8x128xf32> to vector<8x8x128xf32>
    %76 = arith.mulf %74, %75 : vector<8x8x128xf32>
    %77 = arith.addf %71, %76 : vector<8x8x128xf32>
    %78 = vector.extract_strided_slice %54 {offsets = [0, 4, 0], sizes = [8, 1, 128], strides = [1, 1, 1]} : vector<8x8x128xf32> to vector<8x1x128xf32>
    %79 = vector.extract_strided_slice %7 {offsets = [4, 0, 0], sizes = [1, 8, 128], strides = [1, 1, 1]} : vector<8x8x128xf32> to vector<1x8x128xf32>
    %80 = vector.broadcast %78 : vector<8x1x128xf32> to vector<8x8x128xf32>
    %81 = vector.broadcast %79 : vector<1x8x128xf32> to vector<8x8x128xf32>
    %82 = arith.mulf %80, %81 : vector<8x8x128xf32>
    %83 = arith.addf %77, %82 : vector<8x8x128xf32>
    %84 = vector.extract_strided_slice %54 {offsets = [0, 5, 0], sizes = [8, 1, 128], strides = [1, 1, 1]} : vector<8x8x128xf32> to vector<8x1x128xf32>
    %85 = vector.extract_strided_slice %7 {offsets = [5, 0, 0], sizes = [1, 8, 128], strides = [1, 1, 1]} : vector<8x8x128xf32> to vector<1x8x128xf32>
    %86 = vector.broadcast %84 : vector<8x1x128xf32> to vector<8x8x128xf32>
    %87 = vector.broadcast %85 : vector<1x8x128xf32> to vector<8x8x128xf32>
    %88 = arith.mulf %86, %87 : vector<8x8x128xf32>
    %89 = arith.addf %83, %88 : vector<8x8x128xf32>
    %90 = vector.extract_strided_slice %54 {offsets = [0, 6, 0], sizes = [8, 1, 128], strides = [1, 1, 1]} : vector<8x8x128xf32> to vector<8x1x128xf32>
    %91 = vector.extract_strided_slice %7 {offsets = [6, 0, 0], sizes = [1, 8, 128], strides = [1, 1, 1]} : vector<8x8x128xf32> to vector<1x8x128xf32>
    %92 = vector.broadcast %90 : vector<8x1x128xf32> to vector<8x8x128xf32>
    %93 = vector.broadcast %91 : vector<1x8x128xf32> to vector<8x8x128xf32>
    %94 = arith.mulf %92, %93 : vector<8x8x128xf32>
    %95 = arith.addf %89, %94 : vector<8x8x128xf32>
    %96 = vector.extract_strided_slice %54 {offsets = [0, 7, 0], sizes = [8, 1, 128], strides = [1, 1, 1]} : vector<8x8x128xf32> to vector<8x1x128xf32>
    %97 = vector.extract_strided_slice %7 {offsets = [7, 0, 0], sizes = [1, 8, 128], strides = [1, 1, 1]} : vector<8x8x128xf32> to vector<1x8x128xf32>
    %98 = vector.broadcast %96 : vector<8x1x128xf32> to vector<8x8x128xf32>
    %99 = vector.broadcast %97 : vector<1x8x128xf32> to vector<8x8x128xf32>
    %100 = arith.mulf %98, %99 : vector<8x8x128xf32>
    %101 = arith.addf %95, %100 : vector<8x8x128xf32>
    %cst_2 = arith.constant 1.000000e+00 : f32
    %102 = vector.broadcast %cst_2 : f32 to vector<8x8x128xf32>
    %103 = arith.mulf %102, %4 : vector<8x8x128xf32>
    %cst_3 = arith.constant 1.000000e+00 : f32
    %104 = vector.broadcast %cst_3 : f32 to vector<8x8x128xf32>
    %105 = arith.mulf %104, %7 : vector<8x8x128xf32>
    %106 = arith.addf %103, %105 : vector<8x8x128xf32>
    %cst_4 = arith.constant 5.000000e-01 : f32
    %107 = vector.broadcast %cst_4 : f32 to vector<8x8x128xf32>
    %108 = arith.mulf %107, %54 : vector<8x8x128xf32>
    %109 = arith.addf %106, %108 : vector<8x8x128xf32>
    %cst_5 = arith.constant 0.166666672 : f32
    %110 = vector.broadcast %cst_5 : f32 to vector<8x8x128xf32>
    %111 = arith.mulf %110, %4 : vector<8x8x128xf32>
    %cst_6 = arith.constant 0.0416666679 : f32
    %112 = vector.broadcast %cst_6 : f32 to vector<8x8x128xf32>
    %113 = arith.mulf %112, %7 : vector<8x8x128xf32>
    %114 = arith.addf %111, %113 : vector<8x8x128xf32>
    %cst_7 = arith.constant 0.00833333377 : f32
    %115 = vector.broadcast %cst_7 : f32 to vector<8x8x128xf32>
    %116 = arith.mulf %115, %54 : vector<8x8x128xf32>
    %117 = arith.addf %114, %116 : vector<8x8x128xf32>
    %cst_8 = arith.constant 0.00138888892 : f32
    %118 = vector.broadcast %cst_8 : f32 to vector<8x8x128xf32>
    %119 = arith.mulf %118, %4 : vector<8x8x128xf32>
    %cst_9 = arith.constant 1.98412701E-4 : f32
    %120 = vector.broadcast %cst_9 : f32 to vector<8x8x128xf32>
    %121 = arith.mulf %120, %7 : vector<8x8x128xf32>
    %122 = arith.addf %119, %121 : vector<8x8x128xf32>
    %cst_10 = arith.constant 2.48015876E-5 : f32
    %123 = vector.broadcast %cst_10 : f32 to vector<8x8x128xf32>
    %124 = arith.mulf %123, %54 : vector<8x8x128xf32>
    %125 = arith.addf %122, %124 : vector<8x8x128xf32>
    %126 = vector.extract_strided_slice %101 {offsets = [0, 0, 0], sizes = [8, 1, 128], strides = [1, 1, 1]} : vector<8x8x128xf32> to vector<8x1x128xf32>
    %127 = vector.extract_strided_slice %125 {offsets = [0, 0, 0], sizes = [1, 8, 128], strides = [1, 1, 1]} : vector<8x8x128xf32> to vector<1x8x128xf32>
    %128 = vector.broadcast %126 : vector<8x1x128xf32> to vector<8x8x128xf32>
    %129 = vector.broadcast %127 : vector<1x8x128xf32> to vector<8x8x128xf32>
    %130 = arith.mulf %128, %129 : vector<8x8x128xf32>
    %131 = vector.extract_strided_slice %101 {offsets = [0, 1, 0], sizes = [8, 1, 128], strides = [1, 1, 1]} : vector<8x8x128xf32> to vector<8x1x128xf32>
    %132 = vector.extract_strided_slice %125 {offsets = [1, 0, 0], sizes = [1, 8, 128], strides = [1, 1, 1]} : vector<8x8x128xf32> to vector<1x8x128xf32>
    %133 = vector.broadcast %131 : vector<8x1x128xf32> to vector<8x8x128xf32>
    %134 = vector.broadcast %132 : vector<1x8x128xf32> to vector<8x8x128xf32>
    %135 = arith.mulf %133, %134 : vector<8x8x128xf32>
    %136 = arith.addf %130, %135 : vector<8x8x128xf32>
    %137 = vector.extract_strided_slice %101 {offsets = [0, 2, 0], sizes = [8, 1, 128], strides = [1, 1, 1]} : vector<8x8x128xf32> to vector<8x1x128xf32>
    %138 = vector.extract_strided_slice %125 {offsets = [2, 0, 0], sizes = [1, 8, 128], strides = [1, 1, 1]} : vector<8x8x128xf32> to vector<1x8x128xf32>
    %139 = vector.broadcast %137 : vector<8x1x128xf32> to vector<8x8x128xf32>
    %140 = vector.broadcast %138 : vector<1x8x128xf32> to vector<8x8x128xf32>
    %141 = arith.mulf %139, %140 : vector<8x8x128xf32>
    %142 = arith.addf %136, %141 : vector<8x8x128xf32>
    %143 = vector.extract_strided_slice %101 {offsets = [0, 3, 0], sizes = [8, 1, 128], strides = [1, 1, 1]} : vector<8x8x128xf32> to vector<8x1x128xf32>
    %144 = vector.extract_strided_slice %125 {offsets = [3, 0, 0], sizes = [1, 8, 128], strides = [1, 1, 1]} : vector<8x8x128xf32> to vector<1x8x128xf32>
    %145 = vector.broadcast %143 : vector<8x1x128xf32> to vector<8x8x128xf32>
    %146 = vector.broadcast %144 : vector<1x8x128xf32> to vector<8x8x128xf32>
    %147 = arith.mulf %145, %146 : vector<8x8x128xf32>
    %148 = arith.addf %142, %147 : vector<8x8x128xf32>
    %149 = vector.extract_strided_slice %101 {offsets = [0, 4, 0], sizes = [8, 1, 128], strides = [1, 1, 1]} : vector<8x8x128xf32> to vector<8x1x128xf32>
    %150 = vector.extract_strided_slice %125 {offsets = [4, 0, 0], sizes = [1, 8, 128], strides = [1, 1, 1]} : vector<8x8x128xf32> to vector<1x8x128xf32>
    %151 = vector.broadcast %149 : vector<8x1x128xf32> to vector<8x8x128xf32>
    %152 = vector.broadcast %150 : vector<1x8x128xf32> to vector<8x8x128xf32>
    %153 = arith.mulf %151, %152 : vector<8x8x128xf32>
    %154 = arith.addf %148, %153 : vector<8x8x128xf32>
    %155 = vector.extract_strided_slice %101 {offsets = [0, 5, 0], sizes = [8, 1, 128], strides = [1, 1, 1]} : vector<8x8x128xf32> to vector<8x1x128xf32>
    %156 = vector.extract_strided_slice %125 {offsets = [5, 0, 0], sizes = [1, 8, 128], strides = [1, 1, 1]} : vector<8x8x128xf32> to vector<1x8x128xf32>
    %157 = vector.broadcast %155 : vector<8x1x128xf32> to vector<8x8x128xf32>
    %158 = vector.broadcast %156 : vector<1x8x128xf32> to vector<8x8x128xf32>
    %159 = arith.mulf %157, %158 : vector<8x8x128xf32>
    %160 = arith.addf %154, %159 : vector<8x8x128xf32>
    %161 = vector.extract_strided_slice %101 {offsets = [0, 6, 0], sizes = [8, 1, 128], strides = [1, 1, 1]} : vector<8x8x128xf32> to vector<8x1x128xf32>
    %162 = vector.extract_strided_slice %125 {offsets = [6, 0, 0], sizes = [1, 8, 128], strides = [1, 1, 1]} : vector<8x8x128xf32> to vector<1x8x128xf32>
    %163 = vector.broadcast %161 : vector<8x1x128xf32> to vector<8x8x128xf32>
    %164 = vector.broadcast %162 : vector<1x8x128xf32> to vector<8x8x128xf32>
    %165 = arith.mulf %163, %164 : vector<8x8x128xf32>
    %166 = arith.addf %160, %165 : vector<8x8x128xf32>
    %167 = vector.extract_strided_slice %101 {offsets = [0, 7, 0], sizes = [8, 1, 128], strides = [1, 1, 1]} : vector<8x8x128xf32> to vector<8x1x128xf32>
    %168 = vector.extract_strided_slice %125 {offsets = [7, 0, 0], sizes = [1, 8, 128], strides = [1, 1, 1]} : vector<8x8x128xf32> to vector<1x8x128xf32>
    %169 = vector.broadcast %167 : vector<8x1x128xf32> to vector<8x8x128xf32>
    %170 = vector.broadcast %168 : vector<1x8x128xf32> to vector<8x8x128xf32>
    %171 = arith.mulf %169, %170 : vector<8x8x128xf32>
    %172 = arith.addf %166, %171 : vector<8x8x128xf32>
    %173 = arith.addf %117, %172 : vector<8x8x128xf32>
    %174 = vector.extract_strided_slice %101 {offsets = [0, 0, 0], sizes = [8, 1, 128], strides = [1, 1, 1]} : vector<8x8x128xf32> to vector<8x1x128xf32>
    %175 = vector.extract_strided_slice %173 {offsets = [0, 0, 0], sizes = [1, 8, 128], strides = [1, 1, 1]} : vector<8x8x128xf32> to vector<1x8x128xf32>
    %176 = vector.broadcast %174 : vector<8x1x128xf32> to vector<8x8x128xf32>
    %177 = vector.broadcast %175 : vector<1x8x128xf32> to vector<8x8x128xf32>
    %178 = arith.mulf %176, %177 : vector<8x8x128xf32>
    %179 = vector.extract_strided_slice %101 {offsets = [0, 1, 0], sizes = [8, 1, 128], strides = [1, 1, 1]} : vector<8x8x128xf32> to vector<8x1x128xf32>
    %180 = vector.extract_strided_slice %173 {offsets = [1, 0, 0], sizes = [1, 8, 128], strides = [1, 1, 1]} : vector<8x8x128xf32> to vector<1x8x128xf32>
    %181 = vector.broadcast %179 : vector<8x1x128xf32> to vector<8x8x128xf32>
    %182 = vector.broadcast %180 : vector<1x8x128xf32> to vector<8x8x128xf32>
    %183 = arith.mulf %181, %182 : vector<8x8x128xf32>
    %184 = arith.addf %178, %183 : vector<8x8x128xf32>
    %185 = vector.extract_strided_slice %101 {offsets = [0, 2, 0], sizes = [8, 1, 128], strides = [1, 1, 1]} : vector<8x8x128xf32> to vector<8x1x128xf32>
    %186 = vector.extract_strided_slice %173 {offsets = [2, 0, 0], sizes = [1, 8, 128], strides = [1, 1, 1]} : vector<8x8x128xf32> to vector<1x8x128xf32>
    %187 = vector.broadcast %185 : vector<8x1x128xf32> to vector<8x8x128xf32>
    %188 = vector.broadcast %186 : vector<1x8x128xf32> to vector<8x8x128xf32>
    %189 = arith.mulf %187, %188 : vector<8x8x128xf32>
    %190 = arith.addf %184, %189 : vector<8x8x128xf32>
    %191 = vector.extract_strided_slice %101 {offsets = [0, 3, 0], sizes = [8, 1, 128], strides = [1, 1, 1]} : vector<8x8x128xf32> to vector<8x1x128xf32>
    %192 = vector.extract_strided_slice %173 {offsets = [3, 0, 0], sizes = [1, 8, 128], strides = [1, 1, 1]} : vector<8x8x128xf32> to vector<1x8x128xf32>
    %193 = vector.broadcast %191 : vector<8x1x128xf32> to vector<8x8x128xf32>
    %194 = vector.broadcast %192 : vector<1x8x128xf32> to vector<8x8x128xf32>
    %195 = arith.mulf %193, %194 : vector<8x8x128xf32>
    %196 = arith.addf %190, %195 : vector<8x8x128xf32>
    %197 = vector.extract_strided_slice %101 {offsets = [0, 4, 0], sizes = [8, 1, 128], strides = [1, 1, 1]} : vector<8x8x128xf32> to vector<8x1x128xf32>
    %198 = vector.extract_strided_slice %173 {offsets = [4, 0, 0], sizes = [1, 8, 128], strides = [1, 1, 1]} : vector<8x8x128xf32> to vector<1x8x128xf32>
    %199 = vector.broadcast %197 : vector<8x1x128xf32> to vector<8x8x128xf32>
    %200 = vector.broadcast %198 : vector<1x8x128xf32> to vector<8x8x128xf32>
    %201 = arith.mulf %199, %200 : vector<8x8x128xf32>
    %202 = arith.addf %196, %201 : vector<8x8x128xf32>
    %203 = vector.extract_strided_slice %101 {offsets = [0, 5, 0], sizes = [8, 1, 128], strides = [1, 1, 1]} : vector<8x8x128xf32> to vector<8x1x128xf32>
    %204 = vector.extract_strided_slice %173 {offsets = [5, 0, 0], sizes = [1, 8, 128], strides = [1, 1, 1]} : vector<8x8x128xf32> to vector<1x8x128xf32>
    %205 = vector.broadcast %203 : vector<8x1x128xf32> to vector<8x8x128xf32>
    %206 = vector.broadcast %204 : vector<1x8x128xf32> to vector<8x8x128xf32>
    %207 = arith.mulf %205, %206 : vector<8x8x128xf32>
    %208 = arith.addf %202, %207 : vector<8x8x128xf32>
    %209 = vector.extract_strided_slice %101 {offsets = [0, 6, 0], sizes = [8, 1, 128], strides = [1, 1, 1]} : vector<8x8x128xf32> to vector<8x1x128xf32>
    %210 = vector.extract_strided_slice %173 {offsets = [6, 0, 0], sizes = [1, 8, 128], strides = [1, 1, 1]} : vector<8x8x128xf32> to vector<1x8x128xf32>
    %211 = vector.broadcast %209 : vector<8x1x128xf32> to vector<8x8x128xf32>
    %212 = vector.broadcast %210 : vector<1x8x128xf32> to vector<8x8x128xf32>
    %213 = arith.mulf %211, %212 : vector<8x8x128xf32>
    %214 = arith.addf %208, %213 : vector<8x8x128xf32>
    %215 = vector.extract_strided_slice %101 {offsets = [0, 7, 0], sizes = [8, 1, 128], strides = [1, 1, 1]} : vector<8x8x128xf32> to vector<8x1x128xf32>
    %216 = vector.extract_strided_slice %173 {offsets = [7, 0, 0], sizes = [1, 8, 128], strides = [1, 1, 1]} : vector<8x8x128xf32> to vector<1x8x128xf32>
    %217 = vector.broadcast %215 : vector<8x1x128xf32> to vector<8x8x128xf32>
    %218 = vector.broadcast %216 : vector<1x8x128xf32> to vector<8x8x128xf32>
    %219 = arith.mulf %217, %218 : vector<8x8x128xf32>
    %220 = arith.addf %214, %219 : vector<8x8x128xf32>
    %221 = arith.addf %109, %220 : vector<8x8x128xf32>
    %222 = vector.extract_strided_slice %221 {offsets = [0, 0, 0], sizes = [8, 1, 128], strides = [1, 1, 1]} : vector<8x8x128xf32> to vector<8x1x128xf32>
    %223 = vector.extract_strided_slice %221 {offsets = [0, 0, 0], sizes = [1, 8, 128], strides = [1, 1, 1]} : vector<8x8x128xf32> to vector<1x8x128xf32>
    %224 = vector.broadcast %222 : vector<8x1x128xf32> to vector<8x8x128xf32>
    %225 = vector.broadcast %223 : vector<1x8x128xf32> to vector<8x8x128xf32>
    %226 = arith.mulf %224, %225 : vector<8x8x128xf32>
    %227 = vector.extract_strided_slice %221 {offsets = [0, 1, 0], sizes = [8, 1, 128], strides = [1, 1, 1]} : vector<8x8x128xf32> to vector<8x1x128xf32>
    %228 = vector.extract_strided_slice %221 {offsets = [1, 0, 0], sizes = [1, 8, 128], strides = [1, 1, 1]} : vector<8x8x128xf32> to vector<1x8x128xf32>
    %229 = vector.broadcast %227 : vector<8x1x128xf32> to vector<8x8x128xf32>
    %230 = vector.broadcast %228 : vector<1x8x128xf32> to vector<8x8x128xf32>
    %231 = arith.mulf %229, %230 : vector<8x8x128xf32>
    %232 = arith.addf %226, %231 : vector<8x8x128xf32>
    %233 = vector.extract_strided_slice %221 {offsets = [0, 2, 0], sizes = [8, 1, 128], strides = [1, 1, 1]} : vector<8x8x128xf32> to vector<8x1x128xf32>
    %234 = vector.extract_strided_slice %221 {offsets = [2, 0, 0], sizes = [1, 8, 128], strides = [1, 1, 1]} : vector<8x8x128xf32> to vector<1x8x128xf32>
    %235 = vector.broadcast %233 : vector<8x1x128xf32> to vector<8x8x128xf32>
    %236 = vector.broadcast %234 : vector<1x8x128xf32> to vector<8x8x128xf32>
    %237 = arith.mulf %235, %236 : vector<8x8x128xf32>
    %238 = arith.addf %232, %237 : vector<8x8x128xf32>
    %239 = vector.extract_strided_slice %221 {offsets = [0, 3, 0], sizes = [8, 1, 128], strides = [1, 1, 1]} : vector<8x8x128xf32> to vector<8x1x128xf32>
    %240 = vector.extract_strided_slice %221 {offsets = [3, 0, 0], sizes = [1, 8, 128], strides = [1, 1, 1]} : vector<8x8x128xf32> to vector<1x8x128xf32>
    %241 = vector.broadcast %239 : vector<8x1x128xf32> to vector<8x8x128xf32>
    %242 = vector.broadcast %240 : vector<1x8x128xf32> to vector<8x8x128xf32>
    %243 = arith.mulf %241, %242 : vector<8x8x128xf32>
    %244 = arith.addf %238, %243 : vector<8x8x128xf32>
    %245 = vector.extract_strided_slice %221 {offsets = [0, 4, 0], sizes = [8, 1, 128], strides = [1, 1, 1]} : vector<8x8x128xf32> to vector<8x1x128xf32>
    %246 = vector.extract_strided_slice %221 {offsets = [4, 0, 0], sizes = [1, 8, 128], strides = [1, 1, 1]} : vector<8x8x128xf32> to vector<1x8x128xf32>
    %247 = vector.broadcast %245 : vector<8x1x128xf32> to vector<8x8x128xf32>
    %248 = vector.broadcast %246 : vector<1x8x128xf32> to vector<8x8x128xf32>
    %249 = arith.mulf %247, %248 : vector<8x8x128xf32>
    %250 = arith.addf %244, %249 : vector<8x8x128xf32>
    %251 = vector.extract_strided_slice %221 {offsets = [0, 5, 0], sizes = [8, 1, 128], strides = [1, 1, 1]} : vector<8x8x128xf32> to vector<8x1x128xf32>
    %252 = vector.extract_strided_slice %221 {offsets = [5, 0, 0], sizes = [1, 8, 128], strides = [1, 1, 1]} : vector<8x8x128xf32> to vector<1x8x128xf32>
    %253 = vector.broadcast %251 : vector<8x1x128xf32> to vector<8x8x128xf32>
    %254 = vector.broadcast %252 : vector<1x8x128xf32> to vector<8x8x128xf32>
    %255 = arith.mulf %253, %254 : vector<8x8x128xf32>
    %256 = arith.addf %250, %255 : vector<8x8x128xf32>
    %257 = vector.extract_strided_slice %221 {offsets = [0, 6, 0], sizes = [8, 1, 128], strides = [1, 1, 1]} : vector<8x8x128xf32> to vector<8x1x128xf32>
    %258 = vector.extract_strided_slice %221 {offsets = [6, 0, 0], sizes = [1, 8, 128], strides = [1, 1, 1]} : vector<8x8x128xf32> to vector<1x8x128xf32>
    %259 = vector.broadcast %257 : vector<8x1x128xf32> to vector<8x8x128xf32>
    %260 = vector.broadcast %258 : vector<1x8x128xf32> to vector<8x8x128xf32>
    %261 = arith.mulf %259, %260 : vector<8x8x128xf32>
    %262 = arith.addf %256, %261 : vector<8x8x128xf32>
    %263 = vector.extract_strided_slice %221 {offsets = [0, 7, 0], sizes = [8, 1, 128], strides = [1, 1, 1]} : vector<8x8x128xf32> to vector<8x1x128xf32>
    %264 = vector.extract_strided_slice %221 {offsets = [7, 0, 0], sizes = [1, 8, 128], strides = [1, 1, 1]} : vector<8x8x128xf32> to vector<1x8x128xf32>
    %265 = vector.broadcast %263 : vector<8x1x128xf32> to vector<8x8x128xf32>
    %266 = vector.broadcast %264 : vector<1x8x128xf32> to vector<8x8x128xf32>
    %267 = arith.mulf %265, %266 : vector<8x8x128xf32>
    %268 = arith.addf %262, %267 : vector<8x8x128xf32>
    %269 = vector.extract_strided_slice %268 {offsets = [0, 0, 0], sizes = [8, 1, 128], strides = [1, 1, 1]} : vector<8x8x128xf32> to vector<8x1x128xf32>
    %270 = vector.extract_strided_slice %268 {offsets = [0, 0, 0], sizes = [1, 8, 128], strides = [1, 1, 1]} : vector<8x8x128xf32> to vector<1x8x128xf32>
    %271 = vector.broadcast %269 : vector<8x1x128xf32> to vector<8x8x128xf32>
    %272 = vector.broadcast %270 : vector<1x8x128xf32> to vector<8x8x128xf32>
    %273 = arith.mulf %271, %272 : vector<8x8x128xf32>
    %274 = vector.extract_strided_slice %268 {offsets = [0, 1, 0], sizes = [8, 1, 128], strides = [1, 1, 1]} : vector<8x8x128xf32> to vector<8x1x128xf32>
    %275 = vector.extract_strided_slice %268 {offsets = [1, 0, 0], sizes = [1, 8, 128], strides = [1, 1, 1]} : vector<8x8x128xf32> to vector<1x8x128xf32>
    %276 = vector.broadcast %274 : vector<8x1x128xf32> to vector<8x8x128xf32>
    %277 = vector.broadcast %275 : vector<1x8x128xf32> to vector<8x8x128xf32>
    %278 = arith.mulf %276, %277 : vector<8x8x128xf32>
    %279 = arith.addf %273, %278 : vector<8x8x128xf32>
    %280 = vector.extract_strided_slice %268 {offsets = [0, 2, 0], sizes = [8, 1, 128], strides = [1, 1, 1]} : vector<8x8x128xf32> to vector<8x1x128xf32>
    %281 = vector.extract_strided_slice %268 {offsets = [2, 0, 0], sizes = [1, 8, 128], strides = [1, 1, 1]} : vector<8x8x128xf32> to vector<1x8x128xf32>
    %282 = vector.broadcast %280 : vector<8x1x128xf32> to vector<8x8x128xf32>
    %283 = vector.broadcast %281 : vector<1x8x128xf32> to vector<8x8x128xf32>
    %284 = arith.mulf %282, %283 : vector<8x8x128xf32>
    %285 = arith.addf %279, %284 : vector<8x8x128xf32>
    %286 = vector.extract_strided_slice %268 {offsets = [0, 3, 0], sizes = [8, 1, 128], strides = [1, 1, 1]} : vector<8x8x128xf32> to vector<8x1x128xf32>
    %287 = vector.extract_strided_slice %268 {offsets = [3, 0, 0], sizes = [1, 8, 128], strides = [1, 1, 1]} : vector<8x8x128xf32> to vector<1x8x128xf32>
    %288 = vector.broadcast %286 : vector<8x1x128xf32> to vector<8x8x128xf32>
    %289 = vector.broadcast %287 : vector<1x8x128xf32> to vector<8x8x128xf32>
    %290 = arith.mulf %288, %289 : vector<8x8x128xf32>
    %291 = arith.addf %285, %290 : vector<8x8x128xf32>
    %292 = vector.extract_strided_slice %268 {offsets = [0, 4, 0], sizes = [8, 1, 128], strides = [1, 1, 1]} : vector<8x8x128xf32> to vector<8x1x128xf32>
    %293 = vector.extract_strided_slice %268 {offsets = [4, 0, 0], sizes = [1, 8, 128], strides = [1, 1, 1]} : vector<8x8x128xf32> to vector<1x8x128xf32>
    %294 = vector.broadcast %292 : vector<8x1x128xf32> to vector<8x8x128xf32>
    %295 = vector.broadcast %293 : vector<1x8x128xf32> to vector<8x8x128xf32>
    %296 = arith.mulf %294, %295 : vector<8x8x128xf32>
    %297 = arith.addf %291, %296 : vector<8x8x128xf32>
    %298 = vector.extract_strided_slice %268 {offsets = [0, 5, 0], sizes = [8, 1, 128], strides = [1, 1, 1]} : vector<8x8x128xf32> to vector<8x1x128xf32>
    %299 = vector.extract_strided_slice %268 {offsets = [5, 0, 0], sizes = [1, 8, 128], strides = [1, 1, 1]} : vector<8x8x128xf32> to vector<1x8x128xf32>
    %300 = vector.broadcast %298 : vector<8x1x128xf32> to vector<8x8x128xf32>
    %301 = vector.broadcast %299 : vector<1x8x128xf32> to vector<8x8x128xf32>
    %302 = arith.mulf %300, %301 : vector<8x8x128xf32>
    %303 = arith.addf %297, %302 : vector<8x8x128xf32>
    %304 = vector.extract_strided_slice %268 {offsets = [0, 6, 0], sizes = [8, 1, 128], strides = [1, 1, 1]} : vector<8x8x128xf32> to vector<8x1x128xf32>
    %305 = vector.extract_strided_slice %268 {offsets = [6, 0, 0], sizes = [1, 8, 128], strides = [1, 1, 1]} : vector<8x8x128xf32> to vector<1x8x128xf32>
    %306 = vector.broadcast %304 : vector<8x1x128xf32> to vector<8x8x128xf32>
    %307 = vector.broadcast %305 : vector<1x8x128xf32> to vector<8x8x128xf32>
    %308 = arith.mulf %306, %307 : vector<8x8x128xf32>
    %309 = arith.addf %303, %308 : vector<8x8x128xf32>
    %310 = vector.extract_strided_slice %268 {offsets = [0, 7, 0], sizes = [8, 1, 128], strides = [1, 1, 1]} : vector<8x8x128xf32> to vector<8x1x128xf32>
    %311 = vector.extract_strided_slice %268 {offsets = [7, 0, 0], sizes = [1, 8, 128], strides = [1, 1, 1]} : vector<8x8x128xf32> to vector<1x8x128xf32>
    %312 = vector.broadcast %310 : vector<8x1x128xf32> to vector<8x8x128xf32>
    %313 = vector.broadcast %311 : vector<1x8x128xf32> to vector<8x8x128xf32>
    %314 = arith.mulf %312, %313 : vector<8x8x128xf32>
    %315 = arith.addf %309, %314 : vector<8x8x128xf32>
    %316 = vector.extract_strided_slice %315 {offsets = [0, 0, 0], sizes = [8, 1, 128], strides = [1, 1, 1]} : vector<8x8x128xf32> to vector<8x1x128xf32>
    %317 = vector.extract_strided_slice %315 {offsets = [0, 0, 0], sizes = [1, 8, 128], strides = [1, 1, 1]} : vector<8x8x128xf32> to vector<1x8x128xf32>
    %318 = vector.broadcast %316 : vector<8x1x128xf32> to vector<8x8x128xf32>
    %319 = vector.broadcast %317 : vector<1x8x128xf32> to vector<8x8x128xf32>
    %320 = arith.mulf %318, %319 : vector<8x8x128xf32>
    %321 = vector.extract_strided_slice %315 {offsets = [0, 1, 0], sizes = [8, 1, 128], strides = [1, 1, 1]} : vector<8x8x128xf32> to vector<8x1x128xf32>
    %322 = vector.extract_strided_slice %315 {offsets = [1, 0, 0], sizes = [1, 8, 128], strides = [1, 1, 1]} : vector<8x8x128xf32> to vector<1x8x128xf32>
    %323 = vector.broadcast %321 : vector<8x1x128xf32> to vector<8x8x128xf32>
    %324 = vector.broadcast %322 : vector<1x8x128xf32> to vector<8x8x128xf32>
    %325 = arith.mulf %323, %324 : vector<8x8x128xf32>
    %326 = arith.addf %320, %325 : vector<8x8x128xf32>
    %327 = vector.extract_strided_slice %315 {offsets = [0, 2, 0], sizes = [8, 1, 128], strides = [1, 1, 1]} : vector<8x8x128xf32> to vector<8x1x128xf32>
    %328 = vector.extract_strided_slice %315 {offsets = [2, 0, 0], sizes = [1, 8, 128], strides = [1, 1, 1]} : vector<8x8x128xf32> to vector<1x8x128xf32>
    %329 = vector.broadcast %327 : vector<8x1x128xf32> to vector<8x8x128xf32>
    %330 = vector.broadcast %328 : vector<1x8x128xf32> to vector<8x8x128xf32>
    %331 = arith.mulf %329, %330 : vector<8x8x128xf32>
    %332 = arith.addf %326, %331 : vector<8x8x128xf32>
    %333 = vector.extract_strided_slice %315 {offsets = [0, 3, 0], sizes = [8, 1, 128], strides = [1, 1, 1]} : vector<8x8x128xf32> to vector<8x1x128xf32>
    %334 = vector.extract_strided_slice %315 {offsets = [3, 0, 0], sizes = [1, 8, 128], strides = [1, 1, 1]} : vector<8x8x128xf32> to vector<1x8x128xf32>
    %335 = vector.broadcast %333 : vector<8x1x128xf32> to vector<8x8x128xf32>
    %336 = vector.broadcast %334 : vector<1x8x128xf32> to vector<8x8x128xf32>
    %337 = arith.mulf %335, %336 : vector<8x8x128xf32>
    %338 = arith.addf %332, %337 : vector<8x8x128xf32>
    %339 = vector.extract_strided_slice %315 {offsets = [0, 4, 0], sizes = [8, 1, 128], strides = [1, 1, 1]} : vector<8x8x128xf32> to vector<8x1x128xf32>
    %340 = vector.extract_strided_slice %315 {offsets = [4, 0, 0], sizes = [1, 8, 128], strides = [1, 1, 1]} : vector<8x8x128xf32> to vector<1x8x128xf32>
    %341 = vector.broadcast %339 : vector<8x1x128xf32> to vector<8x8x128xf32>
    %342 = vector.broadcast %340 : vector<1x8x128xf32> to vector<8x8x128xf32>
    %343 = arith.mulf %341, %342 : vector<8x8x128xf32>
    %344 = arith.addf %338, %343 : vector<8x8x128xf32>
    %345 = vector.extract_strided_slice %315 {offsets = [0, 5, 0], sizes = [8, 1, 128], strides = [1, 1, 1]} : vector<8x8x128xf32> to vector<8x1x128xf32>
    %346 = vector.extract_strided_slice %315 {offsets = [5, 0, 0], sizes = [1, 8, 128], strides = [1, 1, 1]} : vector<8x8x128xf32> to vector<1x8x128xf32>
    %347 = vector.broadcast %345 : vector<8x1x128xf32> to vector<8x8x128xf32>
    %348 = vector.broadcast %346 : vector<1x8x128xf32> to vector<8x8x128xf32>
    %349 = arith.mulf %347, %348 : vector<8x8x128xf32>
    %350 = arith.addf %344, %349 : vector<8x8x128xf32>
    %351 = vector.extract_strided_slice %315 {offsets = [0, 6, 0], sizes = [8, 1, 128], strides = [1, 1, 1]} : vector<8x8x128xf32> to vector<8x1x128xf32>
    %352 = vector.extract_strided_slice %315 {offsets = [6, 0, 0], sizes = [1, 8, 128], strides = [1, 1, 1]} : vector<8x8x128xf32> to vector<1x8x128xf32>
    %353 = vector.broadcast %351 : vector<8x1x128xf32> to vector<8x8x128xf32>
    %354 = vector.broadcast %352 : vector<1x8x128xf32> to vector<8x8x128xf32>
    %355 = arith.mulf %353, %354 : vector<8x8x128xf32>
    %356 = arith.addf %350, %355 : vector<8x8x128xf32>
    %357 = vector.extract_strided_slice %315 {offsets = [0, 7, 0], sizes = [8, 1, 128], strides = [1, 1, 1]} : vector<8x8x128xf32> to vector<8x1x128xf32>
    %358 = vector.extract_strided_slice %315 {offsets = [7, 0, 0], sizes = [1, 8, 128], strides = [1, 1, 1]} : vector<8x8x128xf32> to vector<1x8x128xf32>
    %359 = vector.broadcast %357 : vector<8x1x128xf32> to vector<8x8x128xf32>
    %360 = vector.broadcast %358 : vector<1x8x128xf32> to vector<8x8x128xf32>
    %361 = arith.mulf %359, %360 : vector<8x8x128xf32>
    %362 = arith.addf %356, %361 : vector<8x8x128xf32>
    %363 = vector.extract_strided_slice %362 {offsets = [0, 0, 0], sizes = [8, 1, 128], strides = [1, 1, 1]} : vector<8x8x128xf32> to vector<8x1x128xf32>
    %364 = vector.extract_strided_slice %362 {offsets = [0, 0, 0], sizes = [1, 8, 128], strides = [1, 1, 1]} : vector<8x8x128xf32> to vector<1x8x128xf32>
    %365 = vector.broadcast %363 : vector<8x1x128xf32> to vector<8x8x128xf32>
    %366 = vector.broadcast %364 : vector<1x8x128xf32> to vector<8x8x128xf32>
    %367 = arith.mulf %365, %366 : vector<8x8x128xf32>
    %368 = vector.extract_strided_slice %362 {offsets = [0, 1, 0], sizes = [8, 1, 128], strides = [1, 1, 1]} : vector<8x8x128xf32> to vector<8x1x128xf32>
    %369 = vector.extract_strided_slice %362 {offsets = [1, 0, 0], sizes = [1, 8, 128], strides = [1, 1, 1]} : vector<8x8x128xf32> to vector<1x8x128xf32>
    %370 = vector.broadcast %368 : vector<8x1x128xf32> to vector<8x8x128xf32>
    %371 = vector.broadcast %369 : vector<1x8x128xf32> to vector<8x8x128xf32>
    %372 = arith.mulf %370, %371 : vector<8x8x128xf32>
    %373 = arith.addf %367, %372 : vector<8x8x128xf32>
    %374 = vector.extract_strided_slice %362 {offsets = [0, 2, 0], sizes = [8, 1, 128], strides = [1, 1, 1]} : vector<8x8x128xf32> to vector<8x1x128xf32>
    %375 = vector.extract_strided_slice %362 {offsets = [2, 0, 0], sizes = [1, 8, 128], strides = [1, 1, 1]} : vector<8x8x128xf32> to vector<1x8x128xf32>
    %376 = vector.broadcast %374 : vector<8x1x128xf32> to vector<8x8x128xf32>
    %377 = vector.broadcast %375 : vector<1x8x128xf32> to vector<8x8x128xf32>
    %378 = arith.mulf %376, %377 : vector<8x8x128xf32>
    %379 = arith.addf %373, %378 : vector<8x8x128xf32>
    %380 = vector.extract_strided_slice %362 {offsets = [0, 3, 0], sizes = [8, 1, 128], strides = [1, 1, 1]} : vector<8x8x128xf32> to vector<8x1x128xf32>
    %381 = vector.extract_strided_slice %362 {offsets = [3, 0, 0], sizes = [1, 8, 128], strides = [1, 1, 1]} : vector<8x8x128xf32> to vector<1x8x128xf32>
    %382 = vector.broadcast %380 : vector<8x1x128xf32> to vector<8x8x128xf32>
    %383 = vector.broadcast %381 : vector<1x8x128xf32> to vector<8x8x128xf32>
    %384 = arith.mulf %382, %383 : vector<8x8x128xf32>
    %385 = arith.addf %379, %384 : vector<8x8x128xf32>
    %386 = vector.extract_strided_slice %362 {offsets = [0, 4, 0], sizes = [8, 1, 128], strides = [1, 1, 1]} : vector<8x8x128xf32> to vector<8x1x128xf32>
    %387 = vector.extract_strided_slice %362 {offsets = [4, 0, 0], sizes = [1, 8, 128], strides = [1, 1, 1]} : vector<8x8x128xf32> to vector<1x8x128xf32>
    %388 = vector.broadcast %386 : vector<8x1x128xf32> to vector<8x8x128xf32>
    %389 = vector.broadcast %387 : vector<1x8x128xf32> to vector<8x8x128xf32>
    %390 = arith.mulf %388, %389 : vector<8x8x128xf32>
    %391 = arith.addf %385, %390 : vector<8x8x128xf32>
    %392 = vector.extract_strided_slice %362 {offsets = [0, 5, 0], sizes = [8, 1, 128], strides = [1, 1, 1]} : vector<8x8x128xf32> to vector<8x1x128xf32>
    %393 = vector.extract_strided_slice %362 {offsets = [5, 0, 0], sizes = [1, 8, 128], strides = [1, 1, 1]} : vector<8x8x128xf32> to vector<1x8x128xf32>
    %394 = vector.broadcast %392 : vector<8x1x128xf32> to vector<8x8x128xf32>
    %395 = vector.broadcast %393 : vector<1x8x128xf32> to vector<8x8x128xf32>
    %396 = arith.mulf %394, %395 : vector<8x8x128xf32>
    %397 = arith.addf %391, %396 : vector<8x8x128xf32>
    %398 = vector.extract_strided_slice %362 {offsets = [0, 6, 0], sizes = [8, 1, 128], strides = [1, 1, 1]} : vector<8x8x128xf32> to vector<8x1x128xf32>
    %399 = vector.extract_strided_slice %362 {offsets = [6, 0, 0], sizes = [1, 8, 128], strides = [1, 1, 1]} : vector<8x8x128xf32> to vector<1x8x128xf32>
    %400 = vector.broadcast %398 : vector<8x1x128xf32> to vector<8x8x128xf32>
    %401 = vector.broadcast %399 : vector<1x8x128xf32> to vector<8x8x128xf32>
    %402 = arith.mulf %400, %401 : vector<8x8x128xf32>
    %403 = arith.addf %397, %402 : vector<8x8x128xf32>
    %404 = vector.extract_strided_slice %362 {offsets = [0, 7, 0], sizes = [8, 1, 128], strides = [1, 1, 1]} : vector<8x8x128xf32> to vector<8x1x128xf32>
    %405 = vector.extract_strided_slice %362 {offsets = [7, 0, 0], sizes = [1, 8, 128], strides = [1, 1, 1]} : vector<8x8x128xf32> to vector<1x8x128xf32>
    %406 = vector.broadcast %404 : vector<8x1x128xf32> to vector<8x8x128xf32>
    %407 = vector.broadcast %405 : vector<1x8x128xf32> to vector<8x8x128xf32>
    %408 = arith.mulf %406, %407 : vector<8x8x128xf32>
    %409 = arith.addf %403, %408 : vector<8x8x128xf32>
    %410 = vector.extract_strided_slice %409 {offsets = [0, 0, 0], sizes = [8, 1, 128], strides = [1, 1, 1]} : vector<8x8x128xf32> to vector<8x1x128xf32>
    %411 = vector.extract_strided_slice %409 {offsets = [0, 0, 0], sizes = [1, 8, 128], strides = [1, 1, 1]} : vector<8x8x128xf32> to vector<1x8x128xf32>
    %412 = vector.broadcast %410 : vector<8x1x128xf32> to vector<8x8x128xf32>
    %413 = vector.broadcast %411 : vector<1x8x128xf32> to vector<8x8x128xf32>
    %414 = arith.mulf %412, %413 : vector<8x8x128xf32>
    %415 = vector.extract_strided_slice %409 {offsets = [0, 1, 0], sizes = [8, 1, 128], strides = [1, 1, 1]} : vector<8x8x128xf32> to vector<8x1x128xf32>
    %416 = vector.extract_strided_slice %409 {offsets = [1, 0, 0], sizes = [1, 8, 128], strides = [1, 1, 1]} : vector<8x8x128xf32> to vector<1x8x128xf32>
    %417 = vector.broadcast %415 : vector<8x1x128xf32> to vector<8x8x128xf32>
    %418 = vector.broadcast %416 : vector<1x8x128xf32> to vector<8x8x128xf32>
    %419 = arith.mulf %417, %418 : vector<8x8x128xf32>
    %420 = arith.addf %414, %419 : vector<8x8x128xf32>
    %421 = vector.extract_strided_slice %409 {offsets = [0, 2, 0], sizes = [8, 1, 128], strides = [1, 1, 1]} : vector<8x8x128xf32> to vector<8x1x128xf32>
    %422 = vector.extract_strided_slice %409 {offsets = [2, 0, 0], sizes = [1, 8, 128], strides = [1, 1, 1]} : vector<8x8x128xf32> to vector<1x8x128xf32>
    %423 = vector.broadcast %421 : vector<8x1x128xf32> to vector<8x8x128xf32>
    %424 = vector.broadcast %422 : vector<1x8x128xf32> to vector<8x8x128xf32>
    %425 = arith.mulf %423, %424 : vector<8x8x128xf32>
    %426 = arith.addf %420, %425 : vector<8x8x128xf32>
    %427 = vector.extract_strided_slice %409 {offsets = [0, 3, 0], sizes = [8, 1, 128], strides = [1, 1, 1]} : vector<8x8x128xf32> to vector<8x1x128xf32>
    %428 = vector.extract_strided_slice %409 {offsets = [3, 0, 0], sizes = [1, 8, 128], strides = [1, 1, 1]} : vector<8x8x128xf32> to vector<1x8x128xf32>
    %429 = vector.broadcast %427 : vector<8x1x128xf32> to vector<8x8x128xf32>
    %430 = vector.broadcast %428 : vector<1x8x128xf32> to vector<8x8x128xf32>
    %431 = arith.mulf %429, %430 : vector<8x8x128xf32>
    %432 = arith.addf %426, %431 : vector<8x8x128xf32>
    %433 = vector.extract_strided_slice %409 {offsets = [0, 4, 0], sizes = [8, 1, 128], strides = [1, 1, 1]} : vector<8x8x128xf32> to vector<8x1x128xf32>
    %434 = vector.extract_strided_slice %409 {offsets = [4, 0, 0], sizes = [1, 8, 128], strides = [1, 1, 1]} : vector<8x8x128xf32> to vector<1x8x128xf32>
    %435 = vector.broadcast %433 : vector<8x1x128xf32> to vector<8x8x128xf32>
    %436 = vector.broadcast %434 : vector<1x8x128xf32> to vector<8x8x128xf32>
    %437 = arith.mulf %435, %436 : vector<8x8x128xf32>
    %438 = arith.addf %432, %437 : vector<8x8x128xf32>
    %439 = vector.extract_strided_slice %409 {offsets = [0, 5, 0], sizes = [8, 1, 128], strides = [1, 1, 1]} : vector<8x8x128xf32> to vector<8x1x128xf32>
    %440 = vector.extract_strided_slice %409 {offsets = [5, 0, 0], sizes = [1, 8, 128], strides = [1, 1, 1]} : vector<8x8x128xf32> to vector<1x8x128xf32>
    %441 = vector.broadcast %439 : vector<8x1x128xf32> to vector<8x8x128xf32>
    %442 = vector.broadcast %440 : vector<1x8x128xf32> to vector<8x8x128xf32>
    %443 = arith.mulf %441, %442 : vector<8x8x128xf32>
    %444 = arith.addf %438, %443 : vector<8x8x128xf32>
    %445 = vector.extract_strided_slice %409 {offsets = [0, 6, 0], sizes = [8, 1, 128], strides = [1, 1, 1]} : vector<8x8x128xf32> to vector<8x1x128xf32>
    %446 = vector.extract_strided_slice %409 {offsets = [6, 0, 0], sizes = [1, 8, 128], strides = [1, 1, 1]} : vector<8x8x128xf32> to vector<1x8x128xf32>
    %447 = vector.broadcast %445 : vector<8x1x128xf32> to vector<8x8x128xf32>
    %448 = vector.broadcast %446 : vector<1x8x128xf32> to vector<8x8x128xf32>
    %449 = arith.mulf %447, %448 : vector<8x8x128xf32>
    %450 = arith.addf %444, %449 : vector<8x8x128xf32>
    %451 = vector.extract_strided_slice %409 {offsets = [0, 7, 0], sizes = [8, 1, 128], strides = [1, 1, 1]} : vector<8x8x128xf32> to vector<8x1x128xf32>
    %452 = vector.extract_strided_slice %409 {offsets = [7, 0, 0], sizes = [1, 8, 128], strides = [1, 1, 1]} : vector<8x8x128xf32> to vector<1x8x128xf32>
    %453 = vector.broadcast %451 : vector<8x1x128xf32> to vector<8x8x128xf32>
    %454 = vector.broadcast %452 : vector<1x8x128xf32> to vector<8x8x128xf32>
    %455 = arith.mulf %453, %454 : vector<8x8x128xf32>
    %456 = arith.addf %450, %455 : vector<8x8x128xf32>
    %457 = vector.extract_strided_slice %456 {offsets = [0, 0, 0], sizes = [8, 1, 128], strides = [1, 1, 1]} : vector<8x8x128xf32> to vector<8x1x128xf32>
    %458 = vector.extract_strided_slice %456 {offsets = [0, 0, 0], sizes = [1, 8, 128], strides = [1, 1, 1]} : vector<8x8x128xf32> to vector<1x8x128xf32>
    %459 = vector.broadcast %457 : vector<8x1x128xf32> to vector<8x8x128xf32>
    %460 = vector.broadcast %458 : vector<1x8x128xf32> to vector<8x8x128xf32>
    %461 = arith.mulf %459, %460 : vector<8x8x128xf32>
    %462 = vector.extract_strided_slice %456 {offsets = [0, 1, 0], sizes = [8, 1, 128], strides = [1, 1, 1]} : vector<8x8x128xf32> to vector<8x1x128xf32>
    %463 = vector.extract_strided_slice %456 {offsets = [1, 0, 0], sizes = [1, 8, 128], strides = [1, 1, 1]} : vector<8x8x128xf32> to vector<1x8x128xf32>
    %464 = vector.broadcast %462 : vector<8x1x128xf32> to vector<8x8x128xf32>
    %465 = vector.broadcast %463 : vector<1x8x128xf32> to vector<8x8x128xf32>
    %466 = arith.mulf %464, %465 : vector<8x8x128xf32>
    %467 = arith.addf %461, %466 : vector<8x8x128xf32>
    %468 = vector.extract_strided_slice %456 {offsets = [0, 2, 0], sizes = [8, 1, 128], strides = [1, 1, 1]} : vector<8x8x128xf32> to vector<8x1x128xf32>
    %469 = vector.extract_strided_slice %456 {offsets = [2, 0, 0], sizes = [1, 8, 128], strides = [1, 1, 1]} : vector<8x8x128xf32> to vector<1x8x128xf32>
    %470 = vector.broadcast %468 : vector<8x1x128xf32> to vector<8x8x128xf32>
    %471 = vector.broadcast %469 : vector<1x8x128xf32> to vector<8x8x128xf32>
    %472 = arith.mulf %470, %471 : vector<8x8x128xf32>
    %473 = arith.addf %467, %472 : vector<8x8x128xf32>
    %474 = vector.extract_strided_slice %456 {offsets = [0, 3, 0], sizes = [8, 1, 128], strides = [1, 1, 1]} : vector<8x8x128xf32> to vector<8x1x128xf32>
    %475 = vector.extract_strided_slice %456 {offsets = [3, 0, 0], sizes = [1, 8, 128], strides = [1, 1, 1]} : vector<8x8x128xf32> to vector<1x8x128xf32>
    %476 = vector.broadcast %474 : vector<8x1x128xf32> to vector<8x8x128xf32>
    %477 = vector.broadcast %475 : vector<1x8x128xf32> to vector<8x8x128xf32>
    %478 = arith.mulf %476, %477 : vector<8x8x128xf32>
    %479 = arith.addf %473, %478 : vector<8x8x128xf32>
    %480 = vector.extract_strided_slice %456 {offsets = [0, 4, 0], sizes = [8, 1, 128], strides = [1, 1, 1]} : vector<8x8x128xf32> to vector<8x1x128xf32>
    %481 = vector.extract_strided_slice %456 {offsets = [4, 0, 0], sizes = [1, 8, 128], strides = [1, 1, 1]} : vector<8x8x128xf32> to vector<1x8x128xf32>
    %482 = vector.broadcast %480 : vector<8x1x128xf32> to vector<8x8x128xf32>
    %483 = vector.broadcast %481 : vector<1x8x128xf32> to vector<8x8x128xf32>
    %484 = arith.mulf %482, %483 : vector<8x8x128xf32>
    %485 = arith.addf %479, %484 : vector<8x8x128xf32>
    %486 = vector.extract_strided_slice %456 {offsets = [0, 5, 0], sizes = [8, 1, 128], strides = [1, 1, 1]} : vector<8x8x128xf32> to vector<8x1x128xf32>
    %487 = vector.extract_strided_slice %456 {offsets = [5, 0, 0], sizes = [1, 8, 128], strides = [1, 1, 1]} : vector<8x8x128xf32> to vector<1x8x128xf32>
    %488 = vector.broadcast %486 : vector<8x1x128xf32> to vector<8x8x128xf32>
    %489 = vector.broadcast %487 : vector<1x8x128xf32> to vector<8x8x128xf32>
    %490 = arith.mulf %488, %489 : vector<8x8x128xf32>
    %491 = arith.addf %485, %490 : vector<8x8x128xf32>
    %492 = vector.extract_strided_slice %456 {offsets = [0, 6, 0], sizes = [8, 1, 128], strides = [1, 1, 1]} : vector<8x8x128xf32> to vector<8x1x128xf32>
    %493 = vector.extract_strided_slice %456 {offsets = [6, 0, 0], sizes = [1, 8, 128], strides = [1, 1, 1]} : vector<8x8x128xf32> to vector<1x8x128xf32>
    %494 = vector.broadcast %492 : vector<8x1x128xf32> to vector<8x8x128xf32>
    %495 = vector.broadcast %493 : vector<1x8x128xf32> to vector<8x8x128xf32>
    %496 = arith.mulf %494, %495 : vector<8x8x128xf32>
    %497 = arith.addf %491, %496 : vector<8x8x128xf32>
    %498 = vector.extract_strided_slice %456 {offsets = [0, 7, 0], sizes = [8, 1, 128], strides = [1, 1, 1]} : vector<8x8x128xf32> to vector<8x1x128xf32>
    %499 = vector.extract_strided_slice %456 {offsets = [7, 0, 0], sizes = [1, 8, 128], strides = [1, 1, 1]} : vector<8x8x128xf32> to vector<1x8x128xf32>
    %500 = vector.broadcast %498 : vector<8x1x128xf32> to vector<8x8x128xf32>
    %501 = vector.broadcast %499 : vector<1x8x128xf32> to vector<8x8x128xf32>
    %502 = arith.mulf %500, %501 : vector<8x8x128xf32>
    %503 = arith.addf %497, %502 : vector<8x8x128xf32>
    %c0_11 = arith.constant 0 : index
    %c0_12 = arith.constant 0 : index
    %504 = vector.load %arg2[%c0_11, %c0_12] : memref<8x128xf32, #tpu.memory_space<vmem>>, vector<8x128xf32>
    %505 = vector.extract_strided_slice %503 {offsets = [0, 0, 0], sizes = [1, 8, 128], strides = [1, 1, 1]} : vector<8x8x128xf32> to vector<1x8x128xf32>
    %506 = vector.shape_cast %505 : vector<1x8x128xf32> to vector<8x128xf32>
    %507 = vector.extract_strided_slice %504 {offsets = [0, 0], sizes = [1, 128], strides = [1, 1]} : vector<8x128xf32> to vector<1x128xf32>
    %508 = vector.broadcast %507 : vector<1x128xf32> to vector<8x128xf32>
    %509 = arith.mulf %506, %508 : vector<8x128xf32>
    %510 = vector.extract_strided_slice %503 {offsets = [1, 0, 0], sizes = [1, 8, 128], strides = [1, 1, 1]} : vector<8x8x128xf32> to vector<1x8x128xf32>
    %511 = vector.shape_cast %510 : vector<1x8x128xf32> to vector<8x128xf32>
    %512 = vector.extract_strided_slice %504 {offsets = [1, 0], sizes = [1, 128], strides = [1, 1]} : vector<8x128xf32> to vector<1x128xf32>
    %513 = vector.broadcast %512 : vector<1x128xf32> to vector<8x128xf32>
    %514 = arith.mulf %511, %513 : vector<8x128xf32>
    %515 = arith.addf %509, %514 : vector<8x128xf32>
    %516 = vector.extract_strided_slice %503 {offsets = [2, 0, 0], sizes = [1, 8, 128], strides = [1, 1, 1]} : vector<8x8x128xf32> to vector<1x8x128xf32>
    %517 = vector.shape_cast %516 : vector<1x8x128xf32> to vector<8x128xf32>
    %518 = vector.extract_strided_slice %504 {offsets = [2, 0], sizes = [1, 128], strides = [1, 1]} : vector<8x128xf32> to vector<1x128xf32>
    %519 = vector.broadcast %518 : vector<1x128xf32> to vector<8x128xf32>
    %520 = arith.mulf %517, %519 : vector<8x128xf32>
    %521 = arith.addf %515, %520 : vector<8x128xf32>
    %522 = vector.extract_strided_slice %503 {offsets = [3, 0, 0], sizes = [1, 8, 128], strides = [1, 1, 1]} : vector<8x8x128xf32> to vector<1x8x128xf32>
    %523 = vector.shape_cast %522 : vector<1x8x128xf32> to vector<8x128xf32>
    %524 = vector.extract_strided_slice %504 {offsets = [3, 0], sizes = [1, 128], strides = [1, 1]} : vector<8x128xf32> to vector<1x128xf32>
    %525 = vector.broadcast %524 : vector<1x128xf32> to vector<8x128xf32>
    %526 = arith.mulf %523, %525 : vector<8x128xf32>
    %527 = arith.addf %521, %526 : vector<8x128xf32>
    %528 = vector.extract_strided_slice %503 {offsets = [4, 0, 0], sizes = [1, 8, 128], strides = [1, 1, 1]} : vector<8x8x128xf32> to vector<1x8x128xf32>
    %529 = vector.shape_cast %528 : vector<1x8x128xf32> to vector<8x128xf32>
    %530 = vector.extract_strided_slice %504 {offsets = [4, 0], sizes = [1, 128], strides = [1, 1]} : vector<8x128xf32> to vector<1x128xf32>
    %531 = vector.broadcast %530 : vector<1x128xf32> to vector<8x128xf32>
    %532 = arith.mulf %529, %531 : vector<8x128xf32>
    %533 = arith.addf %527, %532 : vector<8x128xf32>
    %534 = vector.extract_strided_slice %503 {offsets = [5, 0, 0], sizes = [1, 8, 128], strides = [1, 1, 1]} : vector<8x8x128xf32> to vector<1x8x128xf32>
    %535 = vector.shape_cast %534 : vector<1x8x128xf32> to vector<8x128xf32>
    %536 = vector.extract_strided_slice %504 {offsets = [5, 0], sizes = [1, 128], strides = [1, 1]} : vector<8x128xf32> to vector<1x128xf32>
    %537 = vector.broadcast %536 : vector<1x128xf32> to vector<8x128xf32>
    %538 = arith.mulf %535, %537 : vector<8x128xf32>
    %539 = arith.addf %533, %538 : vector<8x128xf32>
    %540 = vector.extract_strided_slice %503 {offsets = [6, 0, 0], sizes = [1, 8, 128], strides = [1, 1, 1]} : vector<8x8x128xf32> to vector<1x8x128xf32>
    %541 = vector.shape_cast %540 : vector<1x8x128xf32> to vector<8x128xf32>
    %542 = vector.extract_strided_slice %504 {offsets = [6, 0], sizes = [1, 128], strides = [1, 1]} : vector<8x128xf32> to vector<1x128xf32>
    %543 = vector.broadcast %542 : vector<1x128xf32> to vector<8x128xf32>
    %544 = arith.mulf %541, %543 : vector<8x128xf32>
    %545 = arith.addf %539, %544 : vector<8x128xf32>
    %546 = vector.extract_strided_slice %503 {offsets = [7, 0, 0], sizes = [1, 8, 128], strides = [1, 1, 1]} : vector<8x8x128xf32> to vector<1x8x128xf32>
    %547 = vector.shape_cast %546 : vector<1x8x128xf32> to vector<8x128xf32>
    %548 = vector.extract_strided_slice %504 {offsets = [7, 0], sizes = [1, 128], strides = [1, 1]} : vector<8x128xf32> to vector<1x128xf32>
    %549 = vector.broadcast %548 : vector<1x128xf32> to vector<8x128xf32>
    %550 = arith.mulf %547, %549 : vector<8x128xf32>
    %551 = arith.addf %545, %550 : vector<8x128xf32>
    %c0_13 = arith.constant 0 : index
    %c0_14 = arith.constant 0 : index
    %552 = vector.load %arg3[%c0_13, %c0_14] : memref<8x128xf32, #tpu.memory_space<vmem>>, vector<8x128xf32>
    tpu.vector_store %arg3[%c0_13, %c0_14], %551 {strides = array<i32>} : memref<8x128xf32, #tpu.memory_space<vmem>>, vector<8x128xf32>,
    return
  }
  func.func @transform_0(%arg0: i32) -> (i32, i32, i32) {
    %c0_i32 = arith.constant 0 : i32
    %c0_i32_0 = arith.constant 0 : i32
    %c0_i32_1 = arith.constant 0 : i32
    return %c0_i32, %c0_i32_0, %arg0 : i32, i32, i32
  }
  func.func @transform_1(%arg0: i32) -> (i32, i32) {
    %c0_i32 = arith.constant 0 : i32
    %c0_i32_0 = arith.constant 0 : i32
    return %c0_i32, %arg0 : i32, i32
  }
  func.func @transform_2(%arg0: i32) -> (i32, i32) {
    %c0_i32 = arith.constant 0 : i32
    %c0_i32_0 = arith.constant 0 : i32
    return %c0_i32, %arg0 : i32, i32
  }
}

</mosaic_0001>

<llo_original>
// kernel: transopt_forward.1
$region0: #{transopt_forward.1}
  #allocation0 [shape = 'u32[]', space=smem, size = 0x4, offset = 0x4, fixed_abs, tag = 'smem constant byte address 0x4 - core index']
  #allocation1 [shape = 'u32[144,128]{1,0:T(1,128)}', space=vmem, size = 0x12000, scoped, tag = 'internal scratch']
  %s0 = inlined_call_operand.vmem [shape: f32[8,8,128], index: 0, kind: input, shape index: {}]
  %s1 = inlined_call_operand.vmem [shape: f32[8,128], index: 1, kind: input, shape index: {}]
  %s2 = inlined_call_operand.vmem [shape: f32[8,128], index: 2, kind: output, shape index: {}]
  %s3 = sld [smem:[#allocation0]]
  $region18: #{transopt_forward.1} parent=0
    _
  %s5 = ssub.s32 1, %s3
  %s6 = scalar_select 0, %s5, %s3
  // Predicated region
  $region2: #{transopt_forward.1} parent=0 // pred_check
    _
  $region3: #{transopt_forward.1} parent=0 // pred_check_branch
    %8 = sbr.rel (0) target = $region5
  $region4: #{transopt_forward.1} parent=0 // pred_region
    _
  $region5: #{transopt_forward.1} parent=0 // pred_fallthru
    _
  // Predicated region
  $region6: #{transopt_forward.1} parent=0 // pred_check
    _
  $region7: #{transopt_forward.1} parent=0 // pred_check_branch
    %10 = sbr.rel (0) target = $region9
  $region8: #{transopt_forward.1} parent=0 // pred_region
    _
  $region9: #{transopt_forward.1} parent=0 // pred_fallthru
    _
  %v11 = vlaneseq
  %v12 = vshrl.u32 %v11, 7
  %vm13 = vcmp.eq.s32.totalorder %v12, 0
  %vm14 = vcmp.eq.s32.totalorder %v12, 1
  %vm15 = vcmp.eq.s32.totalorder %v12, 2
  %vm16 = vcmp.eq.s32.totalorder %v12, 3
  %vm17 = vcmp.eq.s32.totalorder %v12, 4
  %vm18 = vcmp.eq.s32.totalorder %v12, 5
  %vm19 = vcmp.eq.s32.totalorder %v12, 6
  %vm20 = vcmp.eq.s32.totalorder %v12, 7
  %v21 = vsel %vm13, 1, 0
  %v22 = vsel %vm14, 1, 0
  %v23 = vsel %vm15, 1, 0
  %v24 = vsel %vm16, 1, 0
  %v25 = vsel %vm17, 1, 0
  %v26 = vsel %vm18, 1, 0
  %v27 = vsel %vm19, 1, 0
  %v28 = vsel %vm20, 1, 0
  %v29 = vcvt.s32.f32 %v21
  %v30 = vcvt.s32.f32 %v22
  %v31 = vcvt.s32.f32 %v23
  %v32 = vcvt.s32.f32 %v24
  %v33 = vcvt.s32.f32 %v25
  %v34 = vcvt.s32.f32 %v26
  %v35 = vcvt.s32.f32 %v27
  %v36 = vcvt.s32.f32 %v28
  %v37 = vld [vmem:[%s0] sm:$0xff]
  %v38 = vld [vmem:[%s0 + $0x8] sm:$0xff]
  %v39 = vld [vmem:[%s0 + $0x10] sm:$0xff]
  %v40 = vld [vmem:[%s0 + $0x18] sm:$0xff]
  %v41 = vld [vmem:[%s0 + $0x20] sm:$0xff]
  %v42 = vld [vmem:[%s0 + $0x28] sm:$0xff]
  %v43 = vld [vmem:[%s0 + $0x30] sm:$0xff]
  %v44 = vld [vmem:[%s0 + $0x38] sm:$0xff]
  %v45 = vmul.f32 %v37, 0.015625
  %v46 = vmul.f32 %v38, 0.015625
  %v47 = vmul.f32 %v39, 0.015625
  %v48 = vmul.f32 %v40, 0.015625
  %v49 = vmul.f32 %v41, 0.015625
  %v50 = vmul.f32 %v42, 0.015625
  %v51 = vmul.f32 %v43, 0.015625
  %v52 = vmul.f32 %v44, 0.015625
  %v53 = vlaneseq
  %v54 = vshrl.u32 %v53, 7
  %v55 = vsub.s32 0, %v54
  %v56 = vrot.slane %v45, %v55
  %v57 = vlaneseq
  %v58 = vshrl.u32 %v57, 7
  %v59 = vsub.s32 0, %v58
  %v60 = vrot.slane %v46, %v59
  %v61 = vlaneseq
  %v62 = vshrl.u32 %v61, 7
  %v63 = vsub.s32 0, %v62
  %v64 = vrot.slane %v47, %v63
  %v65 = vlaneseq
  %v66 = vshrl.u32 %v65, 7
  %v67 = vsub.s32 0, %v66
  %v68 = vrot.slane %v48, %v67
  %v69 = vlaneseq
  %v70 = vshrl.u32 %v69, 7
  %v71 = vsub.s32 0, %v70
  %v72 = vrot.slane %v49, %v71
  %v73 = vlaneseq
  %v74 = vshrl.u32 %v73, 7
  %v75 = vsub.s32 0, %v74
  %v76 = vrot.slane %v50, %v75
  %v77 = vlaneseq
  %v78 = vshrl.u32 %v77, 7
  %v79 = vsub.s32 0, %v78
  %v80 = vrot.slane %v51, %v79
  %v81 = vlaneseq
  %v82 = vshrl.u32 %v81, 7
  %v83 = vsub.s32 0, %v82
  %v84 = vrot.slane %v52, %v83
  %v85 = vmul.f32 %v56, %v45
  %v86 = vmul.f32 %v60, %v45
  %v87 = vmul.f32 %v64, %v45
  %v88 = vmul.f32 %v68, %v45
  %v89 = vmul.f32 %v72, %v45
  %v90 = vmul.f32 %v76, %v45
  %v91 = vmul.f32 %v80, %v45
  %v92 = vmul.f32 %v84, %v45
  %v93 = vlaneseq
  %v94 = vshrl.u32 %v93, 7
  %v95 = vsub.s32 1, %v94
  %v96 = vrot.slane %v45, %v95
  %v97 = vlaneseq
  %v98 = vshrl.u32 %v97, 7
  %v99 = vsub.s32 1, %v98
  %v100 = vrot.slane %v46, %v99
  %v101 = vlaneseq
  %v102 = vshrl.u32 %v101, 7
  %v103 = vsub.s32 1, %v102
  %v104 = vrot.slane %v47, %v103
  %v105 = vlaneseq
  %v106 = vshrl.u32 %v105, 7
  %v107 = vsub.s32 1, %v106
  %v108 = vrot.slane %v48, %v107
  %v109 = vlaneseq
  %v110 = vshrl.u32 %v109, 7
  %v111 = vsub.s32 1, %v110
  %v112 = vrot.slane %v49, %v111
  %v113 = vlaneseq
  %v114 = vshrl.u32 %v113, 7
  %v115 = vsub.s32 1, %v114
  %v116 = vrot.slane %v50, %v115
  %v117 = vlaneseq
  %v118 = vshrl.u32 %v117, 7
  %v119 = vsub.s32 1, %v118
  %v120 = vrot.slane %v51, %v119
  %v121 = vlaneseq
  %v122 = vshrl.u32 %v121, 7
  %v123 = vsub.s32 1, %v122
  %v124 = vrot.slane %v52, %v123
  %v125 = vmul.f32 %v96, %v46
  %v126 = vmul.f32 %v100, %v46
  %v127 = vmul.f32 %v104, %v46
  %v128 = vmul.f32 %v108, %v46
  %v129 = vmul.f32 %v112, %v46
  %v130 = vmul.f32 %v116, %v46
  %v131 = vmul.f32 %v120, %v46
  %v132 = vmul.f32 %v124, %v46
  %v133 = vadd.f32 %v85, %v125
  %v134 = vadd.f32 %v86, %v126
  %v135 = vadd.f32 %v87, %v127
  %v136 = vadd.f32 %v88, %v128
  %v137 = vadd.f32 %v89, %v129
  %v138 = vadd.f32 %v90, %v130
  %v139 = vadd.f32 %v91, %v131
  %v140 = vadd.f32 %v92, %v132
  %v141 = vlaneseq
  %v142 = vshrl.u32 %v141, 7
  %v143 = vsub.s32 2, %v142
  %v144 = vrot.slane %v45, %v143
  %v145 = vlaneseq
  %v146 = vshrl.u32 %v145, 7
  %v147 = vsub.s32 2, %v146
  %v148 = vrot.slane %v46, %v147
  %v149 = vlaneseq
  %v150 = vshrl.u32 %v149, 7
  %v151 = vsub.s32 2, %v150
  %v152 = vrot.slane %v47, %v151
  %v153 = vlaneseq
  %v154 = vshrl.u32 %v153, 7
  %v155 = vsub.s32 2, %v154
  %v156 = vrot.slane %v48, %v155
  %v157 = vlaneseq
  %v158 = vshrl.u32 %v157, 7
  %v159 = vsub.s32 2, %v158
  %v160 = vrot.slane %v49, %v159
  %v161 = vlaneseq
  %v162 = vshrl.u32 %v161, 7
  %v163 = vsub.s32 2, %v162
  %v164 = vrot.slane %v50, %v163
  %v165 = vlaneseq
  %v166 = vshrl.u32 %v165, 7
  %v167 = vsub.s32 2, %v166
  %v168 = vrot.slane %v51, %v167
  %v169 = vlaneseq
  %v170 = vshrl.u32 %v169, 7
  %v171 = vsub.s32 2, %v170
  %v172 = vrot.slane %v52, %v171
  %v173 = vmul.f32 %v144, %v47
  %v174 = vmul.f32 %v148, %v47
  %v175 = vmul.f32 %v152, %v47
  %v176 = vmul.f32 %v156, %v47
  %v177 = vmul.f32 %v160, %v47
  %v178 = vmul.f32 %v164, %v47
  %v179 = vmul.f32 %v168, %v47
  %v180 = vmul.f32 %v172, %v47
  %v181 = vadd.f32 %v133, %v173
  %v182 = vadd.f32 %v134, %v174
  %v183 = vadd.f32 %v135, %v175
  %v184 = vadd.f32 %v136, %v176
  %v185 = vadd.f32 %v137, %v177
  %v186 = vadd.f32 %v138, %v178
  %v187 = vadd.f32 %v139, %v179
  %v188 = vadd.f32 %v140, %v180
  %v189 = vlaneseq
  %v190 = vshrl.u32 %v189, 7
  %v191 = vsub.s32 3, %v190
  %v192 = vrot.slane %v45, %v191
  %v193 = vlaneseq
  %v194 = vshrl.u32 %v193, 7
  %v195 = vsub.s32 3, %v194
  %v196 = vrot.slane %v46, %v195
  %v197 = vlaneseq
  %v198 = vshrl.u32 %v197, 7
  %v199 = vsub.s32 3, %v198
  %v200 = vrot.slane %v47, %v199
  %v201 = vlaneseq
  %v202 = vshrl.u32 %v201, 7
  %v203 = vsub.s32 3, %v202
  %v204 = vrot.slane %v48, %v203
  %v205 = vlaneseq
  %v206 = vshrl.u32 %v205, 7
  %v207 = vsub.s32 3, %v206
  %v208 = vrot.slane %v49, %v207
  %v209 = vlaneseq
  %v210 = vshrl.u32 %v209, 7
  %v211 = vsub.s32 3, %v210
  %v212 = vrot.slane %v50, %v211
  %v213 = vlaneseq
  %v214 = vshrl.u32 %v213, 7
  %v215 = vsub.s32 3, %v214
  %v216 = vrot.slane %v51, %v215
  %v217 = vlaneseq
  %v218 = vshrl.u32 %v217, 7
  %v219 = vsub.s32 3, %v218
  %v220 = vrot.slane %v52, %v219
  %v221 = vmul.f32 %v192, %v48
  %v222 = vmul.f32 %v196, %v48
  %v223 = vmul.f32 %v200, %v48
  %v224 = vmul.f32 %v204, %v48
  %v225 = vmul.f32 %v208, %v48
  %v226 = vmul.f32 %v212, %v48
  %v227 = vmul.f32 %v216, %v48
  %v228 = vmul.f32 %v220, %v48
  %v229 = vadd.f32 %v181, %v221
  %v230 = vadd.f32 %v182, %v222
  %v231 = vadd.f32 %v183, %v223
  %v232 = vadd.f32 %v184, %v224
  %v233 = vadd.f32 %v185, %v225
  %v234 = vadd.f32 %v186, %v226
  %v235 = vadd.f32 %v187, %v227
  %v236 = vadd.f32 %v188, %v228
  %v237 = vlaneseq
  %v238 = vshrl.u32 %v237, 7
  %v239 = vsub.s32 4, %v238
  %v240 = vrot.slane %v45, %v239
  %v241 = vlaneseq
  %v242 = vshrl.u32 %v241, 7
  %v243 = vsub.s32 4, %v242
  %v244 = vrot.slane %v46, %v243
  %v245 = vlaneseq
  %v246 = vshrl.u32 %v245, 7
  %v247 = vsub.s32 4, %v246
  %v248 = vrot.slane %v47, %v247
  %v249 = vlaneseq
  %v250 = vshrl.u32 %v249, 7
  %v251 = vsub.s32 4, %v250
  %v252 = vrot.slane %v48, %v251
  %v253 = vlaneseq
  %v254 = vshrl.u32 %v253, 7
  %v255 = vsub.s32 4, %v254
  %v256 = vrot.slane %v49, %v255
  %v257 = vlaneseq
  %v258 = vshrl.u32 %v257, 7
  %v259 = vsub.s32 4, %v258
  %v260 = vrot.slane %v50, %v259
  %v261 = vlaneseq
  %v262 = vshrl.u32 %v261, 7
  %v263 = vsub.s32 4, %v262
  %v264 = vrot.slane %v51, %v263
  %v265 = vlaneseq
  %v266 = vshrl.u32 %v265, 7
  %v267 = vsub.s32 4, %v266
  %v268 = vrot.slane %v52, %v267
  %v269 = vmul.f32 %v240, %v49
  %v270 = vmul.f32 %v244, %v49
  %v271 = vmul.f32 %v248, %v49
  %v272 = vmul.f32 %v252, %v49
  %v273 = vmul.f32 %v256, %v49
  %v274 = vmul.f32 %v260, %v49
  %v275 = vmul.f32 %v264, %v49
  %v276 = vmul.f32 %v268, %v49
  %v277 = vadd.f32 %v229, %v269
  %v278 = vadd.f32 %v230, %v270
  %v279 = vadd.f32 %v231, %v271
  %v280 = vadd.f32 %v232, %v272
  %v281 = vadd.f32 %v233, %v273
  %v282 = vadd.f32 %v234, %v274
  %v283 = vadd.f32 %v235, %v275
  %v284 = vadd.f32 %v236, %v276
  %v285 = vlaneseq
  %v286 = vshrl.u32 %v285, 7
  %v287 = vsub.s32 5, %v286
  %v288 = vrot.slane %v45, %v287
  %v289 = vlaneseq
  %v290 = vshrl.u32 %v289, 7
  %v291 = vsub.s32 5, %v290
  %v292 = vrot.slane %v46, %v291
  %v293 = vlaneseq
  %v294 = vshrl.u32 %v293, 7
  %v295 = vsub.s32 5, %v294
  %v296 = vrot.slane %v47, %v295
  %v297 = vlaneseq
  %v298 = vshrl.u32 %v297, 7
  %v299 = vsub.s32 5, %v298
  %v300 = vrot.slane %v48, %v299
  %v301 = vlaneseq
  %v302 = vshrl.u32 %v301, 7
  %v303 = vsub.s32 5, %v302
  %v304 = vrot.slane %v49, %v303
  %v305 = vlaneseq
  %v306 = vshrl.u32 %v305, 7
  %v307 = vsub.s32 5, %v306
  %v308 = vrot.slane %v50, %v307
  %v309 = vlaneseq
  %v310 = vshrl.u32 %v309, 7
  %v311 = vsub.s32 5, %v310
  %v312 = vrot.slane %v51, %v311
  %v313 = vlaneseq
  %v314 = vshrl.u32 %v313, 7
  %v315 = vsub.s32 5, %v314
  %v316 = vrot.slane %v52, %v315
  %v317 = vmul.f32 %v288, %v50
  %v318 = vmul.f32 %v292, %v50
  %v319 = vmul.f32 %v296, %v50
  %v320 = vmul.f32 %v300, %v50
  %v321 = vmul.f32 %v304, %v50
  %v322 = vmul.f32 %v308, %v50
  %v323 = vmul.f32 %v312, %v50
  %v324 = vmul.f32 %v316, %v50
  %v325 = vadd.f32 %v277, %v317
  %v326 = vadd.f32 %v278, %v318
  %v327 = vadd.f32 %v279, %v319
  %v328 = vadd.f32 %v280, %v320
  %v329 = vadd.f32 %v281, %v321
  %v330 = vadd.f32 %v282, %v322
  %v331 = vadd.f32 %v283, %v323
  %v332 = vadd.f32 %v284, %v324
  %v333 = vlaneseq
  %v334 = vshrl.u32 %v333, 7
  %v335 = vsub.s32 6, %v334
  %v336 = vrot.slane %v45, %v335
  %v337 = vlaneseq
  %v338 = vshrl.u32 %v337, 7
  %v339 = vsub.s32 6, %v338
  %v340 = vrot.slane %v46, %v339
  %v341 = vlaneseq
  %v342 = vshrl.u32 %v341, 7
  %v343 = vsub.s32 6, %v342
  %v344 = vrot.slane %v47, %v343
  %v345 = vlaneseq
  %v346 = vshrl.u32 %v345, 7
  %v347 = vsub.s32 6, %v346
  %v348 = vrot.slane %v48, %v347
  %v349 = vlaneseq
  %v350 = vshrl.u32 %v349, 7
  %v351 = vsub.s32 6, %v350
  %v352 = vrot.slane %v49, %v351
  %v353 = vlaneseq
  %v354 = vshrl.u32 %v353, 7
  %v355 = vsub.s32 6, %v354
  %v356 = vrot.slane %v50, %v355
  %v357 = vlaneseq
  %v358 = vshrl.u32 %v357, 7
  %v359 = vsub.s32 6, %v358
  %v360 = vrot.slane %v51, %v359
  %v361 = vlaneseq
  %v362 = vshrl.u32 %v361, 7
  %v363 = vsub.s32 6, %v362
  %v364 = vrot.slane %v52, %v363
  %v365 = vmul.f32 %v336, %v51
  %v366 = vmul.f32 %v340, %v51
  %v367 = vmul.f32 %v344, %v51
  %v368 = vmul.f32 %v348, %v51
  %v369 = vmul.f32 %v352, %v51
  %v370 = vmul.f32 %v356, %v51
  %v371 = vmul.f32 %v360, %v51
  %v372 = vmul.f32 %v364, %v51
  %v373 = vadd.f32 %v325, %v365
  %v374 = vadd.f32 %v326, %v366
  %v375 = vadd.f32 %v327, %v367
  %v376 = vadd.f32 %v328, %v368
  %v377 = vadd.f32 %v329, %v369
  %v378 = vadd.f32 %v330, %v370
  %v379 = vadd.f32 %v331, %v371
  %v380 = vadd.f32 %v332, %v372
  %v381 = vlaneseq
  %v382 = vshrl.u32 %v381, 7
  %v383 = vsub.s32 7, %v382
  %v384 = vrot.slane %v45, %v383
  %v385 = vlaneseq
  %v386 = vshrl.u32 %v385, 7
  %v387 = vsub.s32 7, %v386
  %v388 = vrot.slane %v46, %v387
  %v389 = vlaneseq
  %v390 = vshrl.u32 %v389, 7
  %v391 = vsub.s32 7, %v390
  %v392 = vrot.slane %v47, %v391
  %v393 = vlaneseq
  %v394 = vshrl.u32 %v393, 7
  %v395 = vsub.s32 7, %v394
  %v396 = vrot.slane %v48, %v395
  %v397 = vlaneseq
  %v398 = vshrl.u32 %v397, 7
  %v399 = vsub.s32 7, %v398
  %v400 = vrot.slane %v49, %v399
  %v401 = vlaneseq
  %v402 = vshrl.u32 %v401, 7
  %v403 = vsub.s32 7, %v402
  %v404 = vrot.slane %v50, %v403
  %v405 = vlaneseq
  %v406 = vshrl.u32 %v405, 7
  %v407 = vsub.s32 7, %v406
  %v408 = vrot.slane %v51, %v407
  %v409 = vlaneseq
  %v410 = vshrl.u32 %v409, 7
  %v411 = vsub.s32 7, %v410
  %v412 = vrot.slane %v52, %v411
  %v413 = vmul.f32 %v384, %v52
  %v414 = vmul.f32 %v388, %v52
  %v415 = vmul.f32 %v392, %v52
  %v416 = vmul.f32 %v396, %v52
  %v417 = vmul.f32 %v400, %v52
  %v418 = vmul.f32 %v404, %v52
  %v419 = vmul.f32 %v408, %v52
  %v420 = vmul.f32 %v412, %v52
  %v421 = vadd.f32 %v373, %v413
  %v422 = vadd.f32 %v374, %v414
  %v423 = vadd.f32 %v375, %v415
  %v424 = vadd.f32 %v376, %v416
  %v425 = vadd.f32 %v377, %v417
  %v426 = vadd.f32 %v378, %v418
  %v427 = vadd.f32 %v379, %v419
  %v428 = vadd.f32 %v380, %v420
  %v429 = vlaneseq
  %v430 = vshrl.u32 %v429, 7
  %v431 = vsub.s32 0, %v430
  %v432 = vrot.slane %v421, %v431
  %v433 = vlaneseq
  %v434 = vshrl.u32 %v433, 7
  %v435 = vsub.s32 0, %v434
  %v436 = vrot.slane %v422, %v435
  %v437 = vlaneseq
  %v438 = vshrl.u32 %v437, 7
  %v439 = vsub.s32 0, %v438
  %v440 = vrot.slane %v423, %v439
  %v441 = vlaneseq
  %v442 = vshrl.u32 %v441, 7
  %v443 = vsub.s32 0, %v442
  %v444 = vrot.slane %v424, %v443
  %v445 = vlaneseq
  %v446 = vshrl.u32 %v445, 7
  %v447 = vsub.s32 0, %v446
  %v448 = vrot.slane %v425, %v447
  %v449 = vlaneseq
  %v450 = vshrl.u32 %v449, 7
  %v451 = vsub.s32 0, %v450
  %v452 = vrot.slane %v426, %v451
  %v453 = vlaneseq
  %v454 = vshrl.u32 %v453, 7
  %v455 = vsub.s32 0, %v454
  %v456 = vrot.slane %v427, %v455
  %v457 = vlaneseq
  %v458 = vshrl.u32 %v457, 7
  %v459 = vsub.s32 0, %v458
  %v460 = vrot.slane %v428, %v459
  %v461 = vmul.f32 %v432, %v45
  %v462 = vmul.f32 %v436, %v45
  %v463 = vmul.f32 %v440, %v45
  %v464 = vmul.f32 %v444, %v45
  %v465 = vmul.f32 %v448, %v45
  %v466 = vmul.f32 %v452, %v45
  %v467 = vmul.f32 %v456, %v45
  %v468 = vmul.f32 %v460, %v45
  %v469 = vlaneseq
  %v470 = vshrl.u32 %v469, 7
  %v471 = vsub.s32 1, %v470
  %v472 = vrot.slane %v421, %v471
  %v473 = vlaneseq
  %v474 = vshrl.u32 %v473, 7
  %v475 = vsub.s32 1, %v474
  %v476 = vrot.slane %v422, %v475
  %v477 = vlaneseq
  %v478 = vshrl.u32 %v477, 7
  %v479 = vsub.s32 1, %v478
  %v480 = vrot.slane %v423, %v479
  %v481 = vlaneseq
  %v482 = vshrl.u32 %v481, 7
  %v483 = vsub.s32 1, %v482
  %v484 = vrot.slane %v424, %v483
  %v485 = vlaneseq
  %v486 = vshrl.u32 %v485, 7
  %v487 = vsub.s32 1, %v486
  %v488 = vrot.slane %v425, %v487
  %v489 = vlaneseq
  %v490 = vshrl.u32 %v489, 7
  %v491 = vsub.s32 1, %v490
  %v492 = vrot.slane %v426, %v491
  %v493 = vlaneseq
  %v494 = vshrl.u32 %v493, 7
  %v495 = vsub.s32 1, %v494
  %v496 = vrot.slane %v427, %v495
  %v497 = vlaneseq
  %v498 = vshrl.u32 %v497, 7
  %v499 = vsub.s32 1, %v498
  %v500 = vrot.slane %v428, %v499
  %v501 = vmul.f32 %v472, %v46
  %v502 = vmul.f32 %v476, %v46
  %v503 = vmul.f32 %v480, %v46
  %v504 = vmul.f32 %v484, %v46
  %v505 = vmul.f32 %v488, %v46
  %v506 = vmul.f32 %v492, %v46
  %v507 = vmul.f32 %v496, %v46
  %v508 = vmul.f32 %v500, %v46
  %v509 = vadd.f32 %v461, %v501
  %v510 = vadd.f32 %v462, %v502
  %v511 = vadd.f32 %v463, %v503
  %v512 = vadd.f32 %v464, %v504
  %v513 = vadd.f32 %v465, %v505
  %v514 = vadd.f32 %v466, %v506
  %v515 = vadd.f32 %v467, %v507
  %v516 = vadd.f32 %v468, %v508
  %v517 = vlaneseq
  %v518 = vshrl.u32 %v517, 7
  %v519 = vsub.s32 2, %v518
  %v520 = vrot.slane %v421, %v519
  %v521 = vlaneseq
  %v522 = vshrl.u32 %v521, 7
  %v523 = vsub.s32 2, %v522
  %v524 = vrot.slane %v422, %v523
  %v525 = vlaneseq
  %v526 = vshrl.u32 %v525, 7
  %v527 = vsub.s32 2, %v526
  %v528 = vrot.slane %v423, %v527
  %v529 = vlaneseq
  %v530 = vshrl.u32 %v529, 7
  %v531 = vsub.s32 2, %v530
  %v532 = vrot.slane %v424, %v531
  %v533 = vlaneseq
  %v534 = vshrl.u32 %v533, 7
  %v535 = vsub.s32 2, %v534
  %v536 = vrot.slane %v425, %v535
  %v537 = vlaneseq
  %v538 = vshrl.u32 %v537, 7
  %v539 = vsub.s32 2, %v538
  %v540 = vrot.slane %v426, %v539
  %v541 = vlaneseq
  %v542 = vshrl.u32 %v541, 7
  %v543 = vsub.s32 2, %v542
  %v544 = vrot.slane %v427, %v543
  %v545 = vlaneseq
  %v546 = vshrl.u32 %v545, 7
  %v547 = vsub.s32 2, %v546
  %v548 = vrot.slane %v428, %v547
  %v549 = vmul.f32 %v520, %v47
  %v550 = vmul.f32 %v524, %v47
  %v551 = vmul.f32 %v528, %v47
  %v552 = vmul.f32 %v532, %v47
  %v553 = vmul.f32 %v536, %v47
  %v554 = vmul.f32 %v540, %v47
  %v555 = vmul.f32 %v544, %v47
  %v556 = vmul.f32 %v548, %v47
  %v557 = vadd.f32 %v509, %v549
  %v558 = vadd.f32 %v510, %v550
  %v559 = vadd.f32 %v511, %v551
  %v560 = vadd.f32 %v512, %v552
  %v561 = vadd.f32 %v513, %v553
  %v562 = vadd.f32 %v514, %v554
  %v563 = vadd.f32 %v515, %v555
  %v564 = vadd.f32 %v516, %v556
  %v565 = vlaneseq
  %v566 = vshrl.u32 %v565, 7
  %v567 = vsub.s32 3, %v566
  %v568 = vrot.slane %v421, %v567
  %v569 = vlaneseq
  %v570 = vshrl.u32 %v569, 7
  %v571 = vsub.s32 3, %v570
  %v572 = vrot.slane %v422, %v571
  %v573 = vlaneseq
  %v574 = vshrl.u32 %v573, 7
  %v575 = vsub.s32 3, %v574
  %v576 = vrot.slane %v423, %v575
  %v577 = vlaneseq
  %v578 = vshrl.u32 %v577, 7
  %v579 = vsub.s32 3, %v578
  %v580 = vrot.slane %v424, %v579
  %v581 = vlaneseq
  %v582 = vshrl.u32 %v581, 7
  %v583 = vsub.s32 3, %v582
  %v584 = vrot.slane %v425, %v583
  %v585 = vlaneseq
  %v586 = vshrl.u32 %v585, 7
  %v587 = vsub.s32 3, %v586
  %v588 = vrot.slane %v426, %v587
  %v589 = vlaneseq
  %v590 = vshrl.u32 %v589, 7
  %v591 = vsub.s32 3, %v590
  %v592 = vrot.slane %v427, %v591
  %v593 = vlaneseq
  %v594 = vshrl.u32 %v593, 7
  %v595 = vsub.s32 3, %v594
  %v596 = vrot.slane %v428, %v595
  %v597 = vmul.f32 %v568, %v48
  %v598 = vmul.f32 %v572, %v48
  %v599 = vmul.f32 %v576, %v48
  %v600 = vmul.f32 %v580, %v48
  %v601 = vmul.f32 %v584, %v48
  %v602 = vmul.f32 %v588, %v48
  %v603 = vmul.f32 %v592, %v48
  %v604 = vmul.f32 %v596, %v48
  %v605 = vadd.f32 %v557, %v597
  %v606 = vadd.f32 %v558, %v598
  %v607 = vadd.f32 %v559, %v599
  %v608 = vadd.f32 %v560, %v600
  %v609 = vadd.f32 %v561, %v601
  %v610 = vadd.f32 %v562, %v602
  %v611 = vadd.f32 %v563, %v603
  %v612 = vadd.f32 %v564, %v604
  %v613 = vlaneseq
  %v614 = vshrl.u32 %v613, 7
  %v615 = vsub.s32 4, %v614
  %v616 = vrot.slane %v421, %v615
  %v617 = vlaneseq
  %v618 = vshrl.u32 %v617, 7
  %v619 = vsub.s32 4, %v618
  %v620 = vrot.slane %v422, %v619
  %v621 = vlaneseq
  %v622 = vshrl.u32 %v621, 7
  %v623 = vsub.s32 4, %v622
  %v624 = vrot.slane %v423, %v623
  %v625 = vlaneseq
  %v626 = vshrl.u32 %v625, 7
  %v627 = vsub.s32 4, %v626
  %v628 = vrot.slane %v424, %v627
  %v629 = vlaneseq
  %v630 = vshrl.u32 %v629, 7
  %v631 = vsub.s32 4, %v630
  %v632 = vrot.slane %v425, %v631
  %v633 = vlaneseq
  %v634 = vshrl.u32 %v633, 7
  %v635 = vsub.s32 4, %v634
  %v636 = vrot.slane %v426, %v635
  %v637 = vlaneseq
  %v638 = vshrl.u32 %v637, 7
  %v639 = vsub.s32 4, %v638
  %v640 = vrot.slane %v427, %v639
  %v641 = vlaneseq
  %v642 = vshrl.u32 %v641, 7
  %v643 = vsub.s32 4, %v642
  %v644 = vrot.slane %v428, %v643
  %v645 = vmul.f32 %v616, %v49
  %v646 = vmul.f32 %v620, %v49
  %v647 = vmul.f32 %v624, %v49
  %v648 = vmul.f32 %v628, %v49
  %v649 = vmul.f32 %v632, %v49
  %v650 = vmul.f32 %v636, %v49
  %v651 = vmul.f32 %v640, %v49
  %v652 = vmul.f32 %v644, %v49
  %v653 = vadd.f32 %v605, %v645
  %v654 = vadd.f32 %v606, %v646
  %v655 = vadd.f32 %v607, %v647
  %v656 = vadd.f32 %v608, %v648
  %v657 = vadd.f32 %v609, %v649
  %v658 = vadd.f32 %v610, %v650
  %v659 = vadd.f32 %v611, %v651
  %v660 = vadd.f32 %v612, %v652
  %v661 = vlaneseq
  %v662 = vshrl.u32 %v661, 7
  %v663 = vsub.s32 5, %v662
  %v664 = vrot.slane %v421, %v663
  %v665 = vlaneseq
  %v666 = vshrl.u32 %v665, 7
  %v667 = vsub.s32 5, %v666
  %v668 = vrot.slane %v422, %v667
  %v669 = vlaneseq
  %v670 = vshrl.u32 %v669, 7
  %v671 = vsub.s32 5, %v670
  %v672 = vrot.slane %v423, %v671
  %v673 = vlaneseq
  %v674 = vshrl.u32 %v673, 7
  %v675 = vsub.s32 5, %v674
  %v676 = vrot.slane %v424, %v675
  %v677 = vlaneseq
  %v678 = vshrl.u32 %v677, 7
  %v679 = vsub.s32 5, %v678
  %v680 = vrot.slane %v425, %v679
  %v681 = vlaneseq
  %v682 = vshrl.u32 %v681, 7
  %v683 = vsub.s32 5, %v682
  %v684 = vrot.slane %v426, %v683
  %v685 = vlaneseq
  %v686 = vshrl.u32 %v685, 7
  %v687 = vsub.s32 5, %v686
  %v688 = vrot.slane %v427, %v687
  %v689 = vlaneseq
  %v690 = vshrl.u32 %v689, 7
  %v691 = vsub.s32 5, %v690
  %v692 = vrot.slane %v428, %v691
  %v693 = vmul.f32 %v664, %v50
  %v694 = vmul.f32 %v668, %v50
  %v695 = vmul.f32 %v672, %v50
  %v696 = vmul.f32 %v676, %v50
  %v697 = vmul.f32 %v680, %v50
  %v698 = vmul.f32 %v684, %v50
  %v699 = vmul.f32 %v688, %v50
  %v700 = vmul.f32 %v692, %v50
  %v701 = vadd.f32 %v653, %v693
  %v702 = vadd.f32 %v654, %v694
  %v703 = vadd.f32 %v655, %v695
  %v704 = vadd.f32 %v656, %v696
  %v705 = vadd.f32 %v657, %v697
  %v706 = vadd.f32 %v658, %v698
  %v707 = vadd.f32 %v659, %v699
  %v708 = vadd.f32 %v660, %v700
  %v709 = vlaneseq
  %v710 = vshrl.u32 %v709, 7
  %v711 = vsub.s32 6, %v710
  %v712 = vrot.slane %v421, %v711
  %v713 = vlaneseq
  %v714 = vshrl.u32 %v713, 7
  %v715 = vsub.s32 6, %v714
  %v716 = vrot.slane %v422, %v715
  %v717 = vlaneseq
  %v718 = vshrl.u32 %v717, 7
  %v719 = vsub.s32 6, %v718
  %v720 = vrot.slane %v423, %v719
  %v721 = vlaneseq
  %v722 = vshrl.u32 %v721, 7
  %v723 = vsub.s32 6, %v722
  %v724 = vrot.slane %v424, %v723
  %v725 = vlaneseq
  %v726 = vshrl.u32 %v725, 7
  %v727 = vsub.s32 6, %v726
  %v728 = vrot.slane %v425, %v727
  %v729 = vlaneseq
  %v730 = vshrl.u32 %v729, 7
  %v731 = vsub.s32 6, %v730
  %v732 = vrot.slane %v426, %v731
  %v733 = vlaneseq
  %v734 = vshrl.u32 %v733, 7
  %v735 = vsub.s32 6, %v734
  %v736 = vrot.slane %v427, %v735
  %v737 = vlaneseq
  %v738 = vshrl.u32 %v737, 7
  %v739 = vsub.s32 6, %v738
  %v740 = vrot.slane %v428, %v739
  %v741 = vmul.f32 %v712, %v51
  %v742 = vmul.f32 %v716, %v51
  %v743 = vmul.f32 %v720, %v51
  %v744 = vmul.f32 %v724, %v51
  %v745 = vmul.f32 %v728, %v51
  %v746 = vmul.f32 %v732, %v51
  %v747 = vmul.f32 %v736, %v51
  %v748 = vmul.f32 %v740, %v51
  %v749 = vadd.f32 %v701, %v741
  %v750 = vadd.f32 %v702, %v742
  %v751 = vadd.f32 %v703, %v743
  %v752 = vadd.f32 %v704, %v744
  %v753 = vadd.f32 %v705, %v745
  %v754 = vadd.f32 %v706, %v746
  %v755 = vadd.f32 %v707, %v747
  %v756 = vadd.f32 %v708, %v748
  %v757 = vlaneseq
  %v758 = vshrl.u32 %v757, 7
  %v759 = vsub.s32 7, %v758
  %v760 = vrot.slane %v421, %v759
  %v761 = vlaneseq
  %v762 = vshrl.u32 %v761, 7
  %v763 = vsub.s32 7, %v762
  %v764 = vrot.slane %v422, %v763
  %v765 = vlaneseq
  %v766 = vshrl.u32 %v765, 7
  %v767 = vsub.s32 7, %v766
  %v768 = vrot.slane %v423, %v767
  %v769 = vlaneseq
  %v770 = vshrl.u32 %v769, 7
  %v771 = vsub.s32 7, %v770
  %v772 = vrot.slane %v424, %v771
  %v773 = vlaneseq
  %v774 = vshrl.u32 %v773, 7
  %v775 = vsub.s32 7, %v774
  %v776 = vrot.slane %v425, %v775
  %v777 = vlaneseq
  %v778 = vshrl.u32 %v777, 7
  %v779 = vsub.s32 7, %v778
  %v780 = vrot.slane %v426, %v779
  %v781 = vlaneseq
  %v782 = vshrl.u32 %v781, 7
  %v783 = vsub.s32 7, %v782
  %v784 = vrot.slane %v427, %v783
  %v785 = vlaneseq
  %v786 = vshrl.u32 %v785, 7
  %v787 = vsub.s32 7, %v786
  %v788 = vrot.slane %v428, %v787
  %v789 = vmul.f32 %v760, %v52
  %v790 = vmul.f32 %v764, %v52
  %v791 = vmul.f32 %v768, %v52
  %v792 = vmul.f32 %v772, %v52
  %v793 = vmul.f32 %v776, %v52
  %v794 = vmul.f32 %v780, %v52
  %v795 = vmul.f32 %v784, %v52
  %v796 = vmul.f32 %v788, %v52
  %v797 = vadd.f32 %v749, %v789
  %v798 = vadd.f32 %v750, %v790
  %v799 = vadd.f32 %v751, %v791
  %v800 = vadd.f32 %v752, %v792
  %v801 = vadd.f32 %v753, %v793
  %v802 = vadd.f32 %v754, %v794
  %v803 = vadd.f32 %v755, %v795
  %v804 = vadd.f32 %v756, %v796
  %v805 = vadd.f32 %v29, %v45
  %v806 = vadd.f32 %v30, %v46
  %v807 = vadd.f32 %v31, %v47
  %v808 = vadd.f32 %v32, %v48
  %v809 = vadd.f32 %v33, %v49
  %v810 = vadd.f32 %v34, %v50
  %v811 = vadd.f32 %v35, %v51
  %v812 = vadd.f32 %v36, %v52
  %v813 = vmul.f32 %v421, 0.5
  %v814 = vmul.f32 %v422, 0.5
  %v815 = vmul.f32 %v423, 0.5
  %v816 = vmul.f32 %v424, 0.5
  %v817 = vmul.f32 %v425, 0.5
  %v818 = vmul.f32 %v426, 0.5
  %v819 = vmul.f32 %v427, 0.5
  %v820 = vmul.f32 %v428, 0.5
  %v821 = vadd.f32 %v805, %v813
  %v822 = vadd.f32 %v806, %v814
  %v823 = vadd.f32 %v807, %v815
  %v824 = vadd.f32 %v808, %v816
  %v825 = vadd.f32 %v809, %v817
  %v826 = vadd.f32 %v810, %v818
  %v827 = vadd.f32 %v811, %v819
  %v828 = vadd.f32 %v812, %v820
  %v829 = vmul.f32 %v29, 0.16666667
  %v830 = vmul.f32 %v30, 0.16666667
  %v831 = vmul.f32 %v31, 0.16666667
  %v832 = vmul.f32 %v32, 0.16666667
  %v833 = vmul.f32 %v33, 0.16666667
  %v834 = vmul.f32 %v34, 0.16666667
  %v835 = vmul.f32 %v35, 0.16666667
  %v836 = vmul.f32 %v36, 0.16666667
  %v837 = vmul.f32 %v45, 0.041666668
  %v838 = vmul.f32 %v46, 0.041666668
  %v839 = vmul.f32 %v47, 0.041666668
  %v840 = vmul.f32 %v48, 0.041666668
  %v841 = vmul.f32 %v49, 0.041666668
  %v842 = vmul.f32 %v50, 0.041666668
  %v843 = vmul.f32 %v51, 0.041666668
  %v844 = vmul.f32 %v52, 0.041666668
  %v845 = vadd.f32 %v829, %v837
  %v846 = vadd.f32 %v830, %v838
  %v847 = vadd.f32 %v831, %v839
  %v848 = vadd.f32 %v832, %v840
  %v849 = vadd.f32 %v833, %v841
  %v850 = vadd.f32 %v834, %v842
  %v851 = vadd.f32 %v835, %v843
  %v852 = vadd.f32 %v836, %v844
  %v853 = vmul.f32 %v421, 0.008333334
  %v854 = vmul.f32 %v422, 0.008333334
  %v855 = vmul.f32 %v423, 0.008333334
  %v856 = vmul.f32 %v424, 0.008333334
  %v857 = vmul.f32 %v425, 0.008333334
  %v858 = vmul.f32 %v426, 0.008333334
  %v859 = vmul.f32 %v427, 0.008333334
  %v860 = vmul.f32 %v428, 0.008333334
  %v861 = vadd.f32 %v845, %v853
  %v862 = vadd.f32 %v846, %v854
  %v863 = vadd.f32 %v847, %v855
  %v864 = vadd.f32 %v848, %v856
  %v865 = vadd.f32 %v849, %v857
  %v866 = vadd.f32 %v850, %v858
  %v867 = vadd.f32 %v851, %v859
  %v868 = vadd.f32 %v852, %v860
  %v869 = vmul.f32 %v29, 0.0013888889
  %v870 = vmul.f32 %v30, 0.0013888889
  %v871 = vmul.f32 %v31, 0.0013888889
  %v872 = vmul.f32 %v32, 0.0013888889
  %v873 = vmul.f32 %v33, 0.0013888889
  %v874 = vmul.f32 %v34, 0.0013888889
  %v875 = vmul.f32 %v35, 0.0013888889
  %v876 = vmul.f32 %v36, 0.0013888889
  %v877 = vmul.f32 %v45, 0.0001984127
  %v878 = vmul.f32 %v46, 0.0001984127
  %v879 = vmul.f32 %v47, 0.0001984127
  %v880 = vmul.f32 %v48, 0.0001984127
  %v881 = vmul.f32 %v49, 0.0001984127
  %v882 = vmul.f32 %v50, 0.0001984127
  %v883 = vmul.f32 %v51, 0.0001984127
  %v884 = vmul.f32 %v52, 0.0001984127
  %v885 = vadd.f32 %v869, %v877
  %v886 = vadd.f32 %v870, %v878
  %v887 = vadd.f32 %v871, %v879
  %v888 = vadd.f32 %v872, %v880
  %v889 = vadd.f32 %v873, %v881
  %v890 = vadd.f32 %v874, %v882
  %v891 = vadd.f32 %v875, %v883
  %v892 = vadd.f32 %v876, %v884
  %v893 = vmul.f32 %v421, 2.4801588e-05
  %v894 = vmul.f32 %v422, 2.4801588e-05
  %v895 = vmul.f32 %v423, 2.4801588e-05
  %v896 = vmul.f32 %v424, 2.4801588e-05
  %v897 = vmul.f32 %v425, 2.4801588e-05
  %v898 = vmul.f32 %v426, 2.4801588e-05
  %v899 = vmul.f32 %v427, 2.4801588e-05
  %v900 = vmul.f32 %v428, 2.4801588e-05
  %v901 = vadd.f32 %v885, %v893
  %v902 = vadd.f32 %v886, %v894
  %v903 = vadd.f32 %v887, %v895
  %v904 = vadd.f32 %v888, %v896
  %v905 = vadd.f32 %v889, %v897
  %v906 = vadd.f32 %v890, %v898
  %v907 = vadd.f32 %v891, %v899
  %v908 = vadd.f32 %v892, %v900
  %v909 = vlaneseq
  %v910 = vshrl.u32 %v909, 7
  %v911 = vsub.s32 0, %v910
  %v912 = vrot.slane %v797, %v911
  %v913 = vlaneseq
  %v914 = vshrl.u32 %v913, 7
  %v915 = vsub.s32 0, %v914
  %v916 = vrot.slane %v798, %v915
  %v917 = vlaneseq
  %v918 = vshrl.u32 %v917, 7
  %v919 = vsub.s32 0, %v918
  %v920 = vrot.slane %v799, %v919
  %v921 = vlaneseq
  %v922 = vshrl.u32 %v921, 7
  %v923 = vsub.s32 0, %v922
  %v924 = vrot.slane %v800, %v923
  %v925 = vlaneseq
  %v926 = vshrl.u32 %v925, 7
  %v927 = vsub.s32 0, %v926
  %v928 = vrot.slane %v801, %v927
  %v929 = vlaneseq
  %v930 = vshrl.u32 %v929, 7
  %v931 = vsub.s32 0, %v930
  %v932 = vrot.slane %v802, %v931
  %v933 = vlaneseq
  %v934 = vshrl.u32 %v933, 7
  %v935 = vsub.s32 0, %v934
  %v936 = vrot.slane %v803, %v935
  %v937 = vlaneseq
  %v938 = vshrl.u32 %v937, 7
  %v939 = vsub.s32 0, %v938
  %v940 = vrot.slane %v804, %v939
  %v941 = vmul.f32 %v912, %v901
  %v942 = vmul.f32 %v916, %v901
  %v943 = vmul.f32 %v920, %v901
  %v944 = vmul.f32 %v924, %v901
  %v945 = vmul.f32 %v928, %v901
  %v946 = vmul.f32 %v932, %v901
  %v947 = vmul.f32 %v936, %v901
  %v948 = vmul.f32 %v940, %v901
  %v949 = vlaneseq
  %v950 = vshrl.u32 %v949, 7
  %v951 = vsub.s32 1, %v950
  %v952 = vrot.slane %v797, %v951
  %v953 = vlaneseq
  %v954 = vshrl.u32 %v953, 7
  %v955 = vsub.s32 1, %v954
  %v956 = vrot.slane %v798, %v955
  %v957 = vlaneseq
  %v958 = vshrl.u32 %v957, 7
  %v959 = vsub.s32 1, %v958
  %v960 = vrot.slane %v799, %v959
  %v961 = vlaneseq
  %v962 = vshrl.u32 %v961, 7
  %v963 = vsub.s32 1, %v962
  %v964 = vrot.slane %v800, %v963
  %v965 = vlaneseq
  %v966 = vshrl.u32 %v965, 7
  %v967 = vsub.s32 1, %v966
  %v968 = vrot.slane %v801, %v967
  %v969 = vlaneseq
  %v970 = vshrl.u32 %v969, 7
  %v971 = vsub.s32 1, %v970
  %v972 = vrot.slane %v802, %v971
  %v973 = vlaneseq
  %v974 = vshrl.u32 %v973, 7
  %v975 = vsub.s32 1, %v974
  %v976 = vrot.slane %v803, %v975
  %v977 = vlaneseq
  %v978 = vshrl.u32 %v977, 7
  %v979 = vsub.s32 1, %v978
  %v980 = vrot.slane %v804, %v979
  %v981 = vmul.f32 %v952, %v902
  %v982 = vmul.f32 %v956, %v902
  %v983 = vmul.f32 %v960, %v902
  %v984 = vmul.f32 %v964, %v902
  %v985 = vmul.f32 %v968, %v902
  %v986 = vmul.f32 %v972, %v902
  %v987 = vmul.f32 %v976, %v902
  %v988 = vmul.f32 %v980, %v902
  %v989 = vadd.f32 %v941, %v981
  %v990 = vadd.f32 %v942, %v982
  %v991 = vadd.f32 %v943, %v983
  %v992 = vadd.f32 %v944, %v984
  %v993 = vadd.f32 %v945, %v985
  %v994 = vadd.f32 %v946, %v986
  %v995 = vadd.f32 %v947, %v987
  %v996 = vadd.f32 %v948, %v988
  %v997 = vlaneseq
  %v998 = vshrl.u32 %v997, 7
  %v999 = vsub.s32 2, %v998
  %v1000 = vrot.slane %v797, %v999
  %v1001 = vlaneseq
  %v1002 = vshrl.u32 %v1001, 7
  %v1003 = vsub.s32 2, %v1002
  %v1004 = vrot.slane %v798, %v1003
  %v1005 = vlaneseq
  %v1006 = vshrl.u32 %v1005, 7
  %v1007 = vsub.s32 2, %v1006
  %v1008 = vrot.slane %v799, %v1007
  %v1009 = vlaneseq
  %v1010 = vshrl.u32 %v1009, 7
  %v1011 = vsub.s32 2, %v1010
  %v1012 = vrot.slane %v800, %v1011
  %v1013 = vlaneseq
  %v1014 = vshrl.u32 %v1013, 7
  %v1015 = vsub.s32 2, %v1014
  %v1016 = vrot.slane %v801, %v1015
  %v1017 = vlaneseq
  %v1018 = vshrl.u32 %v1017, 7
  %v1019 = vsub.s32 2, %v1018
  %v1020 = vrot.slane %v802, %v1019
  %v1021 = vlaneseq
  %v1022 = vshrl.u32 %v1021, 7
  %v1023 = vsub.s32 2, %v1022
  %v1024 = vrot.slane %v803, %v1023
  %v1025 = vlaneseq
  %v1026 = vshrl.u32 %v1025, 7
  %v1027 = vsub.s32 2, %v1026
  %v1028 = vrot.slane %v804, %v1027
  %v1029 = vmul.f32 %v1000, %v903
  %v1030 = vmul.f32 %v1004, %v903
  %v1031 = vmul.f32 %v1008, %v903
  %v1032 = vmul.f32 %v1012, %v903
  %v1033 = vmul.f32 %v1016, %v903
  %v1034 = vmul.f32 %v1020, %v903
  %v1035 = vmul.f32 %v1024, %v903
  %v1036 = vmul.f32 %v1028, %v903
  %v1037 = vadd.f32 %v989, %v1029
  %v1038 = vadd.f32 %v990, %v1030
  %v1039 = vadd.f32 %v991, %v1031
  %v1040 = vadd.f32 %v992, %v1032
  %v1041 = vadd.f32 %v993, %v1033
  %v1042 = vadd.f32 %v994, %v1034
  %v1043 = vadd.f32 %v995, %v1035
  %v1044 = vadd.f32 %v996, %v1036
  %v1045 = vlaneseq
  %v1046 = vshrl.u32 %v1045, 7
  %v1047 = vsub.s32 3, %v1046
  %v1048 = vrot.slane %v797, %v1047
  %v1049 = vlaneseq
  %v1050 = vshrl.u32 %v1049, 7
  %v1051 = vsub.s32 3, %v1050
  %v1052 = vrot.slane %v798, %v1051
  %v1053 = vlaneseq
  %v1054 = vshrl.u32 %v1053, 7
  %v1055 = vsub.s32 3, %v1054
  %v1056 = vrot.slane %v799, %v1055
  %v1057 = vlaneseq
  %v1058 = vshrl.u32 %v1057, 7
  %v1059 = vsub.s32 3, %v1058
  %v1060 = vrot.slane %v800, %v1059
  %v1061 = vlaneseq
  %v1062 = vshrl.u32 %v1061, 7
  %v1063 = vsub.s32 3, %v1062
  %v1064 = vrot.slane %v801, %v1063
  %v1065 = vlaneseq
  %v1066 = vshrl.u32 %v1065, 7
  %v1067 = vsub.s32 3, %v1066
  %v1068 = vrot.slane %v802, %v1067
  %v1069 = vlaneseq
  %v1070 = vshrl.u32 %v1069, 7
  %v1071 = vsub.s32 3, %v1070
  %v1072 = vrot.slane %v803, %v1071
  %v1073 = vlaneseq
  %v1074 = vshrl.u32 %v1073, 7
  %v1075 = vsub.s32 3, %v1074
  %v1076 = vrot.slane %v804, %v1075
  %v1077 = vmul.f32 %v1048, %v904
  %v1078 = vmul.f32 %v1052, %v904
  %v1079 = vmul.f32 %v1056, %v904
  %v1080 = vmul.f32 %v1060, %v904
  %v1081 = vmul.f32 %v1064, %v904
  %v1082 = vmul.f32 %v1068, %v904
  %v1083 = vmul.f32 %v1072, %v904
  %v1084 = vmul.f32 %v1076, %v904
  %v1085 = vadd.f32 %v1037, %v1077
  %v1086 = vadd.f32 %v1038, %v1078
  %v1087 = vadd.f32 %v1039, %v1079
  %v1088 = vadd.f32 %v1040, %v1080
  %v1089 = vadd.f32 %v1041, %v1081
  %v1090 = vadd.f32 %v1042, %v1082
  %v1091 = vadd.f32 %v1043, %v1083
  %v1092 = vadd.f32 %v1044, %v1084
  %v1093 = vlaneseq
  %v1094 = vshrl.u32 %v1093, 7
  %v1095 = vsub.s32 4, %v1094
  %v1096 = vrot.slane %v797, %v1095
  %v1097 = vlaneseq
  %v1098 = vshrl.u32 %v1097, 7
  %v1099 = vsub.s32 4, %v1098
  %v1100 = vrot.slane %v798, %v1099
  %v1101 = vlaneseq
  %v1102 = vshrl.u32 %v1101, 7
  %v1103 = vsub.s32 4, %v1102
  %v1104 = vrot.slane %v799, %v1103
  %v1105 = vlaneseq
  %v1106 = vshrl.u32 %v1105, 7
  %v1107 = vsub.s32 4, %v1106
  %v1108 = vrot.slane %v800, %v1107
  %v1109 = vlaneseq
  %v1110 = vshrl.u32 %v1109, 7
  %v1111 = vsub.s32 4, %v1110
  %v1112 = vrot.slane %v801, %v1111
  %v1113 = vlaneseq
  %v1114 = vshrl.u32 %v1113, 7
  %v1115 = vsub.s32 4, %v1114
  %v1116 = vrot.slane %v802, %v1115
  %v1117 = vlaneseq
  %v1118 = vshrl.u32 %v1117, 7
  %v1119 = vsub.s32 4, %v1118
  %v1120 = vrot.slane %v803, %v1119
  %v1121 = vlaneseq
  %v1122 = vshrl.u32 %v1121, 7
  %v1123 = vsub.s32 4, %v1122
  %v1124 = vrot.slane %v804, %v1123
  %v1125 = vmul.f32 %v1096, %v905
  %v1126 = vmul.f32 %v1100, %v905
  %v1127 = vmul.f32 %v1104, %v905
  %v1128 = vmul.f32 %v1108, %v905
  %v1129 = vmul.f32 %v1112, %v905
  %v1130 = vmul.f32 %v1116, %v905
  %v1131 = vmul.f32 %v1120, %v905
  %v1132 = vmul.f32 %v1124, %v905
  %v1133 = vadd.f32 %v1085, %v1125
  %v1134 = vadd.f32 %v1086, %v1126
  %v1135 = vadd.f32 %v1087, %v1127
  %v1136 = vadd.f32 %v1088, %v1128
  %v1137 = vadd.f32 %v1089, %v1129
  %v1138 = vadd.f32 %v1090, %v1130
  %v1139 = vadd.f32 %v1091, %v1131
  %v1140 = vadd.f32 %v1092, %v1132
  %v1141 = vlaneseq
  %v1142 = vshrl.u32 %v1141, 7
  %v1143 = vsub.s32 5, %v1142
  %v1144 = vrot.slane %v797, %v1143
  %v1145 = vlaneseq
  %v1146 = vshrl.u32 %v1145, 7
  %v1147 = vsub.s32 5, %v1146
  %v1148 = vrot.slane %v798, %v1147
  %v1149 = vlaneseq
  %v1150 = vshrl.u32 %v1149, 7
  %v1151 = vsub.s32 5, %v1150
  %v1152 = vrot.slane %v799, %v1151
  %v1153 = vlaneseq
  %v1154 = vshrl.u32 %v1153, 7
  %v1155 = vsub.s32 5, %v1154
  %v1156 = vrot.slane %v800, %v1155
  %v1157 = vlaneseq
  %v1158 = vshrl.u32 %v1157, 7
  %v1159 = vsub.s32 5, %v1158
  %v1160 = vrot.slane %v801, %v1159
  %v1161 = vlaneseq
  %v1162 = vshrl.u32 %v1161, 7
  %v1163 = vsub.s32 5, %v1162
  %v1164 = vrot.slane %v802, %v1163
  %v1165 = vlaneseq
  %v1166 = vshrl.u32 %v1165, 7
  %v1167 = vsub.s32 5, %v1166
  %v1168 = vrot.slane %v803, %v1167
  %v1169 = vlaneseq
  %v1170 = vshrl.u32 %v1169, 7
  %v1171 = vsub.s32 5, %v1170
  %v1172 = vrot.slane %v804, %v1171
  %v1173 = vmul.f32 %v1144, %v906
  %v1174 = vmul.f32 %v1148, %v906
  %v1175 = vmul.f32 %v1152, %v906
  %v1176 = vmul.f32 %v1156, %v906
  %v1177 = vmul.f32 %v1160, %v906
  %v1178 = vmul.f32 %v1164, %v906
  %v1179 = vmul.f32 %v1168, %v906
  %v1180 = vmul.f32 %v1172, %v906
  %v1181 = vadd.f32 %v1133, %v1173
  %v1182 = vadd.f32 %v1134, %v1174
  %v1183 = vadd.f32 %v1135, %v1175
  %v1184 = vadd.f32 %v1136, %v1176
  %v1185 = vadd.f32 %v1137, %v1177
  %v1186 = vadd.f32 %v1138, %v1178
  %v1187 = vadd.f32 %v1139, %v1179
  %v1188 = vadd.f32 %v1140, %v1180
  %v1189 = vlaneseq
  %v1190 = vshrl.u32 %v1189, 7
  %v1191 = vsub.s32 6, %v1190
  %v1192 = vrot.slane %v797, %v1191
  %v1193 = vlaneseq
  %v1194 = vshrl.u32 %v1193, 7
  %v1195 = vsub.s32 6, %v1194
  %v1196 = vrot.slane %v798, %v1195
  %v1197 = vlaneseq
  %v1198 = vshrl.u32 %v1197, 7
  %v1199 = vsub.s32 6, %v1198
  %v1200 = vrot.slane %v799, %v1199
  %v1201 = vlaneseq
  %v1202 = vshrl.u32 %v1201, 7
  %v1203 = vsub.s32 6, %v1202
  %v1204 = vrot.slane %v800, %v1203
  %v1205 = vlaneseq
  %v1206 = vshrl.u32 %v1205, 7
  %v1207 = vsub.s32 6, %v1206
  %v1208 = vrot.slane %v801, %v1207
  %v1209 = vlaneseq
  %v1210 = vshrl.u32 %v1209, 7
  %v1211 = vsub.s32 6, %v1210
  %v1212 = vrot.slane %v802, %v1211
  %v1213 = vlaneseq
  %v1214 = vshrl.u32 %v1213, 7
  %v1215 = vsub.s32 6, %v1214
  %v1216 = vrot.slane %v803, %v1215
  %v1217 = vlaneseq
  %v1218 = vshrl.u32 %v1217, 7
  %v1219 = vsub.s32 6, %v1218
  %v1220 = vrot.slane %v804, %v1219
  %v1221 = vmul.f32 %v1192, %v907
  %v1222 = vmul.f32 %v1196, %v907
  %v1223 = vmul.f32 %v1200, %v907
  %v1224 = vmul.f32 %v1204, %v907
  %v1225 = vmul.f32 %v1208, %v907
  %v1226 = vmul.f32 %v1212, %v907
  %v1227 = vmul.f32 %v1216, %v907
  %v1228 = vmul.f32 %v1220, %v907
  %v1229 = vadd.f32 %v1181, %v1221
  %v1230 = vadd.f32 %v1182, %v1222
  %v1231 = vadd.f32 %v1183, %v1223
  %v1232 = vadd.f32 %v1184, %v1224
  %v1233 = vadd.f32 %v1185, %v1225
  %v1234 = vadd.f32 %v1186, %v1226
  %v1235 = vadd.f32 %v1187, %v1227
  %v1236 = vadd.f32 %v1188, %v1228
  %v1237 = vlaneseq
  %v1238 = vshrl.u32 %v1237, 7
  %v1239 = vsub.s32 7, %v1238
  %v1240 = vrot.slane %v797, %v1239
  %v1241 = vlaneseq
  %v1242 = vshrl.u32 %v1241, 7
  %v1243 = vsub.s32 7, %v1242
  %v1244 = vrot.slane %v798, %v1243
  %v1245 = vlaneseq
  %v1246 = vshrl.u32 %v1245, 7
  %v1247 = vsub.s32 7, %v1246
  %v1248 = vrot.slane %v799, %v1247
  %v1249 = vlaneseq
  %v1250 = vshrl.u32 %v1249, 7
  %v1251 = vsub.s32 7, %v1250
  %v1252 = vrot.slane %v800, %v1251
  %v1253 = vlaneseq
  %v1254 = vshrl.u32 %v1253, 7
  %v1255 = vsub.s32 7, %v1254
  %v1256 = vrot.slane %v801, %v1255
  %v1257 = vlaneseq
  %v1258 = vshrl.u32 %v1257, 7
  %v1259 = vsub.s32 7, %v1258
  %v1260 = vrot.slane %v802, %v1259
  %v1261 = vlaneseq
  %v1262 = vshrl.u32 %v1261, 7
  %v1263 = vsub.s32 7, %v1262
  %v1264 = vrot.slane %v803, %v1263
  %v1265 = vlaneseq
  %v1266 = vshrl.u32 %v1265, 7
  %v1267 = vsub.s32 7, %v1266
  %v1268 = vrot.slane %v804, %v1267
  %v1269 = vmul.f32 %v1240, %v908
  %v1270 = vmul.f32 %v1244, %v908
  %v1271 = vmul.f32 %v1248, %v908
  %v1272 = vmul.f32 %v1252, %v908
  %v1273 = vmul.f32 %v1256, %v908
  %v1274 = vmul.f32 %v1260, %v908
  %v1275 = vmul.f32 %v1264, %v908
  %v1276 = vmul.f32 %v1268, %v908
  %v1277 = vadd.f32 %v1229, %v1269
  %v1278 = vadd.f32 %v1230, %v1270
  %v1279 = vadd.f32 %v1231, %v1271
  %v1280 = vadd.f32 %v1232, %v1272
  %v1281 = vadd.f32 %v1233, %v1273
  %v1282 = vadd.f32 %v1234, %v1274
  %v1283 = vadd.f32 %v1235, %v1275
  %v1284 = vadd.f32 %v1236, %v1276
  %v1285 = vadd.f32 %v861, %v1277
  %v1286 = vadd.f32 %v862, %v1278
  %v1287 = vadd.f32 %v863, %v1279
  %v1288 = vadd.f32 %v864, %v1280
  %v1289 = vadd.f32 %v865, %v1281
  %v1290 = vadd.f32 %v866, %v1282
  %v1291 = vadd.f32 %v867, %v1283
  %v1292 = vadd.f32 %v868, %v1284
  %v1293 = vmul.f32 %v912, %v1285
  %v1294 = vmul.f32 %v916, %v1285
  %v1295 = vmul.f32 %v920, %v1285
  %v1296 = vmul.f32 %v924, %v1285
  %v1297 = vmul.f32 %v928, %v1285
  %v1298 = vmul.f32 %v932, %v1285
  %v1299 = vmul.f32 %v936, %v1285
  %v1300 = vmul.f32 %v940, %v1285
  %v1301 = vmul.f32 %v952, %v1286
  %v1302 = vmul.f32 %v956, %v1286
  %v1303 = vmul.f32 %v960, %v1286
  %v1304 = vmul.f32 %v964, %v1286
  %v1305 = vmul.f32 %v968, %v1286
  %v1306 = vmul.f32 %v972, %v1286
  %v1307 = vmul.f32 %v976, %v1286
  %v1308 = vmul.f32 %v980, %v1286
  %v1309 = vadd.f32 %v1293, %v1301
  %v1310 = vadd.f32 %v1294, %v1302
  %v1311 = vadd.f32 %v1295, %v1303
  %v1312 = vadd.f32 %v1296, %v1304
  %v1313 = vadd.f32 %v1297, %v1305
  %v1314 = vadd.f32 %v1298, %v1306
  %v1315 = vadd.f32 %v1299, %v1307
  %v1316 = vadd.f32 %v1300, %v1308
  %v1317 = vmul.f32 %v1000, %v1287
  %v1318 = vmul.f32 %v1004, %v1287
  %v1319 = vmul.f32 %v1008, %v1287
  %v1320 = vmul.f32 %v1012, %v1287
  %v1321 = vmul.f32 %v1016, %v1287
  %v1322 = vmul.f32 %v1020, %v1287
  %v1323 = vmul.f32 %v1024, %v1287
  %v1324 = vmul.f32 %v1028, %v1287
  %v1325 = vadd.f32 %v1309, %v1317
  %v1326 = vadd.f32 %v1310, %v1318
  %v1327 = vadd.f32 %v1311, %v1319
  %v1328 = vadd.f32 %v1312, %v1320
  %v1329 = vadd.f32 %v1313, %v1321
  %v1330 = vadd.f32 %v1314, %v1322
  %v1331 = vadd.f32 %v1315, %v1323
  %v1332 = vadd.f32 %v1316, %v1324
  %v1333 = vmul.f32 %v1048, %v1288
  %v1334 = vmul.f32 %v1052, %v1288
  %v1335 = vmul.f32 %v1056, %v1288
  %v1336 = vmul.f32 %v1060, %v1288
  %v1337 = vmul.f32 %v1064, %v1288
  %v1338 = vmul.f32 %v1068, %v1288
  %v1339 = vmul.f32 %v1072, %v1288
  %v1340 = vmul.f32 %v1076, %v1288
  %v1341 = vadd.f32 %v1325, %v1333
  %v1342 = vadd.f32 %v1326, %v1334
  %v1343 = vadd.f32 %v1327, %v1335
  %v1344 = vadd.f32 %v1328, %v1336
  %v1345 = vadd.f32 %v1329, %v1337
  %v1346 = vadd.f32 %v1330, %v1338
  %v1347 = vadd.f32 %v1331, %v1339
  %v1348 = vadd.f32 %v1332, %v1340
  %v1349 = vmul.f32 %v1096, %v1289
  %v1350 = vmul.f32 %v1100, %v1289
  %v1351 = vmul.f32 %v1104, %v1289
  %v1352 = vmul.f32 %v1108, %v1289
  %v1353 = vmul.f32 %v1112, %v1289
  %v1354 = vmul.f32 %v1116, %v1289
  %v1355 = vmul.f32 %v1120, %v1289
  %v1356 = vmul.f32 %v1124, %v1289
  %v1357 = vadd.f32 %v1341, %v1349
  %v1358 = vadd.f32 %v1342, %v1350
  %v1359 = vadd.f32 %v1343, %v1351
  %v1360 = vadd.f32 %v1344, %v1352
  %v1361 = vadd.f32 %v1345, %v1353
  %v1362 = vadd.f32 %v1346, %v1354
  %v1363 = vadd.f32 %v1347, %v1355
  %v1364 = vadd.f32 %v1348, %v1356
  %v1365 = vmul.f32 %v1144, %v1290
  %v1366 = vmul.f32 %v1148, %v1290
  %v1367 = vmul.f32 %v1152, %v1290
  %v1368 = vmul.f32 %v1156, %v1290
  %v1369 = vmul.f32 %v1160, %v1290
  %v1370 = vmul.f32 %v1164, %v1290
  %v1371 = vmul.f32 %v1168, %v1290
  %v1372 = vmul.f32 %v1172, %v1290
  %v1373 = vadd.f32 %v1357, %v1365
  %v1374 = vadd.f32 %v1358, %v1366
  %v1375 = vadd.f32 %v1359, %v1367
  %v1376 = vadd.f32 %v1360, %v1368
  %v1377 = vadd.f32 %v1361, %v1369
  %v1378 = vadd.f32 %v1362, %v1370
  %v1379 = vadd.f32 %v1363, %v1371
  %v1380 = vadd.f32 %v1364, %v1372
  %v1381 = vmul.f32 %v1192, %v1291
  %v1382 = vmul.f32 %v1196, %v1291
  %v1383 = vmul.f32 %v1200, %v1291
  %v1384 = vmul.f32 %v1204, %v1291
  %v1385 = vmul.f32 %v1208, %v1291
  %v1386 = vmul.f32 %v1212, %v1291
  %v1387 = vmul.f32 %v1216, %v1291
  %v1388 = vmul.f32 %v1220, %v1291
  %v1389 = vadd.f32 %v1373, %v1381
  %v1390 = vadd.f32 %v1374, %v1382
  %v1391 = vadd.f32 %v1375, %v1383
  %v1392 = vadd.f32 %v1376, %v1384
  %v1393 = vadd.f32 %v1377, %v1385
  %v1394 = vadd.f32 %v1378, %v1386
  %v1395 = vadd.f32 %v1379, %v1387
  %v1396 = vadd.f32 %v1380, %v1388
  %v1397 = vmul.f32 %v1240, %v1292
  %v1398 = vmul.f32 %v1244, %v1292
  %v1399 = vmul.f32 %v1248, %v1292
  %v1400 = vmul.f32 %v1252, %v1292
  %v1401 = vmul.f32 %v1256, %v1292
  %v1402 = vmul.f32 %v1260, %v1292
  %v1403 = vmul.f32 %v1264, %v1292
  %v1404 = vmul.f32 %v1268, %v1292
  %v1405 = vadd.f32 %v1389, %v1397
  %v1406 = vadd.f32 %v1390, %v1398
  %v1407 = vadd.f32 %v1391, %v1399
  %v1408 = vadd.f32 %v1392, %v1400
  %v1409 = vadd.f32 %v1393, %v1401
  %v1410 = vadd.f32 %v1394, %v1402
  %v1411 = vadd.f32 %v1395, %v1403
  %v1412 = vadd.f32 %v1396, %v1404
  %v1413 = vadd.f32 %v821, %v1405
  %v1414 = vadd.f32 %v822, %v1406
  %v1415 = vadd.f32 %v823, %v1407
  %v1416 = vadd.f32 %v824, %v1408
  %v1417 = vadd.f32 %v825, %v1409
  %v1418 = vadd.f32 %v826, %v1410
  %v1419 = vadd.f32 %v827, %v1411
  %v1420 = vadd.f32 %v828, %v1412
  %v1421 = vlaneseq
  %v1422 = vshrl.u32 %v1421, 7
  %v1423 = vsub.s32 0, %v1422
  %v1424 = vrot.slane %v1413, %v1423
  %v1425 = vlaneseq
  %v1426 = vshrl.u32 %v1425, 7
  %v1427 = vsub.s32 0, %v1426
  %v1428 = vrot.slane %v1414, %v1427
  %v1429 = vlaneseq
  %v1430 = vshrl.u32 %v1429, 7
  %v1431 = vsub.s32 0, %v1430
  %v1432 = vrot.slane %v1415, %v1431
  %v1433 = vlaneseq
  %v1434 = vshrl.u32 %v1433, 7
  %v1435 = vsub.s32 0, %v1434
  %v1436 = vrot.slane %v1416, %v1435
  %v1437 = vlaneseq
  %v1438 = vshrl.u32 %v1437, 7
  %v1439 = vsub.s32 0, %v1438
  %v1440 = vrot.slane %v1417, %v1439
  %v1441 = vlaneseq
  %v1442 = vshrl.u32 %v1441, 7
  %v1443 = vsub.s32 0, %v1442
  %v1444 = vrot.slane %v1418, %v1443
  %v1445 = vlaneseq
  %v1446 = vshrl.u32 %v1445, 7
  %v1447 = vsub.s32 0, %v1446
  %v1448 = vrot.slane %v1419, %v1447
  %v1449 = vlaneseq
  %v1450 = vshrl.u32 %v1449, 7
  %v1451 = vsub.s32 0, %v1450
  %v1452 = vrot.slane %v1420, %v1451
  %v1453 = vmul.f32 %v1424, %v1413
  %v1454 = vmul.f32 %v1428, %v1413
  %v1455 = vmul.f32 %v1432, %v1413
  %v1456 = vmul.f32 %v1436, %v1413
  %v1457 = vmul.f32 %v1440, %v1413
  %v1458 = vmul.f32 %v1444, %v1413
  %v1459 = vmul.f32 %v1448, %v1413
  %v1460 = vmul.f32 %v1452, %v1413
  %v1461 = vlaneseq
  %v1462 = vshrl.u32 %v1461, 7
  %v1463 = vsub.s32 1, %v1462
  %v1464 = vrot.slane %v1413, %v1463
  %v1465 = vlaneseq
  %v1466 = vshrl.u32 %v1465, 7
  %v1467 = vsub.s32 1, %v1466
  %v1468 = vrot.slane %v1414, %v1467
  %v1469 = vlaneseq
  %v1470 = vshrl.u32 %v1469, 7
  %v1471 = vsub.s32 1, %v1470
  %v1472 = vrot.slane %v1415, %v1471
  %v1473 = vlaneseq
  %v1474 = vshrl.u32 %v1473, 7
  %v1475 = vsub.s32 1, %v1474
  %v1476 = vrot.slane %v1416, %v1475
  %v1477 = vlaneseq
  %v1478 = vshrl.u32 %v1477, 7
  %v1479 = vsub.s32 1, %v1478
  %v1480 = vrot.slane %v1417, %v1479
  %v1481 = vlaneseq
  %v1482 = vshrl.u32 %v1481, 7
  %v1483 = vsub.s32 1, %v1482
  %v1484 = vrot.slane %v1418, %v1483
  %v1485 = vlaneseq
  %v1486 = vshrl.u32 %v1485, 7
  %v1487 = vsub.s32 1, %v1486
  %v1488 = vrot.slane %v1419, %v1487
  %v1489 = vlaneseq
  %v1490 = vshrl.u32 %v1489, 7
  %v1491 = vsub.s32 1, %v1490
  %v1492 = vrot.slane %v1420, %v1491
  %v1493 = vmul.f32 %v1464, %v1414
  %v1494 = vmul.f32 %v1468, %v1414
  %v1495 = vmul.f32 %v1472, %v1414
  %v1496 = vmul.f32 %v1476, %v1414
  %v1497 = vmul.f32 %v1480, %v1414
  %v1498 = vmul.f32 %v1484, %v1414
  %v1499 = vmul.f32 %v1488, %v1414
  %v1500 = vmul.f32 %v1492, %v1414
  %v1501 = vadd.f32 %v1453, %v1493
  %v1502 = vadd.f32 %v1454, %v1494
  %v1503 = vadd.f32 %v1455, %v1495
  %v1504 = vadd.f32 %v1456, %v1496
  %v1505 = vadd.f32 %v1457, %v1497
  %v1506 = vadd.f32 %v1458, %v1498
  %v1507 = vadd.f32 %v1459, %v1499
  %v1508 = vadd.f32 %v1460, %v1500
  %v1509 = vlaneseq
  %v1510 = vshrl.u32 %v1509, 7
  %v1511 = vsub.s32 2, %v1510
  %v1512 = vrot.slane %v1413, %v1511
  %v1513 = vlaneseq
  %v1514 = vshrl.u32 %v1513, 7
  %v1515 = vsub.s32 2, %v1514
  %v1516 = vrot.slane %v1414, %v1515
  %v1517 = vlaneseq
  %v1518 = vshrl.u32 %v1517, 7
  %v1519 = vsub.s32 2, %v1518
  %v1520 = vrot.slane %v1415, %v1519
  %v1521 = vlaneseq
  %v1522 = vshrl.u32 %v1521, 7
  %v1523 = vsub.s32 2, %v1522
  %v1524 = vrot.slane %v1416, %v1523
  %v1525 = vlaneseq
  %v1526 = vshrl.u32 %v1525, 7
  %v1527 = vsub.s32 2, %v1526
  %v1528 = vrot.slane %v1417, %v1527
  %v1529 = vlaneseq
  %v1530 = vshrl.u32 %v1529, 7
  %v1531 = vsub.s32 2, %v1530
  %v1532 = vrot.slane %v1418, %v1531
  %v1533 = vlaneseq
  %v1534 = vshrl.u32 %v1533, 7
  %v1535 = vsub.s32 2, %v1534
  %v1536 = vrot.slane %v1419, %v1535
  %v1537 = vlaneseq
  %v1538 = vshrl.u32 %v1537, 7
  %v1539 = vsub.s32 2, %v1538
  %v1540 = vrot.slane %v1420, %v1539
  %v1541 = vmul.f32 %v1512, %v1415
  %v1542 = vmul.f32 %v1516, %v1415
  %v1543 = vmul.f32 %v1520, %v1415
  %v1544 = vmul.f32 %v1524, %v1415
  %v1545 = vmul.f32 %v1528, %v1415
  %v1546 = vmul.f32 %v1532, %v1415
  %v1547 = vmul.f32 %v1536, %v1415
  %v1548 = vmul.f32 %v1540, %v1415
  %v1549 = vadd.f32 %v1501, %v1541
  %v1550 = vadd.f32 %v1502, %v1542
  %v1551 = vadd.f32 %v1503, %v1543
  %v1552 = vadd.f32 %v1504, %v1544
  %v1553 = vadd.f32 %v1505, %v1545
  %v1554 = vadd.f32 %v1506, %v1546
  %v1555 = vadd.f32 %v1507, %v1547
  %v1556 = vadd.f32 %v1508, %v1548
  %v1557 = vlaneseq
  %v1558 = vshrl.u32 %v1557, 7
  %v1559 = vsub.s32 3, %v1558
  %v1560 = vrot.slane %v1413, %v1559
  %v1561 = vlaneseq
  %v1562 = vshrl.u32 %v1561, 7
  %v1563 = vsub.s32 3, %v1562
  %v1564 = vrot.slane %v1414, %v1563
  %v1565 = vlaneseq
  %v1566 = vshrl.u32 %v1565, 7
  %v1567 = vsub.s32 3, %v1566
  %v1568 = vrot.slane %v1415, %v1567
  %v1569 = vlaneseq
  %v1570 = vshrl.u32 %v1569, 7
  %v1571 = vsub.s32 3, %v1570
  %v1572 = vrot.slane %v1416, %v1571
  %v1573 = vlaneseq
  %v1574 = vshrl.u32 %v1573, 7
  %v1575 = vsub.s32 3, %v1574
  %v1576 = vrot.slane %v1417, %v1575
  %v1577 = vlaneseq
  %v1578 = vshrl.u32 %v1577, 7
  %v1579 = vsub.s32 3, %v1578
  %v1580 = vrot.slane %v1418, %v1579
  %v1581 = vlaneseq
  %v1582 = vshrl.u32 %v1581, 7
  %v1583 = vsub.s32 3, %v1582
  %v1584 = vrot.slane %v1419, %v1583
  %v1585 = vlaneseq
  %v1586 = vshrl.u32 %v1585, 7
  %v1587 = vsub.s32 3, %v1586
  %v1588 = vrot.slane %v1420, %v1587
  %v1589 = vmul.f32 %v1560, %v1416
  %v1590 = vmul.f32 %v1564, %v1416
  %v1591 = vmul.f32 %v1568, %v1416
  %v1592 = vmul.f32 %v1572, %v1416
  %v1593 = vmul.f32 %v1576, %v1416
  %v1594 = vmul.f32 %v1580, %v1416
  %v1595 = vmul.f32 %v1584, %v1416
  %v1596 = vmul.f32 %v1588, %v1416
  %v1597 = vadd.f32 %v1549, %v1589
  %v1598 = vadd.f32 %v1550, %v1590
  %v1599 = vadd.f32 %v1551, %v1591
  %v1600 = vadd.f32 %v1552, %v1592
  %v1601 = vadd.f32 %v1553, %v1593
  %v1602 = vadd.f32 %v1554, %v1594
  %v1603 = vadd.f32 %v1555, %v1595
  %v1604 = vadd.f32 %v1556, %v1596
  %v1605 = vlaneseq
  %v1606 = vshrl.u32 %v1605, 7
  %v1607 = vsub.s32 4, %v1606
  %v1608 = vrot.slane %v1413, %v1607
  %v1609 = vlaneseq
  %v1610 = vshrl.u32 %v1609, 7
  %v1611 = vsub.s32 4, %v1610
  %v1612 = vrot.slane %v1414, %v1611
  %v1613 = vlaneseq
  %v1614 = vshrl.u32 %v1613, 7
  %v1615 = vsub.s32 4, %v1614
  %v1616 = vrot.slane %v1415, %v1615
  %v1617 = vlaneseq
  %v1618 = vshrl.u32 %v1617, 7
  %v1619 = vsub.s32 4, %v1618
  %v1620 = vrot.slane %v1416, %v1619
  %v1621 = vlaneseq
  %v1622 = vshrl.u32 %v1621, 7
  %v1623 = vsub.s32 4, %v1622
  %v1624 = vrot.slane %v1417, %v1623
  %v1625 = vlaneseq
  %v1626 = vshrl.u32 %v1625, 7
  %v1627 = vsub.s32 4, %v1626
  %v1628 = vrot.slane %v1418, %v1627
  %v1629 = vlaneseq
  %v1630 = vshrl.u32 %v1629, 7
  %v1631 = vsub.s32 4, %v1630
  %v1632 = vrot.slane %v1419, %v1631
  %v1633 = vlaneseq
  %v1634 = vshrl.u32 %v1633, 7
  %v1635 = vsub.s32 4, %v1634
  %v1636 = vrot.slane %v1420, %v1635
  %v1637 = vmul.f32 %v1608, %v1417
  %v1638 = vmul.f32 %v1612, %v1417
  %v1639 = vmul.f32 %v1616, %v1417
  %v1640 = vmul.f32 %v1620, %v1417
  %v1641 = vmul.f32 %v1624, %v1417
  %v1642 = vmul.f32 %v1628, %v1417
  %v1643 = vmul.f32 %v1632, %v1417
  %v1644 = vmul.f32 %v1636, %v1417
  %v1645 = vadd.f32 %v1597, %v1637
  %v1646 = vadd.f32 %v1598, %v1638
  %v1647 = vadd.f32 %v1599, %v1639
  %v1648 = vadd.f32 %v1600, %v1640
  %v1649 = vadd.f32 %v1601, %v1641
  %v1650 = vadd.f32 %v1602, %v1642
  %v1651 = vadd.f32 %v1603, %v1643
  %v1652 = vadd.f32 %v1604, %v1644
  %v1653 = vlaneseq
  %v1654 = vshrl.u32 %v1653, 7
  %v1655 = vsub.s32 5, %v1654
  %v1656 = vrot.slane %v1413, %v1655
  %v1657 = vlaneseq
  %v1658 = vshrl.u32 %v1657, 7
  %v1659 = vsub.s32 5, %v1658
  %v1660 = vrot.slane %v1414, %v1659
  %v1661 = vlaneseq
  %v1662 = vshrl.u32 %v1661, 7
  %v1663 = vsub.s32 5, %v1662
  %v1664 = vrot.slane %v1415, %v1663
  %v1665 = vlaneseq
  %v1666 = vshrl.u32 %v1665, 7
  %v1667 = vsub.s32 5, %v1666
  %v1668 = vrot.slane %v1416, %v1667
  %v1669 = vlaneseq
  %v1670 = vshrl.u32 %v1669, 7
  %v1671 = vsub.s32 5, %v1670
  %v1672 = vrot.slane %v1417, %v1671
  %v1673 = vlaneseq
  %v1674 = vshrl.u32 %v1673, 7
  %v1675 = vsub.s32 5, %v1674
  %v1676 = vrot.slane %v1418, %v1675
  %v1677 = vlaneseq
  %v1678 = vshrl.u32 %v1677, 7
  %v1679 = vsub.s32 5, %v1678
  %v1680 = vrot.slane %v1419, %v1679
  %v1681 = vlaneseq
  %v1682 = vshrl.u32 %v1681, 7
  %v1683 = vsub.s32 5, %v1682
  %v1684 = vrot.slane %v1420, %v1683
  %v1685 = vmul.f32 %v1656, %v1418
  %v1686 = vmul.f32 %v1660, %v1418
  %v1687 = vmul.f32 %v1664, %v1418
  %v1688 = vmul.f32 %v1668, %v1418
  %v1689 = vmul.f32 %v1672, %v1418
  %v1690 = vmul.f32 %v1676, %v1418
  %v1691 = vmul.f32 %v1680, %v1418
  %v1692 = vmul.f32 %v1684, %v1418
  %v1693 = vadd.f32 %v1645, %v1685
  %v1694 = vadd.f32 %v1646, %v1686
  %v1695 = vadd.f32 %v1647, %v1687
  %v1696 = vadd.f32 %v1648, %v1688
  %v1697 = vadd.f32 %v1649, %v1689
  %v1698 = vadd.f32 %v1650, %v1690
  %v1699 = vadd.f32 %v1651, %v1691
  %v1700 = vadd.f32 %v1652, %v1692
  %v1701 = vlaneseq
  %v1702 = vshrl.u32 %v1701, 7
  %v1703 = vsub.s32 6, %v1702
  %v1704 = vrot.slane %v1413, %v1703
  %v1705 = vlaneseq
  %v1706 = vshrl.u32 %v1705, 7
  %v1707 = vsub.s32 6, %v1706
  %v1708 = vrot.slane %v1414, %v1707
  %v1709 = vlaneseq
  %v1710 = vshrl.u32 %v1709, 7
  %v1711 = vsub.s32 6, %v1710
  %v1712 = vrot.slane %v1415, %v1711
  %v1713 = vlaneseq
  %v1714 = vshrl.u32 %v1713, 7
  %v1715 = vsub.s32 6, %v1714
  %v1716 = vrot.slane %v1416, %v1715
  %v1717 = vlaneseq
  %v1718 = vshrl.u32 %v1717, 7
  %v1719 = vsub.s32 6, %v1718
  %v1720 = vrot.slane %v1417, %v1719
  %v1721 = vlaneseq
  %v1722 = vshrl.u32 %v1721, 7
  %v1723 = vsub.s32 6, %v1722
  %v1724 = vrot.slane %v1418, %v1723
  %v1725 = vlaneseq
  %v1726 = vshrl.u32 %v1725, 7
  %v1727 = vsub.s32 6, %v1726
  %v1728 = vrot.slane %v1419, %v1727
  %v1729 = vlaneseq
  %v1730 = vshrl.u32 %v1729, 7
  %v1731 = vsub.s32 6, %v1730
  %v1732 = vrot.slane %v1420, %v1731
  %v1733 = vmul.f32 %v1704, %v1419
  %v1734 = vmul.f32 %v1708, %v1419
  %v1735 = vmul.f32 %v1712, %v1419
  %v1736 = vmul.f32 %v1716, %v1419
  %v1737 = vmul.f32 %v1720, %v1419
  %v1738 = vmul.f32 %v1724, %v1419
  %v1739 = vmul.f32 %v1728, %v1419
  %v1740 = vmul.f32 %v1732, %v1419
  %v1741 = vadd.f32 %v1693, %v1733
  %v1742 = vadd.f32 %v1694, %v1734
  %v1743 = vadd.f32 %v1695, %v1735
  %v1744 = vadd.f32 %v1696, %v1736
  %v1745 = vadd.f32 %v1697, %v1737
  %v1746 = vadd.f32 %v1698, %v1738
  %v1747 = vadd.f32 %v1699, %v1739
  %v1748 = vadd.f32 %v1700, %v1740
  %v1749 = vlaneseq
  %v1750 = vshrl.u32 %v1749, 7
  %v1751 = vsub.s32 7, %v1750
  %v1752 = vrot.slane %v1413, %v1751
  %v1753 = vlaneseq
  %v1754 = vshrl.u32 %v1753, 7
  %v1755 = vsub.s32 7, %v1754
  %v1756 = vrot.slane %v1414, %v1755
  %v1757 = vlaneseq
  %v1758 = vshrl.u32 %v1757, 7
  %v1759 = vsub.s32 7, %v1758
  %v1760 = vrot.slane %v1415, %v1759
  %v1761 = vlaneseq
  %v1762 = vshrl.u32 %v1761, 7
  %v1763 = vsub.s32 7, %v1762
  %v1764 = vrot.slane %v1416, %v1763
  %v1765 = vlaneseq
  %v1766 = vshrl.u32 %v1765, 7
  %v1767 = vsub.s32 7, %v1766
  %v1768 = vrot.slane %v1417, %v1767
  %v1769 = vlaneseq
  %v1770 = vshrl.u32 %v1769, 7
  %v1771 = vsub.s32 7, %v1770
  %v1772 = vrot.slane %v1418, %v1771
  %v1773 = vlaneseq
  %v1774 = vshrl.u32 %v1773, 7
  %v1775 = vsub.s32 7, %v1774
  %v1776 = vrot.slane %v1419, %v1775
  %v1777 = vlaneseq
  %v1778 = vshrl.u32 %v1777, 7
  %v1779 = vsub.s32 7, %v1778
  %v1780 = vrot.slane %v1420, %v1779
  %v1781 = vmul.f32 %v1752, %v1420
  %v1782 = vmul.f32 %v1756, %v1420
  %v1783 = vmul.f32 %v1760, %v1420
  %v1784 = vmul.f32 %v1764, %v1420
  %v1785 = vmul.f32 %v1768, %v1420
  %v1786 = vmul.f32 %v1772, %v1420
  %v1787 = vmul.f32 %v1776, %v1420
  %v1788 = vmul.f32 %v1780, %v1420
  %v1789 = vadd.f32 %v1741, %v1781
  %v1790 = vadd.f32 %v1742, %v1782
  %v1791 = vadd.f32 %v1743, %v1783
  %v1792 = vadd.f32 %v1744, %v1784
  %v1793 = vadd.f32 %v1745, %v1785
  %v1794 = vadd.f32 %v1746, %v1786
  %v1795 = vadd.f32 %v1747, %v1787
  %v1796 = vadd.f32 %v1748, %v1788
  %v1797 = vlaneseq
  %v1798 = vshrl.u32 %v1797, 7
  %v1799 = vsub.s32 0, %v1798
  %v1800 = vrot.slane %v1789, %v1799
  %v1801 = vlaneseq
  %v1802 = vshrl.u32 %v1801, 7
  %v1803 = vsub.s32 0, %v1802
  %v1804 = vrot.slane %v1790, %v1803
  %v1805 = vlaneseq
  %v1806 = vshrl.u32 %v1805, 7
  %v1807 = vsub.s32 0, %v1806
  %v1808 = vrot.slane %v1791, %v1807
  %v1809 = vlaneseq
  %v1810 = vshrl.u32 %v1809, 7
  %v1811 = vsub.s32 0, %v1810
  %v1812 = vrot.slane %v1792, %v1811
  %v1813 = vlaneseq
  %v1814 = vshrl.u32 %v1813, 7
  %v1815 = vsub.s32 0, %v1814
  %v1816 = vrot.slane %v1793, %v1815
  %v1817 = vlaneseq
  %v1818 = vshrl.u32 %v1817, 7
  %v1819 = vsub.s32 0, %v1818
  %v1820 = vrot.slane %v1794, %v1819
  %v1821 = vlaneseq
  %v1822 = vshrl.u32 %v1821, 7
  %v1823 = vsub.s32 0, %v1822
  %v1824 = vrot.slane %v1795, %v1823
  %v1825 = vlaneseq
  %v1826 = vshrl.u32 %v1825, 7
  %v1827 = vsub.s32 0, %v1826
  %v1828 = vrot.slane %v1796, %v1827
  %v1829 = vmul.f32 %v1800, %v1789
  %v1830 = vmul.f32 %v1804, %v1789
  %v1831 = vmul.f32 %v1808, %v1789
  %v1832 = vmul.f32 %v1812, %v1789
  %v1833 = vmul.f32 %v1816, %v1789
  %v1834 = vmul.f32 %v1820, %v1789
  %v1835 = vmul.f32 %v1824, %v1789
  %v1836 = vmul.f32 %v1828, %v1789
  %v1837 = vlaneseq
  %v1838 = vshrl.u32 %v1837, 7
  %v1839 = vsub.s32 1, %v1838
  %v1840 = vrot.slane %v1789, %v1839
  %v1841 = vlaneseq
  %v1842 = vshrl.u32 %v1841, 7
  %v1843 = vsub.s32 1, %v1842
  %v1844 = vrot.slane %v1790, %v1843
  %v1845 = vlaneseq
  %v1846 = vshrl.u32 %v1845, 7
  %v1847 = vsub.s32 1, %v1846
  %v1848 = vrot.slane %v1791, %v1847
  %v1849 = vlaneseq
  %v1850 = vshrl.u32 %v1849, 7
  %v1851 = vsub.s32 1, %v1850
  %v1852 = vrot.slane %v1792, %v1851
  %v1853 = vlaneseq
  %v1854 = vshrl.u32 %v1853, 7
  %v1855 = vsub.s32 1, %v1854
  %v1856 = vrot.slane %v1793, %v1855
  %v1857 = vlaneseq
  %v1858 = vshrl.u32 %v1857, 7
  %v1859 = vsub.s32 1, %v1858
  %v1860 = vrot.slane %v1794, %v1859
  %v1861 = vlaneseq
  %v1862 = vshrl.u32 %v1861, 7
  %v1863 = vsub.s32 1, %v1862
  %v1864 = vrot.slane %v1795, %v1863
  %v1865 = vlaneseq
  %v1866 = vshrl.u32 %v1865, 7
  %v1867 = vsub.s32 1, %v1866
  %v1868 = vrot.slane %v1796, %v1867
  %v1869 = vmul.f32 %v1840, %v1790
  %v1870 = vmul.f32 %v1844, %v1790
  %v1871 = vmul.f32 %v1848, %v1790
  %v1872 = vmul.f32 %v1852, %v1790
  %v1873 = vmul.f32 %v1856, %v1790
  %v1874 = vmul.f32 %v1860, %v1790
  %v1875 = vmul.f32 %v1864, %v1790
  %v1876 = vmul.f32 %v1868, %v1790
  %v1877 = vadd.f32 %v1829, %v1869
  %v1878 = vadd.f32 %v1830, %v1870
  %v1879 = vadd.f32 %v1831, %v1871
  %v1880 = vadd.f32 %v1832, %v1872
  %v1881 = vadd.f32 %v1833, %v1873
  %v1882 = vadd.f32 %v1834, %v1874
  %v1883 = vadd.f32 %v1835, %v1875
  %v1884 = vadd.f32 %v1836, %v1876
  %v1885 = vlaneseq
  %v1886 = vshrl.u32 %v1885, 7
  %v1887 = vsub.s32 2, %v1886
  %v1888 = vrot.slane %v1789, %v1887
  %v1889 = vlaneseq
  %v1890 = vshrl.u32 %v1889, 7
  %v1891 = vsub.s32 2, %v1890
  %v1892 = vrot.slane %v1790, %v1891
  %v1893 = vlaneseq
  %v1894 = vshrl.u32 %v1893, 7
  %v1895 = vsub.s32 2, %v1894
  %v1896 = vrot.slane %v1791, %v1895
  %v1897 = vlaneseq
  %v1898 = vshrl.u32 %v1897, 7
  %v1899 = vsub.s32 2, %v1898
  %v1900 = vrot.slane %v1792, %v1899
  %v1901 = vlaneseq
  %v1902 = vshrl.u32 %v1901, 7
  %v1903 = vsub.s32 2, %v1902
  %v1904 = vrot.slane %v1793, %v1903
  %v1905 = vlaneseq
  %v1906 = vshrl.u32 %v1905, 7
  %v1907 = vsub.s32 2, %v1906
  %v1908 = vrot.slane %v1794, %v1907
  %v1909 = vlaneseq
  %v1910 = vshrl.u32 %v1909, 7
  %v1911 = vsub.s32 2, %v1910
  %v1912 = vrot.slane %v1795, %v1911
  %v1913 = vlaneseq
  %v1914 = vshrl.u32 %v1913, 7
  %v1915 = vsub.s32 2, %v1914
  %v1916 = vrot.slane %v1796, %v1915
  %v1917 = vmul.f32 %v1888, %v1791
  %v1918 = vmul.f32 %v1892, %v1791
  %v1919 = vmul.f32 %v1896, %v1791
  %v1920 = vmul.f32 %v1900, %v1791
  %v1921 = vmul.f32 %v1904, %v1791
  %v1922 = vmul.f32 %v1908, %v1791
  %v1923 = vmul.f32 %v1912, %v1791
  %v1924 = vmul.f32 %v1916, %v1791
  %v1925 = vadd.f32 %v1877, %v1917
  %v1926 = vadd.f32 %v1878, %v1918
  %v1927 = vadd.f32 %v1879, %v1919
  %v1928 = vadd.f32 %v1880, %v1920
  %v1929 = vadd.f32 %v1881, %v1921
  %v1930 = vadd.f32 %v1882, %v1922
  %v1931 = vadd.f32 %v1883, %v1923
  %v1932 = vadd.f32 %v1884, %v1924
  %v1933 = vlaneseq
  %v1934 = vshrl.u32 %v1933, 7
  %v1935 = vsub.s32 3, %v1934
  %v1936 = vrot.slane %v1789, %v1935
  %v1937 = vlaneseq
  %v1938 = vshrl.u32 %v1937, 7
  %v1939 = vsub.s32 3, %v1938
  %v1940 = vrot.slane %v1790, %v1939
  %v1941 = vlaneseq
  %v1942 = vshrl.u32 %v1941, 7
  %v1943 = vsub.s32 3, %v1942
  %v1944 = vrot.slane %v1791, %v1943
  %v1945 = vlaneseq
  %v1946 = vshrl.u32 %v1945, 7
  %v1947 = vsub.s32 3, %v1946
  %v1948 = vrot.slane %v1792, %v1947
  %v1949 = vlaneseq
  %v1950 = vshrl.u32 %v1949, 7
  %v1951 = vsub.s32 3, %v1950
  %v1952 = vrot.slane %v1793, %v1951
  %v1953 = vlaneseq
  %v1954 = vshrl.u32 %v1953, 7
  %v1955 = vsub.s32 3, %v1954
  %v1956 = vrot.slane %v1794, %v1955
  %v1957 = vlaneseq
  %v1958 = vshrl.u32 %v1957, 7
  %v1959 = vsub.s32 3, %v1958
  %v1960 = vrot.slane %v1795, %v1959
  %v1961 = vlaneseq
  %v1962 = vshrl.u32 %v1961, 7
  %v1963 = vsub.s32 3, %v1962
  %v1964 = vrot.slane %v1796, %v1963
  %v1965 = vmul.f32 %v1936, %v1792
  %v1966 = vmul.f32 %v1940, %v1792
  %v1967 = vmul.f32 %v1944, %v1792
  %v1968 = vmul.f32 %v1948, %v1792
  %v1969 = vmul.f32 %v1952, %v1792
  %v1970 = vmul.f32 %v1956, %v1792
  %v1971 = vmul.f32 %v1960, %v1792
  %v1972 = vmul.f32 %v1964, %v1792
  %v1973 = vadd.f32 %v1925, %v1965
  %v1974 = vadd.f32 %v1926, %v1966
  %v1975 = vadd.f32 %v1927, %v1967
  %v1976 = vadd.f32 %v1928, %v1968
  %v1977 = vadd.f32 %v1929, %v1969
  %v1978 = vadd.f32 %v1930, %v1970
  %v1979 = vadd.f32 %v1931, %v1971
  %v1980 = vadd.f32 %v1932, %v1972
  %v1981 = vlaneseq
  %v1982 = vshrl.u32 %v1981, 7
  %v1983 = vsub.s32 4, %v1982
  %v1984 = vrot.slane %v1789, %v1983
  %v1985 = vlaneseq
  %v1986 = vshrl.u32 %v1985, 7
  %v1987 = vsub.s32 4, %v1986
  %v1988 = vrot.slane %v1790, %v1987
  %v1989 = vlaneseq
  %v1990 = vshrl.u32 %v1989, 7
  %v1991 = vsub.s32 4, %v1990
  %v1992 = vrot.slane %v1791, %v1991
  %v1993 = vlaneseq
  %v1994 = vshrl.u32 %v1993, 7
  %v1995 = vsub.s32 4, %v1994
  %v1996 = vrot.slane %v1792, %v1995
  %v1997 = vlaneseq
  %v1998 = vshrl.u32 %v1997, 7
  %v1999 = vsub.s32 4, %v1998
  %v2000 = vrot.slane %v1793, %v1999
  %v2001 = vlaneseq
  %v2002 = vshrl.u32 %v2001, 7
  %v2003 = vsub.s32 4, %v2002
  %v2004 = vrot.slane %v1794, %v2003
  %v2005 = vlaneseq
  %v2006 = vshrl.u32 %v2005, 7
  %v2007 = vsub.s32 4, %v2006
  %v2008 = vrot.slane %v1795, %v2007
  %v2009 = vlaneseq
  %v2010 = vshrl.u32 %v2009, 7
  %v2011 = vsub.s32 4, %v2010
  %v2012 = vrot.slane %v1796, %v2011
  %v2013 = vmul.f32 %v1984, %v1793
  %v2014 = vmul.f32 %v1988, %v1793
  %v2015 = vmul.f32 %v1992, %v1793
  %v2016 = vmul.f32 %v1996, %v1793
  %v2017 = vmul.f32 %v2000, %v1793
  %v2018 = vmul.f32 %v2004, %v1793
  %v2019 = vmul.f32 %v2008, %v1793
  %v2020 = vmul.f32 %v2012, %v1793
  %v2021 = vadd.f32 %v1973, %v2013
  %v2022 = vadd.f32 %v1974, %v2014
  %v2023 = vadd.f32 %v1975, %v2015
  %v2024 = vadd.f32 %v1976, %v2016
  %v2025 = vadd.f32 %v1977, %v2017
  %v2026 = vadd.f32 %v1978, %v2018
  %v2027 = vadd.f32 %v1979, %v2019
  %v2028 = vadd.f32 %v1980, %v2020
  %v2029 = vlaneseq
  %v2030 = vshrl.u32 %v2029, 7
  %v2031 = vsub.s32 5, %v2030
  %v2032 = vrot.slane %v1789, %v2031
  %v2033 = vlaneseq
  %v2034 = vshrl.u32 %v2033, 7
  %v2035 = vsub.s32 5, %v2034
  %v2036 = vrot.slane %v1790, %v2035
  %v2037 = vlaneseq
  %v2038 = vshrl.u32 %v2037, 7
  %v2039 = vsub.s32 5, %v2038
  %v2040 = vrot.slane %v1791, %v2039
  %v2041 = vlaneseq
  %v2042 = vshrl.u32 %v2041, 7
  %v2043 = vsub.s32 5, %v2042
  %v2044 = vrot.slane %v1792, %v2043
  %v2045 = vlaneseq
  %v2046 = vshrl.u32 %v2045, 7
  %v2047 = vsub.s32 5, %v2046
  %v2048 = vrot.slane %v1793, %v2047
  %v2049 = vlaneseq
  %v2050 = vshrl.u32 %v2049, 7
  %v2051 = vsub.s32 5, %v2050
  %v2052 = vrot.slane %v1794, %v2051
  %v2053 = vlaneseq
  %v2054 = vshrl.u32 %v2053, 7
  %v2055 = vsub.s32 5, %v2054
  %v2056 = vrot.slane %v1795, %v2055
  %v2057 = vlaneseq
  %v2058 = vshrl.u32 %v2057, 7
  %v2059 = vsub.s32 5, %v2058
  %v2060 = vrot.slane %v1796, %v2059
  %v2061 = vmul.f32 %v2032, %v1794
  %v2062 = vmul.f32 %v2036, %v1794
  %v2063 = vmul.f32 %v2040, %v1794
  %v2064 = vmul.f32 %v2044, %v1794
  %v2065 = vmul.f32 %v2048, %v1794
  %v2066 = vmul.f32 %v2052, %v1794
  %v2067 = vmul.f32 %v2056, %v1794
  %v2068 = vmul.f32 %v2060, %v1794
  %v2069 = vadd.f32 %v2021, %v2061
  %v2070 = vadd.f32 %v2022, %v2062
  %v2071 = vadd.f32 %v2023, %v2063
  %v2072 = vadd.f32 %v2024, %v2064
  %v2073 = vadd.f32 %v2025, %v2065
  %v2074 = vadd.f32 %v2026, %v2066
  %v2075 = vadd.f32 %v2027, %v2067
  %v2076 = vadd.f32 %v2028, %v2068
  %v2077 = vlaneseq
  %v2078 = vshrl.u32 %v2077, 7
  %v2079 = vsub.s32 6, %v2078
  %v2080 = vrot.slane %v1789, %v2079
  %v2081 = vlaneseq
  %v2082 = vshrl.u32 %v2081, 7
  %v2083 = vsub.s32 6, %v2082
  %v2084 = vrot.slane %v1790, %v2083
  %v2085 = vlaneseq
  %v2086 = vshrl.u32 %v2085, 7
  %v2087 = vsub.s32 6, %v2086
  %v2088 = vrot.slane %v1791, %v2087
  %v2089 = vlaneseq
  %v2090 = vshrl.u32 %v2089, 7
  %v2091 = vsub.s32 6, %v2090
  %v2092 = vrot.slane %v1792, %v2091
  %v2093 = vlaneseq
  %v2094 = vshrl.u32 %v2093, 7
  %v2095 = vsub.s32 6, %v2094
  %v2096 = vrot.slane %v1793, %v2095
  %v2097 = vlaneseq
  %v2098 = vshrl.u32 %v2097, 7
  %v2099 = vsub.s32 6, %v2098
  %v2100 = vrot.slane %v1794, %v2099
  %v2101 = vlaneseq
  %v2102 = vshrl.u32 %v2101, 7
  %v2103 = vsub.s32 6, %v2102
  %v2104 = vrot.slane %v1795, %v2103
  %v2105 = vlaneseq
  %v2106 = vshrl.u32 %v2105, 7
  %v2107 = vsub.s32 6, %v2106
  %v2108 = vrot.slane %v1796, %v2107
  %v2109 = vmul.f32 %v2080, %v1795
  %v2110 = vmul.f32 %v2084, %v1795
  %v2111 = vmul.f32 %v2088, %v1795
  %v2112 = vmul.f32 %v2092, %v1795
  %v2113 = vmul.f32 %v2096, %v1795
  %v2114 = vmul.f32 %v2100, %v1795
  %v2115 = vmul.f32 %v2104, %v1795
  %v2116 = vmul.f32 %v2108, %v1795
  %v2117 = vadd.f32 %v2069, %v2109
  %v2118 = vadd.f32 %v2070, %v2110
  %v2119 = vadd.f32 %v2071, %v2111
  %v2120 = vadd.f32 %v2072, %v2112
  %v2121 = vadd.f32 %v2073, %v2113
  %v2122 = vadd.f32 %v2074, %v2114
  %v2123 = vadd.f32 %v2075, %v2115
  %v2124 = vadd.f32 %v2076, %v2116
  %v2125 = vlaneseq
  %v2126 = vshrl.u32 %v2125, 7
  %v2127 = vsub.s32 7, %v2126
  %v2128 = vrot.slane %v1789, %v2127
  %v2129 = vlaneseq
  %v2130 = vshrl.u32 %v2129, 7
  %v2131 = vsub.s32 7, %v2130
  %v2132 = vrot.slane %v1790, %v2131
  %v2133 = vlaneseq
  %v2134 = vshrl.u32 %v2133, 7
  %v2135 = vsub.s32 7, %v2134
  %v2136 = vrot.slane %v1791, %v2135
  %v2137 = vlaneseq
  %v2138 = vshrl.u32 %v2137, 7
  %v2139 = vsub.s32 7, %v2138
  %v2140 = vrot.slane %v1792, %v2139
  %v2141 = vlaneseq
  %v2142 = vshrl.u32 %v2141, 7
  %v2143 = vsub.s32 7, %v2142
  %v2144 = vrot.slane %v1793, %v2143
  %v2145 = vlaneseq
  %v2146 = vshrl.u32 %v2145, 7
  %v2147 = vsub.s32 7, %v2146
  %v2148 = vrot.slane %v1794, %v2147
  %v2149 = vlaneseq
  %v2150 = vshrl.u32 %v2149, 7
  %v2151 = vsub.s32 7, %v2150
  %v2152 = vrot.slane %v1795, %v2151
  %v2153 = vlaneseq
  %v2154 = vshrl.u32 %v2153, 7
  %v2155 = vsub.s32 7, %v2154
  %v2156 = vrot.slane %v1796, %v2155
  %v2157 = vmul.f32 %v2128, %v1796
  %v2158 = vmul.f32 %v2132, %v1796
  %v2159 = vmul.f32 %v2136, %v1796
  %v2160 = vmul.f32 %v2140, %v1796
  %v2161 = vmul.f32 %v2144, %v1796
  %v2162 = vmul.f32 %v2148, %v1796
  %v2163 = vmul.f32 %v2152, %v1796
  %v2164 = vmul.f32 %v2156, %v1796
  %v2165 = vadd.f32 %v2117, %v2157
  %v2166 = vadd.f32 %v2118, %v2158
  %v2167 = vadd.f32 %v2119, %v2159
  %v2168 = vadd.f32 %v2120, %v2160
  %v2169 = vadd.f32 %v2121, %v2161
  %v2170 = vadd.f32 %v2122, %v2162
  %v2171 = vadd.f32 %v2123, %v2163
  %v2172 = vadd.f32 %v2124, %v2164
  %v2173 = vlaneseq
  %v2174 = vshrl.u32 %v2173, 7
  %v2175 = vsub.s32 0, %v2174
  %v2176 = vrot.slane %v2165, %v2175
  %v2177 = vlaneseq
  %v2178 = vshrl.u32 %v2177, 7
  %v2179 = vsub.s32 0, %v2178
  %v2180 = vrot.slane %v2166, %v2179
  %v2181 = vlaneseq
  %v2182 = vshrl.u32 %v2181, 7
  %v2183 = vsub.s32 0, %v2182
  %v2184 = vrot.slane %v2167, %v2183
  %v2185 = vlaneseq
  %v2186 = vshrl.u32 %v2185, 7
  %v2187 = vsub.s32 0, %v2186
  %v2188 = vrot.slane %v2168, %v2187
  %v2189 = vlaneseq
  %v2190 = vshrl.u32 %v2189, 7
  %v2191 = vsub.s32 0, %v2190
  %v2192 = vrot.slane %v2169, %v2191
  %v2193 = vlaneseq
  %v2194 = vshrl.u32 %v2193, 7
  %v2195 = vsub.s32 0, %v2194
  %v2196 = vrot.slane %v2170, %v2195
  %v2197 = vlaneseq
  %v2198 = vshrl.u32 %v2197, 7
  %v2199 = vsub.s32 0, %v2198
  %v2200 = vrot.slane %v2171, %v2199
  %v2201 = vlaneseq
  %v2202 = vshrl.u32 %v2201, 7
  %v2203 = vsub.s32 0, %v2202
  %v2204 = vrot.slane %v2172, %v2203
  %v2205 = vmul.f32 %v2176, %v2165
  %v2206 = vmul.f32 %v2180, %v2165
  %v2207 = vmul.f32 %v2184, %v2165
  %v2208 = vmul.f32 %v2188, %v2165
  %v2209 = vmul.f32 %v2192, %v2165
  %v2210 = vmul.f32 %v2196, %v2165
  %v2211 = vmul.f32 %v2200, %v2165
  %v2212 = vmul.f32 %v2204, %v2165
  %v2213 = vlaneseq
  %v2214 = vshrl.u32 %v2213, 7
  %v2215 = vsub.s32 1, %v2214
  %v2216 = vrot.slane %v2165, %v2215
  %v2217 = vlaneseq
  %v2218 = vshrl.u32 %v2217, 7
  %v2219 = vsub.s32 1, %v2218
  %v2220 = vrot.slane %v2166, %v2219
  %v2221 = vlaneseq
  %v2222 = vshrl.u32 %v2221, 7
  %v2223 = vsub.s32 1, %v2222
  %v2224 = vrot.slane %v2167, %v2223
  %v2225 = vlaneseq
  %v2226 = vshrl.u32 %v2225, 7
  %v2227 = vsub.s32 1, %v2226
  %v2228 = vrot.slane %v2168, %v2227
  %v2229 = vlaneseq
  %v2230 = vshrl.u32 %v2229, 7
  %v2231 = vsub.s32 1, %v2230
  %v2232 = vrot.slane %v2169, %v2231
  %v2233 = vlaneseq
  %v2234 = vshrl.u32 %v2233, 7
  %v2235 = vsub.s32 1, %v2234
  %v2236 = vrot.slane %v2170, %v2235
  %v2237 = vlaneseq
  %v2238 = vshrl.u32 %v2237, 7
  %v2239 = vsub.s32 1, %v2238
  %v2240 = vrot.slane %v2171, %v2239
  %v2241 = vlaneseq
  %v2242 = vshrl.u32 %v2241, 7
  %v2243 = vsub.s32 1, %v2242
  %v2244 = vrot.slane %v2172, %v2243
  %v2245 = vmul.f32 %v2216, %v2166
  %v2246 = vmul.f32 %v2220, %v2166
  %v2247 = vmul.f32 %v2224, %v2166
  %v2248 = vmul.f32 %v2228, %v2166
  %v2249 = vmul.f32 %v2232, %v2166
  %v2250 = vmul.f32 %v2236, %v2166
  %v2251 = vmul.f32 %v2240, %v2166
  %v2252 = vmul.f32 %v2244, %v2166
  %v2253 = vadd.f32 %v2205, %v2245
  %v2254 = vadd.f32 %v2206, %v2246
  %v2255 = vadd.f32 %v2207, %v2247
  %v2256 = vadd.f32 %v2208, %v2248
  %v2257 = vadd.f32 %v2209, %v2249
  %v2258 = vadd.f32 %v2210, %v2250
  %v2259 = vadd.f32 %v2211, %v2251
  %v2260 = vadd.f32 %v2212, %v2252
  %v2261 = vlaneseq
  %v2262 = vshrl.u32 %v2261, 7
  %v2263 = vsub.s32 2, %v2262
  %v2264 = vrot.slane %v2165, %v2263
  %v2265 = vlaneseq
  %v2266 = vshrl.u32 %v2265, 7
  %v2267 = vsub.s32 2, %v2266
  %v2268 = vrot.slane %v2166, %v2267
  %v2269 = vlaneseq
  %v2270 = vshrl.u32 %v2269, 7
  %v2271 = vsub.s32 2, %v2270
  %v2272 = vrot.slane %v2167, %v2271
  %v2273 = vlaneseq
  %v2274 = vshrl.u32 %v2273, 7
  %v2275 = vsub.s32 2, %v2274
  %v2276 = vrot.slane %v2168, %v2275
  %v2277 = vlaneseq
  %v2278 = vshrl.u32 %v2277, 7
  %v2279 = vsub.s32 2, %v2278
  %v2280 = vrot.slane %v2169, %v2279
  %v2281 = vlaneseq
  %v2282 = vshrl.u32 %v2281, 7
  %v2283 = vsub.s32 2, %v2282
  %v2284 = vrot.slane %v2170, %v2283
  %v2285 = vlaneseq
  %v2286 = vshrl.u32 %v2285, 7
  %v2287 = vsub.s32 2, %v2286
  %v2288 = vrot.slane %v2171, %v2287
  %v2289 = vlaneseq
  %v2290 = vshrl.u32 %v2289, 7
  %v2291 = vsub.s32 2, %v2290
  %v2292 = vrot.slane %v2172, %v2291
  %v2293 = vmul.f32 %v2264, %v2167
  %v2294 = vmul.f32 %v2268, %v2167
  %v2295 = vmul.f32 %v2272, %v2167
  %v2296 = vmul.f32 %v2276, %v2167
  %v2297 = vmul.f32 %v2280, %v2167
  %v2298 = vmul.f32 %v2284, %v2167
  %v2299 = vmul.f32 %v2288, %v2167
  %v2300 = vmul.f32 %v2292, %v2167
  %v2301 = vadd.f32 %v2253, %v2293
  %v2302 = vadd.f32 %v2254, %v2294
  %v2303 = vadd.f32 %v2255, %v2295
  %v2304 = vadd.f32 %v2256, %v2296
  %v2305 = vadd.f32 %v2257, %v2297
  %v2306 = vadd.f32 %v2258, %v2298
  %v2307 = vadd.f32 %v2259, %v2299
  %v2308 = vadd.f32 %v2260, %v2300
  %v2309 = vlaneseq
  %v2310 = vshrl.u32 %v2309, 7
  %v2311 = vsub.s32 3, %v2310
  %v2312 = vrot.slane %v2165, %v2311
  %v2313 = vlaneseq
  %v2314 = vshrl.u32 %v2313, 7
  %v2315 = vsub.s32 3, %v2314
  %v2316 = vrot.slane %v2166, %v2315
  %v2317 = vlaneseq
  %v2318 = vshrl.u32 %v2317, 7
  %v2319 = vsub.s32 3, %v2318
  %v2320 = vrot.slane %v2167, %v2319
  %v2321 = vlaneseq
  %v2322 = vshrl.u32 %v2321, 7
  %v2323 = vsub.s32 3, %v2322
  %v2324 = vrot.slane %v2168, %v2323
  %v2325 = vlaneseq
  %v2326 = vshrl.u32 %v2325, 7
  %v2327 = vsub.s32 3, %v2326
  %v2328 = vrot.slane %v2169, %v2327
  %v2329 = vlaneseq
  %v2330 = vshrl.u32 %v2329, 7
  %v2331 = vsub.s32 3, %v2330
  %v2332 = vrot.slane %v2170, %v2331
  %v2333 = vlaneseq
  %v2334 = vshrl.u32 %v2333, 7
  %v2335 = vsub.s32 3, %v2334
  %v2336 = vrot.slane %v2171, %v2335
  %v2337 = vlaneseq
  %v2338 = vshrl.u32 %v2337, 7
  %v2339 = vsub.s32 3, %v2338
  %v2340 = vrot.slane %v2172, %v2339
  %v2341 = vmul.f32 %v2312, %v2168
  %v2342 = vmul.f32 %v2316, %v2168
  %v2343 = vmul.f32 %v2320, %v2168
  %v2344 = vmul.f32 %v2324, %v2168
  %v2345 = vmul.f32 %v2328, %v2168
  %v2346 = vmul.f32 %v2332, %v2168
  %v2347 = vmul.f32 %v2336, %v2168
  %v2348 = vmul.f32 %v2340, %v2168
  %v2349 = vadd.f32 %v2301, %v2341
  %v2350 = vadd.f32 %v2302, %v2342
  %v2351 = vadd.f32 %v2303, %v2343
  %v2352 = vadd.f32 %v2304, %v2344
  %v2353 = vadd.f32 %v2305, %v2345
  %v2354 = vadd.f32 %v2306, %v2346
  %v2355 = vadd.f32 %v2307, %v2347
  %v2356 = vadd.f32 %v2308, %v2348
  %v2357 = vlaneseq
  %v2358 = vshrl.u32 %v2357, 7
  %v2359 = vsub.s32 4, %v2358
  %v2360 = vrot.slane %v2165, %v2359
  %v2361 = vlaneseq
  %v2362 = vshrl.u32 %v2361, 7
  %v2363 = vsub.s32 4, %v2362
  %v2364 = vrot.slane %v2166, %v2363
  %v2365 = vlaneseq
  %v2366 = vshrl.u32 %v2365, 7
  %v2367 = vsub.s32 4, %v2366
  %v2368 = vrot.slane %v2167, %v2367
  %v2369 = vlaneseq
  %v2370 = vshrl.u32 %v2369, 7
  %v2371 = vsub.s32 4, %v2370
  %v2372 = vrot.slane %v2168, %v2371
  %v2373 = vlaneseq
  %v2374 = vshrl.u32 %v2373, 7
  %v2375 = vsub.s32 4, %v2374
  %v2376 = vrot.slane %v2169, %v2375
  %v2377 = vlaneseq
  %v2378 = vshrl.u32 %v2377, 7
  %v2379 = vsub.s32 4, %v2378
  %v2380 = vrot.slane %v2170, %v2379
  %v2381 = vlaneseq
  %v2382 = vshrl.u32 %v2381, 7
  %v2383 = vsub.s32 4, %v2382
  %v2384 = vrot.slane %v2171, %v2383
  %v2385 = vlaneseq
  %v2386 = vshrl.u32 %v2385, 7
  %v2387 = vsub.s32 4, %v2386
  %v2388 = vrot.slane %v2172, %v2387
  %v2389 = vmul.f32 %v2360, %v2169
  %v2390 = vmul.f32 %v2364, %v2169
  %v2391 = vmul.f32 %v2368, %v2169
  %v2392 = vmul.f32 %v2372, %v2169
  %v2393 = vmul.f32 %v2376, %v2169
  %v2394 = vmul.f32 %v2380, %v2169
  %v2395 = vmul.f32 %v2384, %v2169
  %v2396 = vmul.f32 %v2388, %v2169
  %v2397 = vadd.f32 %v2349, %v2389
  %v2398 = vadd.f32 %v2350, %v2390
  %v2399 = vadd.f32 %v2351, %v2391
  %v2400 = vadd.f32 %v2352, %v2392
  %v2401 = vadd.f32 %v2353, %v2393
  %v2402 = vadd.f32 %v2354, %v2394
  %v2403 = vadd.f32 %v2355, %v2395
  %v2404 = vadd.f32 %v2356, %v2396
  %v2405 = vlaneseq
  %v2406 = vshrl.u32 %v2405, 7
  %v2407 = vsub.s32 5, %v2406
  %v2408 = vrot.slane %v2165, %v2407
  %v2409 = vlaneseq
  %v2410 = vshrl.u32 %v2409, 7
  %v2411 = vsub.s32 5, %v2410
  %v2412 = vrot.slane %v2166, %v2411
  %v2413 = vlaneseq
  %v2414 = vshrl.u32 %v2413, 7
  %v2415 = vsub.s32 5, %v2414
  %v2416 = vrot.slane %v2167, %v2415
  %v2417 = vlaneseq
  %v2418 = vshrl.u32 %v2417, 7
  %v2419 = vsub.s32 5, %v2418
  %v2420 = vrot.slane %v2168, %v2419
  %v2421 = vlaneseq
  %v2422 = vshrl.u32 %v2421, 7
  %v2423 = vsub.s32 5, %v2422
  %v2424 = vrot.slane %v2169, %v2423
  %v2425 = vlaneseq
  %v2426 = vshrl.u32 %v2425, 7
  %v2427 = vsub.s32 5, %v2426
  %v2428 = vrot.slane %v2170, %v2427
  %v2429 = vlaneseq
  %v2430 = vshrl.u32 %v2429, 7
  %v2431 = vsub.s32 5, %v2430
  %v2432 = vrot.slane %v2171, %v2431
  %v2433 = vlaneseq
  %v2434 = vshrl.u32 %v2433, 7
  %v2435 = vsub.s32 5, %v2434
  %v2436 = vrot.slane %v2172, %v2435
  %v2437 = vmul.f32 %v2408, %v2170
  %v2438 = vmul.f32 %v2412, %v2170
  %v2439 = vmul.f32 %v2416, %v2170
  %v2440 = vmul.f32 %v2420, %v2170
  %v2441 = vmul.f32 %v2424, %v2170
  %v2442 = vmul.f32 %v2428, %v2170
  %v2443 = vmul.f32 %v2432, %v2170
  %v2444 = vmul.f32 %v2436, %v2170
  %v2445 = vadd.f32 %v2397, %v2437
  %v2446 = vadd.f32 %v2398, %v2438
  %v2447 = vadd.f32 %v2399, %v2439
  %v2448 = vadd.f32 %v2400, %v2440
  %v2449 = vadd.f32 %v2401, %v2441
  %v2450 = vadd.f32 %v2402, %v2442
  %v2451 = vadd.f32 %v2403, %v2443
  %v2452 = vadd.f32 %v2404, %v2444
  %v2453 = vlaneseq
  %v2454 = vshrl.u32 %v2453, 7
  %v2455 = vsub.s32 6, %v2454
  %v2456 = vrot.slane %v2165, %v2455
  %v2457 = vlaneseq
  %v2458 = vshrl.u32 %v2457, 7
  %v2459 = vsub.s32 6, %v2458
  %v2460 = vrot.slane %v2166, %v2459
  %v2461 = vlaneseq
  %v2462 = vshrl.u32 %v2461, 7
  %v2463 = vsub.s32 6, %v2462
  %v2464 = vrot.slane %v2167, %v2463
  %v2465 = vlaneseq
  %v2466 = vshrl.u32 %v2465, 7
  %v2467 = vsub.s32 6, %v2466
  %v2468 = vrot.slane %v2168, %v2467
  %v2469 = vlaneseq
  %v2470 = vshrl.u32 %v2469, 7
  %v2471 = vsub.s32 6, %v2470
  %v2472 = vrot.slane %v2169, %v2471
  %v2473 = vlaneseq
  %v2474 = vshrl.u32 %v2473, 7
  %v2475 = vsub.s32 6, %v2474
  %v2476 = vrot.slane %v2170, %v2475
  %v2477 = vlaneseq
  %v2478 = vshrl.u32 %v2477, 7
  %v2479 = vsub.s32 6, %v2478
  %v2480 = vrot.slane %v2171, %v2479
  %v2481 = vlaneseq
  %v2482 = vshrl.u32 %v2481, 7
  %v2483 = vsub.s32 6, %v2482
  %v2484 = vrot.slane %v2172, %v2483
  %v2485 = vmul.f32 %v2456, %v2171
  %v2486 = vmul.f32 %v2460, %v2171
  %v2487 = vmul.f32 %v2464, %v2171
  %v2488 = vmul.f32 %v2468, %v2171
  %v2489 = vmul.f32 %v2472, %v2171
  %v2490 = vmul.f32 %v2476, %v2171
  %v2491 = vmul.f32 %v2480, %v2171
  %v2492 = vmul.f32 %v2484, %v2171
  %v2493 = vadd.f32 %v2445, %v2485
  %v2494 = vadd.f32 %v2446, %v2486
  %v2495 = vadd.f32 %v2447, %v2487
  %v2496 = vadd.f32 %v2448, %v2488
  %v2497 = vadd.f32 %v2449, %v2489
  %v2498 = vadd.f32 %v2450, %v2490
  %v2499 = vadd.f32 %v2451, %v2491
  %v2500 = vadd.f32 %v2452, %v2492
  %v2501 = vlaneseq
  %v2502 = vshrl.u32 %v2501, 7
  %v2503 = vsub.s32 7, %v2502
  %v2504 = vrot.slane %v2165, %v2503
  %v2505 = vlaneseq
  %v2506 = vshrl.u32 %v2505, 7
  %v2507 = vsub.s32 7, %v2506
  %v2508 = vrot.slane %v2166, %v2507
  %v2509 = vlaneseq
  %v2510 = vshrl.u32 %v2509, 7
  %v2511 = vsub.s32 7, %v2510
  %v2512 = vrot.slane %v2167, %v2511
  %v2513 = vlaneseq
  %v2514 = vshrl.u32 %v2513, 7
  %v2515 = vsub.s32 7, %v2514
  %v2516 = vrot.slane %v2168, %v2515
  %v2517 = vlaneseq
  %v2518 = vshrl.u32 %v2517, 7
  %v2519 = vsub.s32 7, %v2518
  %v2520 = vrot.slane %v2169, %v2519
  %v2521 = vlaneseq
  %v2522 = vshrl.u32 %v2521, 7
  %v2523 = vsub.s32 7, %v2522
  %v2524 = vrot.slane %v2170, %v2523
  %v2525 = vlaneseq
  %v2526 = vshrl.u32 %v2525, 7
  %v2527 = vsub.s32 7, %v2526
  %v2528 = vrot.slane %v2171, %v2527
  %v2529 = vlaneseq
  %v2530 = vshrl.u32 %v2529, 7
  %v2531 = vsub.s32 7, %v2530
  %v2532 = vrot.slane %v2172, %v2531
  %v2533 = vmul.f32 %v2504, %v2172
  %v2534 = vmul.f32 %v2508, %v2172
  %v2535 = vmul.f32 %v2512, %v2172
  %v2536 = vmul.f32 %v2516, %v2172
  %v2537 = vmul.f32 %v2520, %v2172
  %v2538 = vmul.f32 %v2524, %v2172
  %v2539 = vmul.f32 %v2528, %v2172
  %v2540 = vmul.f32 %v2532, %v2172
  %v2541 = vadd.f32 %v2493, %v2533
  %v2542 = vadd.f32 %v2494, %v2534
  %v2543 = vadd.f32 %v2495, %v2535
  %v2544 = vadd.f32 %v2496, %v2536
  %v2545 = vadd.f32 %v2497, %v2537
  %v2546 = vadd.f32 %v2498, %v2538
  %v2547 = vadd.f32 %v2499, %v2539
  %v2548 = vadd.f32 %v2500, %v2540
  %v2549 = vlaneseq
  %v2550 = vshrl.u32 %v2549, 7
  %v2551 = vsub.s32 0, %v2550
  %v2552 = vrot.slane %v2541, %v2551
  %v2553 = vlaneseq
  %v2554 = vshrl.u32 %v2553, 7
  %v2555 = vsub.s32 0, %v2554
  %v2556 = vrot.slane %v2542, %v2555
  %v2557 = vlaneseq
  %v2558 = vshrl.u32 %v2557, 7
  %v2559 = vsub.s32 0, %v2558
  %v2560 = vrot.slane %v2543, %v2559
  %v2561 = vlaneseq
  %v2562 = vshrl.u32 %v2561, 7
  %v2563 = vsub.s32 0, %v2562
  %v2564 = vrot.slane %v2544, %v2563
  %v2565 = vlaneseq
  %v2566 = vshrl.u32 %v2565, 7
  %v2567 = vsub.s32 0, %v2566
  %v2568 = vrot.slane %v2545, %v2567
  %v2569 = vlaneseq
  %v2570 = vshrl.u32 %v2569, 7
  %v2571 = vsub.s32 0, %v2570
  %v2572 = vrot.slane %v2546, %v2571
  %v2573 = vlaneseq
  %v2574 = vshrl.u32 %v2573, 7
  %v2575 = vsub.s32 0, %v2574
  %v2576 = vrot.slane %v2547, %v2575
  %v2577 = vlaneseq
  %v2578 = vshrl.u32 %v2577, 7
  %v2579 = vsub.s32 0, %v2578
  %v2580 = vrot.slane %v2548, %v2579
  %v2581 = vmul.f32 %v2552, %v2541
  %v2582 = vmul.f32 %v2556, %v2541
  %v2583 = vmul.f32 %v2560, %v2541
  %v2584 = vmul.f32 %v2564, %v2541
  %v2585 = vmul.f32 %v2568, %v2541
  %v2586 = vmul.f32 %v2572, %v2541
  %v2587 = vmul.f32 %v2576, %v2541
  %v2588 = vmul.f32 %v2580, %v2541
  %v2589 = vlaneseq
  %v2590 = vshrl.u32 %v2589, 7
  %v2591 = vsub.s32 1, %v2590
  %v2592 = vrot.slane %v2541, %v2591
  %v2593 = vlaneseq
  %v2594 = vshrl.u32 %v2593, 7
  %v2595 = vsub.s32 1, %v2594
  %v2596 = vrot.slane %v2542, %v2595
  %v2597 = vlaneseq
  %v2598 = vshrl.u32 %v2597, 7
  %v2599 = vsub.s32 1, %v2598
  %v2600 = vrot.slane %v2543, %v2599
  %v2601 = vlaneseq
  %v2602 = vshrl.u32 %v2601, 7
  %v2603 = vsub.s32 1, %v2602
  %v2604 = vrot.slane %v2544, %v2603
  %v2605 = vlaneseq
  %v2606 = vshrl.u32 %v2605, 7
  %v2607 = vsub.s32 1, %v2606
  %v2608 = vrot.slane %v2545, %v2607
  %v2609 = vlaneseq
  %v2610 = vshrl.u32 %v2609, 7
  %v2611 = vsub.s32 1, %v2610
  %v2612 = vrot.slane %v2546, %v2611
  %v2613 = vlaneseq
  %v2614 = vshrl.u32 %v2613, 7
  %v2615 = vsub.s32 1, %v2614
  %v2616 = vrot.slane %v2547, %v2615
  %v2617 = vlaneseq
  %v2618 = vshrl.u32 %v2617, 7
  %v2619 = vsub.s32 1, %v2618
  %v2620 = vrot.slane %v2548, %v2619
  %v2621 = vmul.f32 %v2592, %v2542
  %v2622 = vmul.f32 %v2596, %v2542
  %v2623 = vmul.f32 %v2600, %v2542
  %v2624 = vmul.f32 %v2604, %v2542
  %v2625 = vmul.f32 %v2608, %v2542
  %v2626 = vmul.f32 %v2612, %v2542
  %v2627 = vmul.f32 %v2616, %v2542
  %v2628 = vmul.f32 %v2620, %v2542
  %v2629 = vadd.f32 %v2581, %v2621
  %v2630 = vadd.f32 %v2582, %v2622
  %v2631 = vadd.f32 %v2583, %v2623
  %v2632 = vadd.f32 %v2584, %v2624
  %v2633 = vadd.f32 %v2585, %v2625
  %v2634 = vadd.f32 %v2586, %v2626
  %v2635 = vadd.f32 %v2587, %v2627
  %v2636 = vadd.f32 %v2588, %v2628
  %v2637 = vlaneseq
  %v2638 = vshrl.u32 %v2637, 7
  %v2639 = vsub.s32 2, %v2638
  %v2640 = vrot.slane %v2541, %v2639
  %v2641 = vlaneseq
  %v2642 = vshrl.u32 %v2641, 7
  %v2643 = vsub.s32 2, %v2642
  %v2644 = vrot.slane %v2542, %v2643
  %v2645 = vlaneseq
  %v2646 = vshrl.u32 %v2645, 7
  %v2647 = vsub.s32 2, %v2646
  %v2648 = vrot.slane %v2543, %v2647
  %v2649 = vlaneseq
  %v2650 = vshrl.u32 %v2649, 7
  %v2651 = vsub.s32 2, %v2650
  %v2652 = vrot.slane %v2544, %v2651
  %v2653 = vlaneseq
  %v2654 = vshrl.u32 %v2653, 7
  %v2655 = vsub.s32 2, %v2654
  %v2656 = vrot.slane %v2545, %v2655
  %v2657 = vlaneseq
  %v2658 = vshrl.u32 %v2657, 7
  %v2659 = vsub.s32 2, %v2658
  %v2660 = vrot.slane %v2546, %v2659
  %v2661 = vlaneseq
  %v2662 = vshrl.u32 %v2661, 7
  %v2663 = vsub.s32 2, %v2662
  %v2664 = vrot.slane %v2547, %v2663
  %v2665 = vlaneseq
  %v2666 = vshrl.u32 %v2665, 7
  %v2667 = vsub.s32 2, %v2666
  %v2668 = vrot.slane %v2548, %v2667
  %v2669 = vmul.f32 %v2640, %v2543
  %v2670 = vmul.f32 %v2644, %v2543
  %v2671 = vmul.f32 %v2648, %v2543
  %v2672 = vmul.f32 %v2652, %v2543
  %v2673 = vmul.f32 %v2656, %v2543
  %v2674 = vmul.f32 %v2660, %v2543
  %v2675 = vmul.f32 %v2664, %v2543
  %v2676 = vmul.f32 %v2668, %v2543
  %v2677 = vadd.f32 %v2629, %v2669
  %v2678 = vadd.f32 %v2630, %v2670
  %v2679 = vadd.f32 %v2631, %v2671
  %v2680 = vadd.f32 %v2632, %v2672
  %v2681 = vadd.f32 %v2633, %v2673
  %v2682 = vadd.f32 %v2634, %v2674
  %v2683 = vadd.f32 %v2635, %v2675
  %v2684 = vadd.f32 %v2636, %v2676
  %v2685 = vlaneseq
  %v2686 = vshrl.u32 %v2685, 7
  %v2687 = vsub.s32 3, %v2686
  %v2688 = vrot.slane %v2541, %v2687
  %v2689 = vlaneseq
  %v2690 = vshrl.u32 %v2689, 7
  %v2691 = vsub.s32 3, %v2690
  %v2692 = vrot.slane %v2542, %v2691
  %v2693 = vlaneseq
  %v2694 = vshrl.u32 %v2693, 7
  %v2695 = vsub.s32 3, %v2694
  %v2696 = vrot.slane %v2543, %v2695
  %v2697 = vlaneseq
  %v2698 = vshrl.u32 %v2697, 7
  %v2699 = vsub.s32 3, %v2698
  %v2700 = vrot.slane %v2544, %v2699
  %v2701 = vlaneseq
  %v2702 = vshrl.u32 %v2701, 7
  %v2703 = vsub.s32 3, %v2702
  %v2704 = vrot.slane %v2545, %v2703
  %v2705 = vlaneseq
  %v2706 = vshrl.u32 %v2705, 7
  %v2707 = vsub.s32 3, %v2706
  %v2708 = vrot.slane %v2546, %v2707
  %v2709 = vlaneseq
  %v2710 = vshrl.u32 %v2709, 7
  %v2711 = vsub.s32 3, %v2710
  %v2712 = vrot.slane %v2547, %v2711
  %v2713 = vlaneseq
  %v2714 = vshrl.u32 %v2713, 7
  %v2715 = vsub.s32 3, %v2714
  %v2716 = vrot.slane %v2548, %v2715
  %v2717 = vmul.f32 %v2688, %v2544
  %v2718 = vmul.f32 %v2692, %v2544
  %v2719 = vmul.f32 %v2696, %v2544
  %v2720 = vmul.f32 %v2700, %v2544
  %v2721 = vmul.f32 %v2704, %v2544
  %v2722 = vmul.f32 %v2708, %v2544
  %v2723 = vmul.f32 %v2712, %v2544
  %v2724 = vmul.f32 %v2716, %v2544
  %v2725 = vadd.f32 %v2677, %v2717
  %v2726 = vadd.f32 %v2678, %v2718
  %v2727 = vadd.f32 %v2679, %v2719
  %v2728 = vadd.f32 %v2680, %v2720
  %v2729 = vadd.f32 %v2681, %v2721
  %v2730 = vadd.f32 %v2682, %v2722
  %v2731 = vadd.f32 %v2683, %v2723
  %v2732 = vadd.f32 %v2684, %v2724
  %v2733 = vlaneseq
  %v2734 = vshrl.u32 %v2733, 7
  %v2735 = vsub.s32 4, %v2734
  %v2736 = vrot.slane %v2541, %v2735
  %v2737 = vlaneseq
  %v2738 = vshrl.u32 %v2737, 7
  %v2739 = vsub.s32 4, %v2738
  %v2740 = vrot.slane %v2542, %v2739
  %v2741 = vlaneseq
  %v2742 = vshrl.u32 %v2741, 7
  %v2743 = vsub.s32 4, %v2742
  %v2744 = vrot.slane %v2543, %v2743
  %v2745 = vlaneseq
  %v2746 = vshrl.u32 %v2745, 7
  %v2747 = vsub.s32 4, %v2746
  %v2748 = vrot.slane %v2544, %v2747
  %v2749 = vlaneseq
  %v2750 = vshrl.u32 %v2749, 7
  %v2751 = vsub.s32 4, %v2750
  %v2752 = vrot.slane %v2545, %v2751
  %v2753 = vlaneseq
  %v2754 = vshrl.u32 %v2753, 7
  %v2755 = vsub.s32 4, %v2754
  %v2756 = vrot.slane %v2546, %v2755
  %v2757 = vlaneseq
  %v2758 = vshrl.u32 %v2757, 7
  %v2759 = vsub.s32 4, %v2758
  %v2760 = vrot.slane %v2547, %v2759
  %v2761 = vlaneseq
  %v2762 = vshrl.u32 %v2761, 7
  %v2763 = vsub.s32 4, %v2762
  %v2764 = vrot.slane %v2548, %v2763
  %v2765 = vmul.f32 %v2736, %v2545
  %v2766 = vmul.f32 %v2740, %v2545
  %v2767 = vmul.f32 %v2744, %v2545
  %v2768 = vmul.f32 %v2748, %v2545
  %v2769 = vmul.f32 %v2752, %v2545
  %v2770 = vmul.f32 %v2756, %v2545
  %v2771 = vmul.f32 %v2760, %v2545
  %v2772 = vmul.f32 %v2764, %v2545
  %v2773 = vadd.f32 %v2725, %v2765
  %v2774 = vadd.f32 %v2726, %v2766
  %v2775 = vadd.f32 %v2727, %v2767
  %v2776 = vadd.f32 %v2728, %v2768
  %v2777 = vadd.f32 %v2729, %v2769
  %v2778 = vadd.f32 %v2730, %v2770
  %v2779 = vadd.f32 %v2731, %v2771
  %v2780 = vadd.f32 %v2732, %v2772
  %v2781 = vlaneseq
  %v2782 = vshrl.u32 %v2781, 7
  %v2783 = vsub.s32 5, %v2782
  %v2784 = vrot.slane %v2541, %v2783
  %v2785 = vlaneseq
  %v2786 = vshrl.u32 %v2785, 7
  %v2787 = vsub.s32 5, %v2786
  %v2788 = vrot.slane %v2542, %v2787
  %v2789 = vlaneseq
  %v2790 = vshrl.u32 %v2789, 7
  %v2791 = vsub.s32 5, %v2790
  %v2792 = vrot.slane %v2543, %v2791
  %v2793 = vlaneseq
  %v2794 = vshrl.u32 %v2793, 7
  %v2795 = vsub.s32 5, %v2794
  %v2796 = vrot.slane %v2544, %v2795
  %v2797 = vlaneseq
  %v2798 = vshrl.u32 %v2797, 7
  %v2799 = vsub.s32 5, %v2798
  %v2800 = vrot.slane %v2545, %v2799
  %v2801 = vlaneseq
  %v2802 = vshrl.u32 %v2801, 7
  %v2803 = vsub.s32 5, %v2802
  %v2804 = vrot.slane %v2546, %v2803
  %v2805 = vlaneseq
  %v2806 = vshrl.u32 %v2805, 7
  %v2807 = vsub.s32 5, %v2806
  %v2808 = vrot.slane %v2547, %v2807
  %v2809 = vlaneseq
  %v2810 = vshrl.u32 %v2809, 7
  %v2811 = vsub.s32 5, %v2810
  %v2812 = vrot.slane %v2548, %v2811
  %v2813 = vmul.f32 %v2784, %v2546
  %v2814 = vmul.f32 %v2788, %v2546
  %v2815 = vmul.f32 %v2792, %v2546
  %v2816 = vmul.f32 %v2796, %v2546
  %v2817 = vmul.f32 %v2800, %v2546
  %v2818 = vmul.f32 %v2804, %v2546
  %v2819 = vmul.f32 %v2808, %v2546
  %v2820 = vmul.f32 %v2812, %v2546
  %v2821 = vadd.f32 %v2773, %v2813
  %v2822 = vadd.f32 %v2774, %v2814
  %v2823 = vadd.f32 %v2775, %v2815
  %v2824 = vadd.f32 %v2776, %v2816
  %v2825 = vadd.f32 %v2777, %v2817
  %v2826 = vadd.f32 %v2778, %v2818
  %v2827 = vadd.f32 %v2779, %v2819
  %v2828 = vadd.f32 %v2780, %v2820
  %v2829 = vlaneseq
  %v2830 = vshrl.u32 %v2829, 7
  %v2831 = vsub.s32 6, %v2830
  %v2832 = vrot.slane %v2541, %v2831
  %v2833 = vlaneseq
  %v2834 = vshrl.u32 %v2833, 7
  %v2835 = vsub.s32 6, %v2834
  %v2836 = vrot.slane %v2542, %v2835
  %v2837 = vlaneseq
  %v2838 = vshrl.u32 %v2837, 7
  %v2839 = vsub.s32 6, %v2838
  %v2840 = vrot.slane %v2543, %v2839
  %v2841 = vlaneseq
  %v2842 = vshrl.u32 %v2841, 7
  %v2843 = vsub.s32 6, %v2842
  %v2844 = vrot.slane %v2544, %v2843
  %v2845 = vlaneseq
  %v2846 = vshrl.u32 %v2845, 7
  %v2847 = vsub.s32 6, %v2846
  %v2848 = vrot.slane %v2545, %v2847
  %v2849 = vlaneseq
  %v2850 = vshrl.u32 %v2849, 7
  %v2851 = vsub.s32 6, %v2850
  %v2852 = vrot.slane %v2546, %v2851
  %v2853 = vlaneseq
  %v2854 = vshrl.u32 %v2853, 7
  %v2855 = vsub.s32 6, %v2854
  %v2856 = vrot.slane %v2547, %v2855
  %v2857 = vlaneseq
  %v2858 = vshrl.u32 %v2857, 7
  %v2859 = vsub.s32 6, %v2858
  %v2860 = vrot.slane %v2548, %v2859
  %v2861 = vmul.f32 %v2832, %v2547
  %v2862 = vmul.f32 %v2836, %v2547
  %v2863 = vmul.f32 %v2840, %v2547
  %v2864 = vmul.f32 %v2844, %v2547
  %v2865 = vmul.f32 %v2848, %v2547
  %v2866 = vmul.f32 %v2852, %v2547
  %v2867 = vmul.f32 %v2856, %v2547
  %v2868 = vmul.f32 %v2860, %v2547
  %v2869 = vadd.f32 %v2821, %v2861
  %v2870 = vadd.f32 %v2822, %v2862
  %v2871 = vadd.f32 %v2823, %v2863
  %v2872 = vadd.f32 %v2824, %v2864
  %v2873 = vadd.f32 %v2825, %v2865
  %v2874 = vadd.f32 %v2826, %v2866
  %v2875 = vadd.f32 %v2827, %v2867
  %v2876 = vadd.f32 %v2828, %v2868
  %v2877 = vlaneseq
  %v2878 = vshrl.u32 %v2877, 7
  %v2879 = vsub.s32 7, %v2878
  %v2880 = vrot.slane %v2541, %v2879
  %v2881 = vlaneseq
  %v2882 = vshrl.u32 %v2881, 7
  %v2883 = vsub.s32 7, %v2882
  %v2884 = vrot.slane %v2542, %v2883
  %v2885 = vlaneseq
  %v2886 = vshrl.u32 %v2885, 7
  %v2887 = vsub.s32 7, %v2886
  %v2888 = vrot.slane %v2543, %v2887
  %v2889 = vlaneseq
  %v2890 = vshrl.u32 %v2889, 7
  %v2891 = vsub.s32 7, %v2890
  %v2892 = vrot.slane %v2544, %v2891
  %v2893 = vlaneseq
  %v2894 = vshrl.u32 %v2893, 7
  %v2895 = vsub.s32 7, %v2894
  %v2896 = vrot.slane %v2545, %v2895
  %v2897 = vlaneseq
  %v2898 = vshrl.u32 %v2897, 7
  %v2899 = vsub.s32 7, %v2898
  %v2900 = vrot.slane %v2546, %v2899
  %v2901 = vlaneseq
  %v2902 = vshrl.u32 %v2901, 7
  %v2903 = vsub.s32 7, %v2902
  %v2904 = vrot.slane %v2547, %v2903
  %v2905 = vlaneseq
  %v2906 = vshrl.u32 %v2905, 7
  %v2907 = vsub.s32 7, %v2906
  %v2908 = vrot.slane %v2548, %v2907
  %v2909 = vmul.f32 %v2880, %v2548
  %v2910 = vmul.f32 %v2884, %v2548
  %v2911 = vmul.f32 %v2888, %v2548
  %v2912 = vmul.f32 %v2892, %v2548
  %v2913 = vmul.f32 %v2896, %v2548
  %v2914 = vmul.f32 %v2900, %v2548
  %v2915 = vmul.f32 %v2904, %v2548
  %v2916 = vmul.f32 %v2908, %v2548
  %v2917 = vadd.f32 %v2869, %v2909
  %v2918 = vadd.f32 %v2870, %v2910
  %v2919 = vadd.f32 %v2871, %v2911
  %v2920 = vadd.f32 %v2872, %v2912
  %v2921 = vadd.f32 %v2873, %v2913
  %v2922 = vadd.f32 %v2874, %v2914
  %v2923 = vadd.f32 %v2875, %v2915
  %v2924 = vadd.f32 %v2876, %v2916
  %v2925 = vlaneseq
  %v2926 = vshrl.u32 %v2925, 7
  %v2927 = vsub.s32 0, %v2926
  %v2928 = vrot.slane %v2917, %v2927
  %v2929 = vlaneseq
  %v2930 = vshrl.u32 %v2929, 7
  %v2931 = vsub.s32 0, %v2930
  %v2932 = vrot.slane %v2918, %v2931
  %v2933 = vlaneseq
  %v2934 = vshrl.u32 %v2933, 7
  %v2935 = vsub.s32 0, %v2934
  %v2936 = vrot.slane %v2919, %v2935
  %v2937 = vlaneseq
  %v2938 = vshrl.u32 %v2937, 7
  %v2939 = vsub.s32 0, %v2938
  %v2940 = vrot.slane %v2920, %v2939
  %v2941 = vlaneseq
  %v2942 = vshrl.u32 %v2941, 7
  %v2943 = vsub.s32 0, %v2942
  %v2944 = vrot.slane %v2921, %v2943
  %v2945 = vlaneseq
  %v2946 = vshrl.u32 %v2945, 7
  %v2947 = vsub.s32 0, %v2946
  %v2948 = vrot.slane %v2922, %v2947
  %v2949 = vlaneseq
  %v2950 = vshrl.u32 %v2949, 7
  %v2951 = vsub.s32 0, %v2950
  %v2952 = vrot.slane %v2923, %v2951
  %v2953 = vlaneseq
  %v2954 = vshrl.u32 %v2953, 7
  %v2955 = vsub.s32 0, %v2954
  %v2956 = vrot.slane %v2924, %v2955
  %v2957 = vmul.f32 %v2928, %v2917
  %v2958 = vmul.f32 %v2932, %v2917
  %v2959 = vmul.f32 %v2936, %v2917
  %v2960 = vmul.f32 %v2940, %v2917
  %v2961 = vmul.f32 %v2944, %v2917
  %v2962 = vmul.f32 %v2948, %v2917
  %v2963 = vmul.f32 %v2952, %v2917
  %v2964 = vmul.f32 %v2956, %v2917
  %v2965 = vlaneseq
  %v2966 = vshrl.u32 %v2965, 7
  %v2967 = vsub.s32 1, %v2966
  %v2968 = vrot.slane %v2917, %v2967
  %v2969 = vlaneseq
  %v2970 = vshrl.u32 %v2969, 7
  %v2971 = vsub.s32 1, %v2970
  %v2972 = vrot.slane %v2918, %v2971
  %v2973 = vlaneseq
  %v2974 = vshrl.u32 %v2973, 7
  %v2975 = vsub.s32 1, %v2974
  %v2976 = vrot.slane %v2919, %v2975
  %v2977 = vlaneseq
  %v2978 = vshrl.u32 %v2977, 7
  %v2979 = vsub.s32 1, %v2978
  %v2980 = vrot.slane %v2920, %v2979
  %v2981 = vlaneseq
  %v2982 = vshrl.u32 %v2981, 7
  %v2983 = vsub.s32 1, %v2982
  %v2984 = vrot.slane %v2921, %v2983
  %v2985 = vlaneseq
  %v2986 = vshrl.u32 %v2985, 7
  %v2987 = vsub.s32 1, %v2986
  %v2988 = vrot.slane %v2922, %v2987
  %v2989 = vlaneseq
  %v2990 = vshrl.u32 %v2989, 7
  %v2991 = vsub.s32 1, %v2990
  %v2992 = vrot.slane %v2923, %v2991
  %v2993 = vlaneseq
  %v2994 = vshrl.u32 %v2993, 7
  %v2995 = vsub.s32 1, %v2994
  %v2996 = vrot.slane %v2924, %v2995
  %v2997 = vmul.f32 %v2968, %v2918
  %v2998 = vmul.f32 %v2972, %v2918
  %v2999 = vmul.f32 %v2976, %v2918
  %v3000 = vmul.f32 %v2980, %v2918
  %v3001 = vmul.f32 %v2984, %v2918
  %v3002 = vmul.f32 %v2988, %v2918
  %v3003 = vmul.f32 %v2992, %v2918
  %v3004 = vmul.f32 %v2996, %v2918
  %v3005 = vadd.f32 %v2957, %v2997
  %v3006 = vadd.f32 %v2958, %v2998
  %v3007 = vadd.f32 %v2959, %v2999
  %v3008 = vadd.f32 %v2960, %v3000
  %v3009 = vadd.f32 %v2961, %v3001
  %v3010 = vadd.f32 %v2962, %v3002
  %v3011 = vadd.f32 %v2963, %v3003
  %v3012 = vadd.f32 %v2964, %v3004
  %v3013 = vlaneseq
  %v3014 = vshrl.u32 %v3013, 7
  %v3015 = vsub.s32 2, %v3014
  %v3016 = vrot.slane %v2917, %v3015
  %v3017 = vlaneseq
  %v3018 = vshrl.u32 %v3017, 7
  %v3019 = vsub.s32 2, %v3018
  %v3020 = vrot.slane %v2918, %v3019
  %v3021 = vlaneseq
  %v3022 = vshrl.u32 %v3021, 7
  %v3023 = vsub.s32 2, %v3022
  %v3024 = vrot.slane %v2919, %v3023
  %v3025 = vlaneseq
  %v3026 = vshrl.u32 %v3025, 7
  %v3027 = vsub.s32 2, %v3026
  %v3028 = vrot.slane %v2920, %v3027
  %v3029 = vlaneseq
  %v3030 = vshrl.u32 %v3029, 7
  %v3031 = vsub.s32 2, %v3030
  %v3032 = vrot.slane %v2921, %v3031
  %v3033 = vlaneseq
  %v3034 = vshrl.u32 %v3033, 7
  %v3035 = vsub.s32 2, %v3034
  %v3036 = vrot.slane %v2922, %v3035
  %v3037 = vlaneseq
  %v3038 = vshrl.u32 %v3037, 7
  %v3039 = vsub.s32 2, %v3038
  %v3040 = vrot.slane %v2923, %v3039
  %v3041 = vlaneseq
  %v3042 = vshrl.u32 %v3041, 7
  %v3043 = vsub.s32 2, %v3042
  %v3044 = vrot.slane %v2924, %v3043
  %v3045 = vmul.f32 %v3016, %v2919
  %v3046 = vmul.f32 %v3020, %v2919
  %v3047 = vmul.f32 %v3024, %v2919
  %v3048 = vmul.f32 %v3028, %v2919
  %v3049 = vmul.f32 %v3032, %v2919
  %v3050 = vmul.f32 %v3036, %v2919
  %v3051 = vmul.f32 %v3040, %v2919
  %v3052 = vmul.f32 %v3044, %v2919
  %v3053 = vadd.f32 %v3005, %v3045
  %v3054 = vadd.f32 %v3006, %v3046
  %v3055 = vadd.f32 %v3007, %v3047
  %v3056 = vadd.f32 %v3008, %v3048
  %v3057 = vadd.f32 %v3009, %v3049
  %v3058 = vadd.f32 %v3010, %v3050
  %v3059 = vadd.f32 %v3011, %v3051
  %v3060 = vadd.f32 %v3012, %v3052
  %v3061 = vlaneseq
  %v3062 = vshrl.u32 %v3061, 7
  %v3063 = vsub.s32 3, %v3062
  %v3064 = vrot.slane %v2917, %v3063
  %v3065 = vlaneseq
  %v3066 = vshrl.u32 %v3065, 7
  %v3067 = vsub.s32 3, %v3066
  %v3068 = vrot.slane %v2918, %v3067
  %v3069 = vlaneseq
  %v3070 = vshrl.u32 %v3069, 7
  %v3071 = vsub.s32 3, %v3070
  %v3072 = vrot.slane %v2919, %v3071
  %v3073 = vlaneseq
  %v3074 = vshrl.u32 %v3073, 7
  %v3075 = vsub.s32 3, %v3074
  %v3076 = vrot.slane %v2920, %v3075
  %v3077 = vlaneseq
  %v3078 = vshrl.u32 %v3077, 7
  %v3079 = vsub.s32 3, %v3078
  %v3080 = vrot.slane %v2921, %v3079
  %v3081 = vlaneseq
  %v3082 = vshrl.u32 %v3081, 7
  %v3083 = vsub.s32 3, %v3082
  %v3084 = vrot.slane %v2922, %v3083
  %v3085 = vlaneseq
  %v3086 = vshrl.u32 %v3085, 7
  %v3087 = vsub.s32 3, %v3086
  %v3088 = vrot.slane %v2923, %v3087
  %v3089 = vlaneseq
  %v3090 = vshrl.u32 %v3089, 7
  %v3091 = vsub.s32 3, %v3090
  %v3092 = vrot.slane %v2924, %v3091
  %v3093 = vmul.f32 %v3064, %v2920
  %v3094 = vmul.f32 %v3068, %v2920
  %v3095 = vmul.f32 %v3072, %v2920
  %v3096 = vmul.f32 %v3076, %v2920
  %v3097 = vmul.f32 %v3080, %v2920
  %v3098 = vmul.f32 %v3084, %v2920
  %v3099 = vmul.f32 %v3088, %v2920
  %v3100 = vmul.f32 %v3092, %v2920
  %v3101 = vadd.f32 %v3053, %v3093
  %v3102 = vadd.f32 %v3054, %v3094
  %v3103 = vadd.f32 %v3055, %v3095
  %v3104 = vadd.f32 %v3056, %v3096
  %v3105 = vadd.f32 %v3057, %v3097
  %v3106 = vadd.f32 %v3058, %v3098
  %v3107 = vadd.f32 %v3059, %v3099
  %v3108 = vadd.f32 %v3060, %v3100
  %v3109 = vlaneseq
  %v3110 = vshrl.u32 %v3109, 7
  %v3111 = vsub.s32 4, %v3110
  %v3112 = vrot.slane %v2917, %v3111
  %v3113 = vlaneseq
  %v3114 = vshrl.u32 %v3113, 7
  %v3115 = vsub.s32 4, %v3114
  %v3116 = vrot.slane %v2918, %v3115
  %v3117 = vlaneseq
  %v3118 = vshrl.u32 %v3117, 7
  %v3119 = vsub.s32 4, %v3118
  %v3120 = vrot.slane %v2919, %v3119
  %v3121 = vlaneseq
  %v3122 = vshrl.u32 %v3121, 7
  %v3123 = vsub.s32 4, %v3122
  %v3124 = vrot.slane %v2920, %v3123
  %v3125 = vlaneseq
  %v3126 = vshrl.u32 %v3125, 7
  %v3127 = vsub.s32 4, %v3126
  %v3128 = vrot.slane %v2921, %v3127
  %v3129 = vlaneseq
  %v3130 = vshrl.u32 %v3129, 7
  %v3131 = vsub.s32 4, %v3130
  %v3132 = vrot.slane %v2922, %v3131
  %v3133 = vlaneseq
  %v3134 = vshrl.u32 %v3133, 7
  %v3135 = vsub.s32 4, %v3134
  %v3136 = vrot.slane %v2923, %v3135
  %v3137 = vlaneseq
  %v3138 = vshrl.u32 %v3137, 7
  %v3139 = vsub.s32 4, %v3138
  %v3140 = vrot.slane %v2924, %v3139
  %v3141 = vmul.f32 %v3112, %v2921
  %v3142 = vmul.f32 %v3116, %v2921
  %v3143 = vmul.f32 %v3120, %v2921
  %v3144 = vmul.f32 %v3124, %v2921
  %v3145 = vmul.f32 %v3128, %v2921
  %v3146 = vmul.f32 %v3132, %v2921
  %v3147 = vmul.f32 %v3136, %v2921
  %v3148 = vmul.f32 %v3140, %v2921
  %v3149 = vadd.f32 %v3101, %v3141
  %v3150 = vadd.f32 %v3102, %v3142
  %v3151 = vadd.f32 %v3103, %v3143
  %v3152 = vadd.f32 %v3104, %v3144
  %v3153 = vadd.f32 %v3105, %v3145
  %v3154 = vadd.f32 %v3106, %v3146
  %v3155 = vadd.f32 %v3107, %v3147
  %v3156 = vadd.f32 %v3108, %v3148
  %v3157 = vlaneseq
  %v3158 = vshrl.u32 %v3157, 7
  %v3159 = vsub.s32 5, %v3158
  %v3160 = vrot.slane %v2917, %v3159
  %v3161 = vlaneseq
  %v3162 = vshrl.u32 %v3161, 7
  %v3163 = vsub.s32 5, %v3162
  %v3164 = vrot.slane %v2918, %v3163
  %v3165 = vlaneseq
  %v3166 = vshrl.u32 %v3165, 7
  %v3167 = vsub.s32 5, %v3166
  %v3168 = vrot.slane %v2919, %v3167
  %v3169 = vlaneseq
  %v3170 = vshrl.u32 %v3169, 7
  %v3171 = vsub.s32 5, %v3170
  %v3172 = vrot.slane %v2920, %v3171
  %v3173 = vlaneseq
  %v3174 = vshrl.u32 %v3173, 7
  %v3175 = vsub.s32 5, %v3174
  %v3176 = vrot.slane %v2921, %v3175
  %v3177 = vlaneseq
  %v3178 = vshrl.u32 %v3177, 7
  %v3179 = vsub.s32 5, %v3178
  %v3180 = vrot.slane %v2922, %v3179
  %v3181 = vlaneseq
  %v3182 = vshrl.u32 %v3181, 7
  %v3183 = vsub.s32 5, %v3182
  %v3184 = vrot.slane %v2923, %v3183
  %v3185 = vlaneseq
  %v3186 = vshrl.u32 %v3185, 7
  %v3187 = vsub.s32 5, %v3186
  %v3188 = vrot.slane %v2924, %v3187
  %v3189 = vmul.f32 %v3160, %v2922
  %v3190 = vmul.f32 %v3164, %v2922
  %v3191 = vmul.f32 %v3168, %v2922
  %v3192 = vmul.f32 %v3172, %v2922
  %v3193 = vmul.f32 %v3176, %v2922
  %v3194 = vmul.f32 %v3180, %v2922
  %v3195 = vmul.f32 %v3184, %v2922
  %v3196 = vmul.f32 %v3188, %v2922
  %v3197 = vadd.f32 %v3149, %v3189
  %v3198 = vadd.f32 %v3150, %v3190
  %v3199 = vadd.f32 %v3151, %v3191
  %v3200 = vadd.f32 %v3152, %v3192
  %v3201 = vadd.f32 %v3153, %v3193
  %v3202 = vadd.f32 %v3154, %v3194
  %v3203 = vadd.f32 %v3155, %v3195
  %v3204 = vadd.f32 %v3156, %v3196
  %v3205 = vlaneseq
  %v3206 = vshrl.u32 %v3205, 7
  %v3207 = vsub.s32 6, %v3206
  %v3208 = vrot.slane %v2917, %v3207
  %v3209 = vlaneseq
  %v3210 = vshrl.u32 %v3209, 7
  %v3211 = vsub.s32 6, %v3210
  %v3212 = vrot.slane %v2918, %v3211
  %v3213 = vlaneseq
  %v3214 = vshrl.u32 %v3213, 7
  %v3215 = vsub.s32 6, %v3214
  %v3216 = vrot.slane %v2919, %v3215
  %v3217 = vlaneseq
  %v3218 = vshrl.u32 %v3217, 7
  %v3219 = vsub.s32 6, %v3218
  %v3220 = vrot.slane %v2920, %v3219
  %v3221 = vlaneseq
  %v3222 = vshrl.u32 %v3221, 7
  %v3223 = vsub.s32 6, %v3222
  %v3224 = vrot.slane %v2921, %v3223
  %v3225 = vlaneseq
  %v3226 = vshrl.u32 %v3225, 7
  %v3227 = vsub.s32 6, %v3226
  %v3228 = vrot.slane %v2922, %v3227
  %v3229 = vlaneseq
  %v3230 = vshrl.u32 %v3229, 7
  %v3231 = vsub.s32 6, %v3230
  %v3232 = vrot.slane %v2923, %v3231
  %v3233 = vlaneseq
  %v3234 = vshrl.u32 %v3233, 7
  %v3235 = vsub.s32 6, %v3234
  %v3236 = vrot.slane %v2924, %v3235
  %v3237 = vmul.f32 %v3208, %v2923
  %v3238 = vmul.f32 %v3212, %v2923
  %v3239 = vmul.f32 %v3216, %v2923
  %v3240 = vmul.f32 %v3220, %v2923
  %v3241 = vmul.f32 %v3224, %v2923
  %v3242 = vmul.f32 %v3228, %v2923
  %v3243 = vmul.f32 %v3232, %v2923
  %v3244 = vmul.f32 %v3236, %v2923
  %v3245 = vadd.f32 %v3197, %v3237
  %v3246 = vadd.f32 %v3198, %v3238
  %v3247 = vadd.f32 %v3199, %v3239
  %v3248 = vadd.f32 %v3200, %v3240
  %v3249 = vadd.f32 %v3201, %v3241
  %v3250 = vadd.f32 %v3202, %v3242
  %v3251 = vadd.f32 %v3203, %v3243
  %v3252 = vadd.f32 %v3204, %v3244
  %v3253 = vlaneseq
  %v3254 = vshrl.u32 %v3253, 7
  %v3255 = vsub.s32 7, %v3254
  %v3256 = vrot.slane %v2917, %v3255
  %v3257 = vlaneseq
  %v3258 = vshrl.u32 %v3257, 7
  %v3259 = vsub.s32 7, %v3258
  %v3260 = vrot.slane %v2918, %v3259
  %v3261 = vlaneseq
  %v3262 = vshrl.u32 %v3261, 7
  %v3263 = vsub.s32 7, %v3262
  %v3264 = vrot.slane %v2919, %v3263
  %v3265 = vlaneseq
  %v3266 = vshrl.u32 %v3265, 7
  %v3267 = vsub.s32 7, %v3266
  %v3268 = vrot.slane %v2920, %v3267
  %v3269 = vlaneseq
  %v3270 = vshrl.u32 %v3269, 7
  %v3271 = vsub.s32 7, %v3270
  %v3272 = vrot.slane %v2921, %v3271
  %v3273 = vlaneseq
  %v3274 = vshrl.u32 %v3273, 7
  %v3275 = vsub.s32 7, %v3274
  %v3276 = vrot.slane %v2922, %v3275
  %v3277 = vlaneseq
  %v3278 = vshrl.u32 %v3277, 7
  %v3279 = vsub.s32 7, %v3278
  %v3280 = vrot.slane %v2923, %v3279
  %v3281 = vlaneseq
  %v3282 = vshrl.u32 %v3281, 7
  %v3283 = vsub.s32 7, %v3282
  %v3284 = vrot.slane %v2924, %v3283
  %v3285 = vmul.f32 %v3256, %v2924
  %v3286 = vmul.f32 %v3260, %v2924
  %v3287 = vmul.f32 %v3264, %v2924
  %v3288 = vmul.f32 %v3268, %v2924
  %v3289 = vmul.f32 %v3272, %v2924
  %v3290 = vmul.f32 %v3276, %v2924
  %v3291 = vmul.f32 %v3280, %v2924
  %v3292 = vmul.f32 %v3284, %v2924
  %v3293 = vadd.f32 %v3245, %v3285
  %v3294 = vadd.f32 %v3246, %v3286
  %v3295 = vadd.f32 %v3247, %v3287
  %v3296 = vadd.f32 %v3248, %v3288
  %v3297 = vadd.f32 %v3249, %v3289
  %v3298 = vadd.f32 %v3250, %v3290
  %v3299 = vadd.f32 %v3251, %v3291
  %v3300 = vadd.f32 %v3252, %v3292
  %v3301 = vlaneseq
  %v3302 = vshrl.u32 %v3301, 7
  %v3303 = vsub.s32 0, %v3302
  %v3304 = vrot.slane %v3293, %v3303
  %v3305 = vlaneseq
  %v3306 = vshrl.u32 %v3305, 7
  %v3307 = vsub.s32 0, %v3306
  %v3308 = vrot.slane %v3294, %v3307
  %v3309 = vlaneseq
  %v3310 = vshrl.u32 %v3309, 7
  %v3311 = vsub.s32 0, %v3310
  %v3312 = vrot.slane %v3295, %v3311
  %v3313 = vlaneseq
  %v3314 = vshrl.u32 %v3313, 7
  %v3315 = vsub.s32 0, %v3314
  %v3316 = vrot.slane %v3296, %v3315
  %v3317 = vlaneseq
  %v3318 = vshrl.u32 %v3317, 7
  %v3319 = vsub.s32 0, %v3318
  %v3320 = vrot.slane %v3297, %v3319
  %v3321 = vlaneseq
  %v3322 = vshrl.u32 %v3321, 7
  %v3323 = vsub.s32 0, %v3322
  %v3324 = vrot.slane %v3298, %v3323
  %v3325 = vlaneseq
  %v3326 = vshrl.u32 %v3325, 7
  %v3327 = vsub.s32 0, %v3326
  %v3328 = vrot.slane %v3299, %v3327
  %v3329 = vlaneseq
  %v3330 = vshrl.u32 %v3329, 7
  %v3331 = vsub.s32 0, %v3330
  %v3332 = vrot.slane %v3300, %v3331
  %v3333 = vmul.f32 %v3304, %v3293
  %v3334 = vmul.f32 %v3308, %v3293
  %v3335 = vmul.f32 %v3312, %v3293
  %v3336 = vmul.f32 %v3316, %v3293
  %v3337 = vmul.f32 %v3320, %v3293
  %v3338 = vmul.f32 %v3324, %v3293
  %v3339 = vmul.f32 %v3328, %v3293
  %v3340 = vmul.f32 %v3332, %v3293
  %v3341 = vlaneseq
  %v3342 = vshrl.u32 %v3341, 7
  %v3343 = vsub.s32 1, %v3342
  %v3344 = vrot.slane %v3293, %v3343
  %v3345 = vlaneseq
  %v3346 = vshrl.u32 %v3345, 7
  %v3347 = vsub.s32 1, %v3346
  %v3348 = vrot.slane %v3294, %v3347
  %v3349 = vlaneseq
  %v3350 = vshrl.u32 %v3349, 7
  %v3351 = vsub.s32 1, %v3350
  %v3352 = vrot.slane %v3295, %v3351
  %v3353 = vlaneseq
  %v3354 = vshrl.u32 %v3353, 7
  %v3355 = vsub.s32 1, %v3354
  %v3356 = vrot.slane %v3296, %v3355
  %v3357 = vlaneseq
  %v3358 = vshrl.u32 %v3357, 7
  %v3359 = vsub.s32 1, %v3358
  %v3360 = vrot.slane %v3297, %v3359
  %v3361 = vlaneseq
  %v3362 = vshrl.u32 %v3361, 7
  %v3363 = vsub.s32 1, %v3362
  %v3364 = vrot.slane %v3298, %v3363
  %v3365 = vlaneseq
  %v3366 = vshrl.u32 %v3365, 7
  %v3367 = vsub.s32 1, %v3366
  %v3368 = vrot.slane %v3299, %v3367
  %v3369 = vlaneseq
  %v3370 = vshrl.u32 %v3369, 7
  %v3371 = vsub.s32 1, %v3370
  %v3372 = vrot.slane %v3300, %v3371
  %v3373 = vmul.f32 %v3344, %v3294
  %v3374 = vmul.f32 %v3348, %v3294
  %v3375 = vmul.f32 %v3352, %v3294
  %v3376 = vmul.f32 %v3356, %v3294
  %v3377 = vmul.f32 %v3360, %v3294
  %v3378 = vmul.f32 %v3364, %v3294
  %v3379 = vmul.f32 %v3368, %v3294
  %v3380 = vmul.f32 %v3372, %v3294
  %v3381 = vadd.f32 %v3333, %v3373
  %v3382 = vadd.f32 %v3334, %v3374
  %v3383 = vadd.f32 %v3335, %v3375
  %v3384 = vadd.f32 %v3336, %v3376
  %v3385 = vadd.f32 %v3337, %v3377
  %v3386 = vadd.f32 %v3338, %v3378
  %v3387 = vadd.f32 %v3339, %v3379
  %v3388 = vadd.f32 %v3340, %v3380
  %v3389 = vlaneseq
  %v3390 = vshrl.u32 %v3389, 7
  %v3391 = vsub.s32 2, %v3390
  %v3392 = vrot.slane %v3293, %v3391
  %v3393 = vlaneseq
  %v3394 = vshrl.u32 %v3393, 7
  %v3395 = vsub.s32 2, %v3394
  %v3396 = vrot.slane %v3294, %v3395
  %v3397 = vlaneseq
  %v3398 = vshrl.u32 %v3397, 7
  %v3399 = vsub.s32 2, %v3398
  %v3400 = vrot.slane %v3295, %v3399
  %v3401 = vlaneseq
  %v3402 = vshrl.u32 %v3401, 7
  %v3403 = vsub.s32 2, %v3402
  %v3404 = vrot.slane %v3296, %v3403
  %v3405 = vlaneseq
  %v3406 = vshrl.u32 %v3405, 7
  %v3407 = vsub.s32 2, %v3406
  %v3408 = vrot.slane %v3297, %v3407
  %v3409 = vlaneseq
  %v3410 = vshrl.u32 %v3409, 7
  %v3411 = vsub.s32 2, %v3410
  %v3412 = vrot.slane %v3298, %v3411
  %v3413 = vlaneseq
  %v3414 = vshrl.u32 %v3413, 7
  %v3415 = vsub.s32 2, %v3414
  %v3416 = vrot.slane %v3299, %v3415
  %v3417 = vlaneseq
  %v3418 = vshrl.u32 %v3417, 7
  %v3419 = vsub.s32 2, %v3418
  %v3420 = vrot.slane %v3300, %v3419
  %v3421 = vmul.f32 %v3392, %v3295
  %v3422 = vmul.f32 %v3396, %v3295
  %v3423 = vmul.f32 %v3400, %v3295
  %v3424 = vmul.f32 %v3404, %v3295
  %v3425 = vmul.f32 %v3408, %v3295
  %v3426 = vmul.f32 %v3412, %v3295
  %v3427 = vmul.f32 %v3416, %v3295
  %v3428 = vmul.f32 %v3420, %v3295
  %v3429 = vadd.f32 %v3381, %v3421
  %v3430 = vadd.f32 %v3382, %v3422
  %v3431 = vadd.f32 %v3383, %v3423
  %v3432 = vadd.f32 %v3384, %v3424
  %v3433 = vadd.f32 %v3385, %v3425
  %v3434 = vadd.f32 %v3386, %v3426
  %v3435 = vadd.f32 %v3387, %v3427
  %v3436 = vadd.f32 %v3388, %v3428
  %v3437 = vlaneseq
  %v3438 = vshrl.u32 %v3437, 7
  %v3439 = vsub.s32 3, %v3438
  %v3440 = vrot.slane %v3293, %v3439
  %v3441 = vlaneseq
  %v3442 = vshrl.u32 %v3441, 7
  %v3443 = vsub.s32 3, %v3442
  %v3444 = vrot.slane %v3294, %v3443
  %v3445 = vlaneseq
  %v3446 = vshrl.u32 %v3445, 7
  %v3447 = vsub.s32 3, %v3446
  %v3448 = vrot.slane %v3295, %v3447
  %v3449 = vlaneseq
  %v3450 = vshrl.u32 %v3449, 7
  %v3451 = vsub.s32 3, %v3450
  %v3452 = vrot.slane %v3296, %v3451
  %v3453 = vlaneseq
  %v3454 = vshrl.u32 %v3453, 7
  %v3455 = vsub.s32 3, %v3454
  %v3456 = vrot.slane %v3297, %v3455
  %v3457 = vlaneseq
  %v3458 = vshrl.u32 %v3457, 7
  %v3459 = vsub.s32 3, %v3458
  %v3460 = vrot.slane %v3298, %v3459
  %v3461 = vlaneseq
  %v3462 = vshrl.u32 %v3461, 7
  %v3463 = vsub.s32 3, %v3462
  %v3464 = vrot.slane %v3299, %v3463
  %v3465 = vlaneseq
  %v3466 = vshrl.u32 %v3465, 7
  %v3467 = vsub.s32 3, %v3466
  %v3468 = vrot.slane %v3300, %v3467
  %v3469 = vmul.f32 %v3440, %v3296
  %v3470 = vmul.f32 %v3444, %v3296
  %v3471 = vmul.f32 %v3448, %v3296
  %v3472 = vmul.f32 %v3452, %v3296
  %v3473 = vmul.f32 %v3456, %v3296
  %v3474 = vmul.f32 %v3460, %v3296
  %v3475 = vmul.f32 %v3464, %v3296
  %v3476 = vmul.f32 %v3468, %v3296
  %v3477 = vadd.f32 %v3429, %v3469
  %v3478 = vadd.f32 %v3430, %v3470
  %v3479 = vadd.f32 %v3431, %v3471
  %v3480 = vadd.f32 %v3432, %v3472
  %v3481 = vadd.f32 %v3433, %v3473
  %v3482 = vadd.f32 %v3434, %v3474
  %v3483 = vadd.f32 %v3435, %v3475
  %v3484 = vadd.f32 %v3436, %v3476
  %v3485 = vlaneseq
  %v3486 = vshrl.u32 %v3485, 7
  %v3487 = vsub.s32 4, %v3486
  %v3488 = vrot.slane %v3293, %v3487
  %v3489 = vlaneseq
  %v3490 = vshrl.u32 %v3489, 7
  %v3491 = vsub.s32 4, %v3490
  %v3492 = vrot.slane %v3294, %v3491
  %v3493 = vlaneseq
  %v3494 = vshrl.u32 %v3493, 7
  %v3495 = vsub.s32 4, %v3494
  %v3496 = vrot.slane %v3295, %v3495
  %v3497 = vlaneseq
  %v3498 = vshrl.u32 %v3497, 7
  %v3499 = vsub.s32 4, %v3498
  %v3500 = vrot.slane %v3296, %v3499
  %v3501 = vlaneseq
  %v3502 = vshrl.u32 %v3501, 7
  %v3503 = vsub.s32 4, %v3502
  %v3504 = vrot.slane %v3297, %v3503
  %v3505 = vlaneseq
  %v3506 = vshrl.u32 %v3505, 7
  %v3507 = vsub.s32 4, %v3506
  %v3508 = vrot.slane %v3298, %v3507
  %v3509 = vlaneseq
  %v3510 = vshrl.u32 %v3509, 7
  %v3511 = vsub.s32 4, %v3510
  %v3512 = vrot.slane %v3299, %v3511
  %v3513 = vlaneseq
  %v3514 = vshrl.u32 %v3513, 7
  %v3515 = vsub.s32 4, %v3514
  %v3516 = vrot.slane %v3300, %v3515
  %v3517 = vmul.f32 %v3488, %v3297
  %v3518 = vmul.f32 %v3492, %v3297
  %v3519 = vmul.f32 %v3496, %v3297
  %v3520 = vmul.f32 %v3500, %v3297
  %v3521 = vmul.f32 %v3504, %v3297
  %v3522 = vmul.f32 %v3508, %v3297
  %v3523 = vmul.f32 %v3512, %v3297
  %v3524 = vmul.f32 %v3516, %v3297
  %v3525 = vadd.f32 %v3477, %v3517
  %v3526 = vadd.f32 %v3478, %v3518
  %v3527 = vadd.f32 %v3479, %v3519
  %v3528 = vadd.f32 %v3480, %v3520
  %v3529 = vadd.f32 %v3481, %v3521
  %v3530 = vadd.f32 %v3482, %v3522
  %v3531 = vadd.f32 %v3483, %v3523
  %v3532 = vadd.f32 %v3484, %v3524
  %v3533 = vlaneseq
  %v3534 = vshrl.u32 %v3533, 7
  %v3535 = vsub.s32 5, %v3534
  %v3536 = vrot.slane %v3293, %v3535
  %v3537 = vlaneseq
  %v3538 = vshrl.u32 %v3537, 7
  %v3539 = vsub.s32 5, %v3538
  %v3540 = vrot.slane %v3294, %v3539
  %v3541 = vlaneseq
  %v3542 = vshrl.u32 %v3541, 7
  %v3543 = vsub.s32 5, %v3542
  %v3544 = vrot.slane %v3295, %v3543
  %v3545 = vlaneseq
  %v3546 = vshrl.u32 %v3545, 7
  %v3547 = vsub.s32 5, %v3546
  %v3548 = vrot.slane %v3296, %v3547
  %v3549 = vlaneseq
  %v3550 = vshrl.u32 %v3549, 7
  %v3551 = vsub.s32 5, %v3550
  %v3552 = vrot.slane %v3297, %v3551
  %v3553 = vlaneseq
  %v3554 = vshrl.u32 %v3553, 7
  %v3555 = vsub.s32 5, %v3554
  %v3556 = vrot.slane %v3298, %v3555
  %v3557 = vlaneseq
  %v3558 = vshrl.u32 %v3557, 7
  %v3559 = vsub.s32 5, %v3558
  %v3560 = vrot.slane %v3299, %v3559
  %v3561 = vlaneseq
  %v3562 = vshrl.u32 %v3561, 7
  %v3563 = vsub.s32 5, %v3562
  %v3564 = vrot.slane %v3300, %v3563
  %v3565 = vmul.f32 %v3536, %v3298
  %v3566 = vmul.f32 %v3540, %v3298
  %v3567 = vmul.f32 %v3544, %v3298
  %v3568 = vmul.f32 %v3548, %v3298
  %v3569 = vmul.f32 %v3552, %v3298
  %v3570 = vmul.f32 %v3556, %v3298
  %v3571 = vmul.f32 %v3560, %v3298
  %v3572 = vmul.f32 %v3564, %v3298
  %v3573 = vadd.f32 %v3525, %v3565
  %v3574 = vadd.f32 %v3526, %v3566
  %v3575 = vadd.f32 %v3527, %v3567
  %v3576 = vadd.f32 %v3528, %v3568
  %v3577 = vadd.f32 %v3529, %v3569
  %v3578 = vadd.f32 %v3530, %v3570
  %v3579 = vadd.f32 %v3531, %v3571
  %v3580 = vadd.f32 %v3532, %v3572
  %v3581 = vlaneseq
  %v3582 = vshrl.u32 %v3581, 7
  %v3583 = vsub.s32 6, %v3582
  %v3584 = vrot.slane %v3293, %v3583
  %v3585 = vlaneseq
  %v3586 = vshrl.u32 %v3585, 7
  %v3587 = vsub.s32 6, %v3586
  %v3588 = vrot.slane %v3294, %v3587
  %v3589 = vlaneseq
  %v3590 = vshrl.u32 %v3589, 7
  %v3591 = vsub.s32 6, %v3590
  %v3592 = vrot.slane %v3295, %v3591
  %v3593 = vlaneseq
  %v3594 = vshrl.u32 %v3593, 7
  %v3595 = vsub.s32 6, %v3594
  %v3596 = vrot.slane %v3296, %v3595
  %v3597 = vlaneseq
  %v3598 = vshrl.u32 %v3597, 7
  %v3599 = vsub.s32 6, %v3598
  %v3600 = vrot.slane %v3297, %v3599
  %v3601 = vlaneseq
  %v3602 = vshrl.u32 %v3601, 7
  %v3603 = vsub.s32 6, %v3602
  %v3604 = vrot.slane %v3298, %v3603
  %v3605 = vlaneseq
  %v3606 = vshrl.u32 %v3605, 7
  %v3607 = vsub.s32 6, %v3606
  %v3608 = vrot.slane %v3299, %v3607
  %v3609 = vlaneseq
  %v3610 = vshrl.u32 %v3609, 7
  %v3611 = vsub.s32 6, %v3610
  %v3612 = vrot.slane %v3300, %v3611
  %v3613 = vmul.f32 %v3584, %v3299
  %v3614 = vmul.f32 %v3588, %v3299
  %v3615 = vmul.f32 %v3592, %v3299
  %v3616 = vmul.f32 %v3596, %v3299
  %v3617 = vmul.f32 %v3600, %v3299
  %v3618 = vmul.f32 %v3604, %v3299
  %v3619 = vmul.f32 %v3608, %v3299
  %v3620 = vmul.f32 %v3612, %v3299
  %v3621 = vadd.f32 %v3573, %v3613
  %v3622 = vadd.f32 %v3574, %v3614
  %v3623 = vadd.f32 %v3575, %v3615
  %v3624 = vadd.f32 %v3576, %v3616
  %v3625 = vadd.f32 %v3577, %v3617
  %v3626 = vadd.f32 %v3578, %v3618
  %v3627 = vadd.f32 %v3579, %v3619
  %v3628 = vadd.f32 %v3580, %v3620
  %v3629 = vlaneseq
  %v3630 = vshrl.u32 %v3629, 7
  %v3631 = vsub.s32 7, %v3630
  %v3632 = vrot.slane %v3293, %v3631
  %v3633 = vlaneseq
  %v3634 = vshrl.u32 %v3633, 7
  %v3635 = vsub.s32 7, %v3634
  %v3636 = vrot.slane %v3294, %v3635
  %v3637 = vlaneseq
  %v3638 = vshrl.u32 %v3637, 7
  %v3639 = vsub.s32 7, %v3638
  %v3640 = vrot.slane %v3295, %v3639
  %v3641 = vlaneseq
  %v3642 = vshrl.u32 %v3641, 7
  %v3643 = vsub.s32 7, %v3642
  %v3644 = vrot.slane %v3296, %v3643
  %v3645 = vlaneseq
  %v3646 = vshrl.u32 %v3645, 7
  %v3647 = vsub.s32 7, %v3646
  %v3648 = vrot.slane %v3297, %v3647
  %v3649 = vlaneseq
  %v3650 = vshrl.u32 %v3649, 7
  %v3651 = vsub.s32 7, %v3650
  %v3652 = vrot.slane %v3298, %v3651
  %v3653 = vlaneseq
  %v3654 = vshrl.u32 %v3653, 7
  %v3655 = vsub.s32 7, %v3654
  %v3656 = vrot.slane %v3299, %v3655
  %v3657 = vlaneseq
  %v3658 = vshrl.u32 %v3657, 7
  %v3659 = vsub.s32 7, %v3658
  %v3660 = vrot.slane %v3300, %v3659
  %v3661 = vmul.f32 %v3632, %v3300
  %v3662 = vmul.f32 %v3636, %v3300
  %v3663 = vmul.f32 %v3640, %v3300
  %v3664 = vmul.f32 %v3644, %v3300
  %v3665 = vmul.f32 %v3648, %v3300
  %v3666 = vmul.f32 %v3652, %v3300
  %v3667 = vmul.f32 %v3656, %v3300
  %v3668 = vmul.f32 %v3660, %v3300
  %v3669 = vadd.f32 %v3621, %v3661
  %v3670 = vadd.f32 %v3622, %v3662
  %v3671 = vadd.f32 %v3623, %v3663
  %v3672 = vadd.f32 %v3624, %v3664
  %v3673 = vadd.f32 %v3625, %v3665
  %v3674 = vadd.f32 %v3626, %v3666
  %v3675 = vadd.f32 %v3627, %v3667
  %v3676 = vadd.f32 %v3628, %v3668
  %v3677 = vld [vmem:[%s1] sm:$0xff]
  %v3678 = vlaneseq
  %v3679 = vshrl.u32 %v3678, 7
  %v3680 = vsub.s32 0, %v3679
  %v3681 = vrot.slane %v3677, %v3680
  %v3682 = vmul.f32 %v3669, %v3681
  %v3683 = vlaneseq
  %v3684 = vshrl.u32 %v3683, 7
  %v3685 = vsub.s32 1, %v3684
  %v3686 = vrot.slane %v3677, %v3685
  %v3687 = vmul.f32 %v3670, %v3686
  %v3688 = vadd.f32 %v3682, %v3687
  %v3689 = vlaneseq
  %v3690 = vshrl.u32 %v3689, 7
  %v3691 = vsub.s32 2, %v3690
  %v3692 = vrot.slane %v3677, %v3691
  %v3693 = vmul.f32 %v3671, %v3692
  %v3694 = vadd.f32 %v3688, %v3693
  %v3695 = vlaneseq
  %v3696 = vshrl.u32 %v3695, 7
  %v3697 = vsub.s32 3, %v3696
  %v3698 = vrot.slane %v3677, %v3697
  %v3699 = vmul.f32 %v3672, %v3698
  %v3700 = vadd.f32 %v3694, %v3699
  %v3701 = vlaneseq
  %v3702 = vshrl.u32 %v3701, 7
  %v3703 = vsub.s32 4, %v3702
  %v3704 = vrot.slane %v3677, %v3703
  %v3705 = vmul.f32 %v3673, %v3704
  %v3706 = vadd.f32 %v3700, %v3705
  %v3707 = vlaneseq
  %v3708 = vshrl.u32 %v3707, 7
  %v3709 = vsub.s32 5, %v3708
  %v3710 = vrot.slane %v3677, %v3709
  %v3711 = vmul.f32 %v3674, %v3710
  %v3712 = vadd.f32 %v3706, %v3711
  %v3713 = vlaneseq
  %v3714 = vshrl.u32 %v3713, 7
  %v3715 = vsub.s32 6, %v3714
  %v3716 = vrot.slane %v3677, %v3715
  %v3717 = vmul.f32 %v3675, %v3716
  %v3718 = vadd.f32 %v3712, %v3717
  %v3719 = vlaneseq
  %v3720 = vshrl.u32 %v3719, 7
  %v3721 = vsub.s32 7, %v3720
  %v3722 = vrot.slane %v3677, %v3721
  %v3723 = vmul.f32 %v3676, %v3722
  %v3724 = vadd.f32 %v3718, %v3723
  %3725 = vst [vmem:[%s2] sm:$0xff] %v3724
  // Predicated region
  $region10: #{transopt_forward.1} parent=0 // pred_check
    _
  $region11: #{transopt_forward.1} parent=0 // pred_check_branch
    %3727 = sbr.rel (0) target = $region13
  $region12: #{transopt_forward.1} parent=0 // pred_region
    _
  $region13: #{transopt_forward.1} parent=0 // pred_fallthru
    _
  // Predicated region
  $region14: #{transopt_forward.1} parent=0 // pred_check
    _
  $region15: #{transopt_forward.1} parent=0 // pred_check_branch
    %3729 = sbr.rel (0) target = $region17
  $region16: #{transopt_forward.1} parent=0 // pred_region
    _
  $region17: #{transopt_forward.1} parent=0 // pred_fallthru
    _

</llo_original>
